<compile_context>
chip_gen: v7x
topology: tpu7x:2x2x1
jax: 0.10.0
libtpu: 0.0.40
codegen_flags: <defaults>
</compile_context>

<pallas_src>
import functools

import jax
import jax.numpy as jnp
from jax.experimental import pallas as pl
from jax.experimental.pallas import tpu as pltpu

_LN_EPS = 1e-5


@functools.lru_cache(maxsize=None)
def _vmem_limit_bytes():
    """Scoped-VMEM budget per generation: physical capacity minus ~16 MiB
    headroom, clamped to [32 MiB, 96 MiB] (v5e/v6e: 128 MiB -> 96 MiB,
    v7x: 64 MiB -> 48 MiB). Falls back to a conservative 32 MiB."""
    default = 32 * 1024 * 1024
    try:
        cap = int(pltpu.get_tpu_info().vmem_capacity_bytes)
    except Exception:
        return default
    return int(max(default, min(cap - 16 * 1024 * 1024, 96 * 1024 * 1024)))


# ----------------------------- Pallas kernels ------------------------------

def _proj_kernel(x_ref, w_ref, add_ref, o_ref):
    """y = x @ W + (pos + idx_emb + conv_bias), for one (segment, batch) tile.

    x_ref  : (1, 1, HW, C)   tokens-major feature map (contraction on lanes)
    w_ref  : (C, D)          1x1-conv weight (bf16, resident)
    add_ref: (1, HW, D)      pos_embed + idx_embed[seg] + conv bias
    o_ref  : (1, 1, HW, D)
    """
    x = x_ref[0, 0].astype(jnp.bfloat16)                               # (HW, C)
    y = jnp.dot(x, w_ref[...], preferred_element_type=jnp.float32)     # (HW, D)
    o_ref[0, 0] = (y + add_ref[0]).astype(o_ref.dtype)


def _mha_ln_kernel(x_ref, wqkv_ref, bqkv_ref, wo_ref, bo_ref, g_ref, bln_ref,
                   o_ref, qkv_ref, *, n_head, d_model, tq, eps):
    """Multi-head-attention block for one (batch, query-tile) grid step.

    The full-sequence qkv (bf16) is computed once per batch element (qi == 0)
    into the persistent scratch; each step attends a tq-row query tile against
    the full K/V, accumulating per-head contexts straight through the
    out-projection, then applies residual + LayerNorm1 (post-norm, f32)."""
    qi = pl.program_id(1)
    S = x_ref.shape[1]

    @pl.when(qi == 0)
    def _():
        xb = x_ref[0].astype(jnp.bfloat16)                             # (S, D)
        qkv = jnp.dot(xb, wqkv_ref[...],
                      preferred_element_type=jnp.float32)              # (S, 3D)
        qkv_ref[...] = (qkv + bqkv_ref[...]).astype(qkv_ref.dtype)

    if tq == S:
        start = 0                                   # single tile: static slice
    else:
        start = pl.multiple_of(qi * tq, 8)          # tq is a multiple of 8
    rows = pl.ds(start, tq)

    hd = d_model // n_head
    scale = 1.0 / float(hd) ** 0.5
    x_tile = x_ref[0, rows, :].astype(jnp.float32)                     # (tq, D)

    attn = jnp.zeros((tq, d_model), jnp.float32)
    for h in range(n_head):                                            # static unroll
        q = qkv_ref[rows, pl.ds(h * hd, hd)]                           # (tq, hd) bf16
        k = qkv_ref[:, pl.ds(d_model + h * hd, hd)]                    # (S, hd)  bf16
        v = qkv_ref[:, pl.ds(2 * d_model + h * hd, hd)]                # (S, hd)  bf16
        # q @ k^T without an explicit transpose of k (contract last dims).
        s = jax.lax.dot_general(q, k, (((1,), (1,)), ((), ())),
                                preferred_element_type=jnp.float32) * scale
        s = s - jnp.max(s, axis=-1, keepdims=True)
        p = jnp.exp(s)
        p = p * pl.reciprocal(jnp.sum(p, axis=-1, keepdims=True), approx=True)
        ctx = jnp.dot(p.astype(jnp.bfloat16), v,
                      preferred_element_type=jnp.float32)              # (tq, hd)
        # accumulate this head directly through its slice of the out-proj
        attn = attn + jnp.dot(ctx.astype(jnp.bfloat16),
                              wo_ref[pl.ds(h * hd, hd), :],
                              preferred_element_type=jnp.float32)      # (tq, D)

    # post-norm residual (nn.TransformerEncoderLayer, eval mode), f32 math
    y = x_tile + attn + bo_ref[...]
    mean = jnp.mean(y, axis=-1, keepdims=True)
    var = jnp.mean((y - mean) ** 2, axis=-1, keepdims=True)
    yn = (y - mean) * jax.lax.rsqrt(var + eps)
    o_ref[0] = (yn * g_ref[...] + bln_ref[...]).astype(o_ref.dtype)


def _ffn_ln_kernel(x_ref, w1_ref, b1_ref, w2_ref, b2_ref, g_ref, bln_ref,
                   o_ref, *, eps):
    """FFN block: LN(x + relu(x@W1+b1)@W2+b2) -- hidden kept in VMEM (bf16 MXU
    inputs, f32 accumulation / LN)."""
    x = x_ref[0]                                                       # (ts, D)
    h = jnp.dot(x.astype(jnp.bfloat16), w1_ref[...],
                preferred_element_type=jnp.float32) + b1_ref[...]
    h = jnp.maximum(h, 0.0)                                            # (ts, F)
    ff = jnp.dot(h.astype(jnp.bfloat16), w2_ref[...],
                 preferred_element_type=jnp.float32) + b2_ref[...]
    y = x.astype(jnp.float32) + ff
    mean = jnp.mean(y, axis=-1, keepdims=True)
    var = jnp.mean((y - mean) ** 2, axis=-1, keepdims=True)
    yn = (y - mean) * jax.lax.rsqrt(var + eps)
    o_ref[0] = (yn * g_ref[...] + bln_ref[...]).astype(o_ref.dtype)


# ------------------------------ kernel wrappers -----------------------------

def _seq_tile(S, target=512):
    """Largest multiple of 8 that divides S and is <= target, else full S."""
    if S <= target:
        return S
    t = (target // 8) * 8
    while t >= 8:
        if S % t == 0:
            return t
        t -= 8
    return S


def project_all(x_all, proj_w, add3):
    """x_all: (3, B, HW, C) tokens-major maps. add3: (3, HW, D).
    Returns (B, 3, HW, D) float32."""
    _, B, HW, C = x_all.shape
    D = proj_w.shape[1]
    return pl.pallas_call(
        _proj_kernel,
        out_shape=jax.ShapeDtypeStruct((B, 3, HW, D), jnp.float32),
        grid=(3, B),
        in_specs=[
            pl.BlockSpec((1, 1, HW, C), lambda s, b: (s, b, 0, 0)),
            pl.BlockSpec((C, D), lambda s, b: (0, 0)),         # resident weight
            pl.BlockSpec((1, HW, D), lambda s, b: (s, 0, 0)),  # broadcast over batch
        ],
        out_specs=pl.BlockSpec((1, 1, HW, D), lambda s, b: (b, s, 0, 0)),
        compiler_params=pltpu.CompilerParams(
            dimension_semantics=("parallel", "parallel"),
            vmem_limit_bytes=_vmem_limit_bytes()),
    )(x_all, proj_w, add3)


def mha_block(x, lp, n_head):
    """x: (B, S, D) -> LN1(x + MHA(x)); grid over (batch, query tiles)."""
    B, S, D = x.shape
    tq = _seq_tile(S, 512)
    kernel = functools.partial(_mha_ln_kernel, n_head=n_head, d_model=D,
                               tq=tq, eps=_LN_EPS)
    const2 = lambda b, i: (0, 0)
    return pl.pallas_call(
        kernel,
        out_shape=jax.ShapeDtypeStruct((B, S, D), x.dtype),
        grid=(B, S // tq),
        in_specs=[
            pl.BlockSpec((1, S, D), lambda b, i: (b, 0, 0)),   # resident across q tiles
            pl.BlockSpec((D, 3 * D), const2),
            pl.BlockSpec((1, 3 * D), const2),
            pl.BlockSpec((D, D), const2),
            pl.BlockSpec((1, D), const2),
            pl.BlockSpec((1, D), const2),
            pl.BlockSpec((1, D), const2),
        ],
        out_specs=pl.BlockSpec((1, tq, D), lambda b, i: (b, i, 0)),
        scratch_shapes=[pltpu.VMEM((S, 3 * D), jnp.bfloat16)],
        compiler_params=pltpu.CompilerParams(
            dimension_semantics=("parallel", "arbitrary"),
            vmem_limit_bytes=_vmem_limit_bytes()),
    )(x, lp["qkv_w"], lp["qkv_b"].reshape(1, 3 * D), lp["out_w"],
      lp["out_b"].reshape(1, D), lp["ln1_g"].reshape(1, D),
      lp["ln1_b"].reshape(1, D))


def ffn_block(x, lp):
    """x: (B, S, D) -> LN2(x + FFN(x)); grid over (batch, seq tiles)."""
    B, S, D = x.shape
    F = lp["ff_w1"].shape[1]
    ts = _seq_tile(S, 512)
    kernel = functools.partial(_ffn_ln_kernel, eps=_LN_EPS)
    const2 = lambda b, i: (0, 0)
    return pl.pallas_call(
        kernel,
        out_shape=jax.ShapeDtypeStruct((B, S, D), x.dtype),
        grid=(B, S // ts),
        in_specs=[
            pl.BlockSpec((1, ts, D), lambda b, i: (b, i, 0)),
            pl.BlockSpec((D, F), const2),
            pl.BlockSpec((1, F), const2),
            pl.BlockSpec((F, D), const2),
            pl.BlockSpec((1, D), const2),
            pl.BlockSpec((1, D), const2),
            pl.BlockSpec((1, D), const2),
        ],
        out_specs=pl.BlockSpec((1, ts, D), lambda b, i: (b, i, 0)),
        compiler_params=pltpu.CompilerParams(
            dimension_semantics=("parallel", "parallel"),
            vmem_limit_bytes=_vmem_limit_bytes()),
    )(x, lp["ff_w1"], lp["ff_b1"].reshape(1, F), lp["ff_w2"],
      lp["ff_b2"].reshape(1, D), lp["ln2_g"].reshape(1, D),
      lp["ln2_b"].reshape(1, D))


# ------------------------- deterministic parameters ------------------------

def init_params(key, feature_dim, h, w, d_model, n_layers, dim_ff):
    keys = jax.random.split(key, 4 + n_layers)

    def xavier(k, shape):
        lim = (6.0 / (shape[0] + shape[1])) ** 0.5
        return jax.random.uniform(k, shape, jnp.float32, -lim, lim)

    # matmul weights are stored bf16 (MXU-native); biases / LN / embeds stay f32
    wdt = jnp.bfloat16
    params = {
        "proj_w": xavier(keys[0], (feature_dim, d_model)).astype(wdt),
        "proj_b": jnp.zeros((d_model,), jnp.float32),
        "w_emb": 0.02 * jax.random.normal(keys[1], (w, d_model // 2), jnp.float32),
        "h_emb": 0.02 * jax.random.normal(keys[2], (h, d_model // 2), jnp.float32),
        "idx_emb": 0.02 * jax.random.normal(keys[3], (3, d_model), jnp.float32),
        "layers": [],
    }
    for l in range(n_layers):
        lk = jax.random.split(keys[4 + l], 4)
        params["layers"].append({
            "qkv_w": xavier(lk[0], (d_model, 3 * d_model)).astype(wdt),
            "qkv_b": jnp.zeros((3 * d_model,), jnp.float32),
            "out_w": xavier(lk[1], (d_model, d_model)).astype(wdt),
            "out_b": jnp.zeros((d_model,), jnp.float32),
            "ln1_g": jnp.ones((d_model,), jnp.float32),
            "ln1_b": jnp.zeros((d_model,), jnp.float32),
            "ff_w1": xavier(lk[2], (d_model, dim_ff)).astype(wdt),
            "ff_b1": jnp.zeros((dim_ff,), jnp.float32),
            "ff_w2": xavier(lk[3], (dim_ff, d_model)).astype(wdt),
            "ff_b2": jnp.zeros((d_model,), jnp.float32),
            "ln2_g": jnp.ones((d_model,), jnp.float32),
            "ln2_b": jnp.zeros((d_model,), jnp.float32),
        })
    return params


# -------------------------------- forward ----------------------------------

def mccformers_s(params, img_feat1, img_feat2, img_feat3, *, d_model, n_head):
    B, C, H, W = img_feat1.shape
    HW = H * W
    S = 3 * HW
    D = d_model

    # position embedding (HW, D): token (i, j) -> [embed_w[j], embed_h[i]]
    pos = jnp.concatenate(
        [
            jnp.broadcast_to(params["w_emb"][None, :, :], (H, W, D // 2)),
            jnp.broadcast_to(params["h_emb"][:, None, :], (H, W, D // 2)),
        ],
        axis=-1,
    ).reshape(HW, D)
    # (3, HW, D): pos + segment embedding + conv bias (broadcast over batch
    # inside the projection kernel via its index_map).
    add3 = (pos[None, :, :] + params["idx_emb"][:, None, :]
            + params["proj_b"][None, None, :])

    # tokens-major (3, B, HW, C): 1x1 conv contracts over the lane axis, so no
    # per-step in-kernel transpose of a CxHW tile is needed.
    def tok(f):
        return jnp.transpose(f.reshape(B, C, HW), (0, 2, 1))
    x_all = jnp.stack([tok(img_feat1), tok(img_feat2), tok(img_feat3)], axis=0)

    x = project_all(x_all, params["proj_w"], add3)        # (B, 3, HW, D)
    x = x.reshape(B, S, D)                                # segments contiguous

    for lp in params["layers"]:
        x = mha_block(x, lp, n_head)                      # qkv+attn+proj+LN1
        x = ffn_block(x, lp)                              # ffn+LN2

    # split the three segments, concat along channels, go seq-first:
    feat = x.reshape(B, 3, HW, D)
    out = jnp.transpose(feat, (2, 0, 1, 3)).reshape(HW, B, 3 * D)
    return out                                            # (HW, B, 3*d_model)


# --------------------------------- main -------------------------------------

if __name__ == "__main__":
    batch, feature_dim, h, w = 2, 4, 4, 4
    d_model, n_head, n_layers, dim_ff = 32, 4, 2, 64

    key = jax.random.PRNGKey(0)
    k1, k2, k3, kp = jax.random.split(key, 4)
    img1 = jax.random.normal(k1, (batch, feature_dim, h, w), jnp.float32)
    img2 = jax.random.normal(k2, (batch, feature_dim, h, w), jnp.float32)
    img3 = jax.random.normal(k3, (batch, feature_dim, h, w), jnp.float32)

    params = init_params(kp, feature_dim, h, w, d_model, n_layers, dim_ff)

    fwd = jax.jit(functools.partial(mccformers_s, d_model=d_model, n_head=n_head))
    out = fwd(params, img1, img2, img3)
    out = jax.block_until_ready(out)
    assert out.shape == (h * w, batch, 3 * d_model), out.shape
    assert bool(jnp.all(jnp.isfinite(out)))
    print("KERNEL_OK")
</pallas_src>

<mosaic_0001>
module attributes {stable_mosaic.version = 11 : i64} {
  func.func @_mha_ln_kernel(%arg0: i32, %arg1: i32, %arg2: memref<1x48x32xf32, #tpu.memory_space<vmem>>, %arg3: memref<32x96xbf16, #tpu.memory_space<vmem>>, %arg4: memref<1x96xf32, #tpu.memory_space<vmem>>, %arg5: memref<32x32xbf16, #tpu.memory_space<vmem>>, %arg6: memref<1x32xf32, #tpu.memory_space<vmem>>, %arg7: memref<1x32xf32, #tpu.memory_space<vmem>>, %arg8: memref<1x32xf32, #tpu.memory_space<vmem>>, %arg9: memref<1x48x32xf32, #tpu.memory_space<vmem>>, %arg10: memref<48x96xbf16, #tpu.memory_space<vmem>>) attributes {dimension_semantics = [#tpu.dimension_semantics<parallel>, #tpu.dimension_semantics<arbitrary>], iteration_bounds = array<i64: 2, 1>, scalar_prefetch = 0 : i64, scratch_operands = 1 : i64, tpu.core_type = #tpu.core_type<tc>, window_params = [{transform_indices = @transform_0, window_bounds = array<i64: 1, 48, 32>}, {pipeline_mode = #tpu.pipeline_mode<synchronous>, transform_indices = @transform_1, window_bounds = array<i64: 32, 96>}, {pipeline_mode = #tpu.pipeline_mode<synchronous>, transform_indices = @transform_2, window_bounds = array<i64: 1, 96>}, {pipeline_mode = #tpu.pipeline_mode<synchronous>, transform_indices = @transform_3, window_bounds = array<i64: 32, 32>}, {pipeline_mode = #tpu.pipeline_mode<synchronous>, transform_indices = @transform_4, window_bounds = array<i64: 1, 32>}, {pipeline_mode = #tpu.pipeline_mode<synchronous>, transform_indices = @transform_5, window_bounds = array<i64: 1, 32>}, {pipeline_mode = #tpu.pipeline_mode<synchronous>, transform_indices = @transform_6, window_bounds = array<i64: 1, 32>}, {transform_indices = @transform_7, window_bounds = array<i64: 1, 48, 32>}]} {
    %c0_i32 = arith.constant 0 : i32
    %0 = arith.cmpi eq, %arg1, %c0_i32 : i32
    %1 = arith.extui %0 : i1 to i32
    %c0_i32_0 = arith.constant 0 : i32
    %2 = arith.cmpi ne, %1, %c0_i32_0 : i32
    scf.if %2 {
      %c0_62 = arith.constant 0 : index
      %c0_63 = arith.constant 0 : index
      %c0_64 = arith.constant 0 : index
      %125 = vector.load %arg2[%c0_62, %c0_63, %c0_64] : memref<1x48x32xf32, #tpu.memory_space<vmem>>, vector<1x48x32xf32>
      %126 = vector.shape_cast %125 : vector<1x48x32xf32> to vector<48x32xf32>
      %127 = arith.truncf %126 : vector<48x32xf32> to vector<48x32xbf16>
      %c0_65 = arith.constant 0 : index
      %c0_66 = arith.constant 0 : index
      %128 = vector.load %arg3[%c0_65, %c0_66] : memref<32x96xbf16, #tpu.memory_space<vmem>>, vector<32x96xbf16>
      %cst_67 = arith.constant dense<0.000000e+00> : vector<48x96xf32>
      %129 = tpu.matmul %127, %128, %cst_67 {dimension_numbers = #tpu.dot_dimension_numbers<[1], [0], [0], [1], [0, 0, 1, 1], [], []>} : vector<48x32xbf16>, vector<32x96xbf16>, vector<48x96xf32> -> vector<48x96xf32>
      %c0_68 = arith.constant 0 : index
      %c0_69 = arith.constant 0 : index
      %130 = vector.load %arg4[%c0_68, %c0_69] : memref<1x96xf32, #tpu.memory_space<vmem>>, vector<1x96xf32>
      %131 = vector.broadcast %130 : vector<1x96xf32> to vector<48x96xf32>
      %132 = arith.addf %129, %131 : vector<48x96xf32>
      %133 = arith.truncf %132 : vector<48x96xf32> to vector<48x96xbf16>
      %c0_70 = arith.constant 0 : index
      %c0_71 = arith.constant 0 : index
      %134 = vector.load %arg10[%c0_70, %c0_71] : memref<48x96xbf16, #tpu.memory_space<vmem>>, vector<48x96xbf16>
      tpu.vector_store %arg10[%c0_70, %c0_71], %133 {strides = array<i32>} : memref<48x96xbf16, #tpu.memory_space<vmem>>, vector<48x96xbf16>,
    } else {
    }
    %c0 = arith.constant 0 : index
    %c0_1 = arith.constant 0 : index
    %c0_2 = arith.constant 0 : index
    %3 = vector.load %arg2[%c0, %c0_1, %c0_2] : memref<1x48x32xf32, #tpu.memory_space<vmem>>, vector<1x48x32xf32>
    %4 = vector.shape_cast %3 : vector<1x48x32xf32> to vector<48x32xf32>
    %cst = arith.constant 0.000000e+00 : f32
    %5 = vector.broadcast %cst : f32 to vector<48x32xf32>
    %c0_3 = arith.constant 0 : index
    %c0_4 = arith.constant 0 : index
    %6 = vector.load %arg10[%c0_3, %c0_4] : memref<48x96xbf16, #tpu.memory_space<vmem>>, vector<48x8xbf16>
    %c0_5 = arith.constant 0 : index
    %c32 = arith.constant 32 : index
    %7 = vector.load %arg10[%c0_5, %c32] : memref<48x96xbf16, #tpu.memory_space<vmem>>, vector<48x8xbf16>
    %c0_6 = arith.constant 0 : index
    %c64 = arith.constant 64 : index
    %8 = vector.load %arg10[%c0_6, %c64] : memref<48x96xbf16, #tpu.memory_space<vmem>>, vector<48x8xbf16>
    %cst_7 = arith.constant dense<0.000000e+00> : vector<48x48xf32>
    %9 = tpu.matmul %6, %7, %cst_7 {dimension_numbers = #tpu.dot_dimension_numbers<[1], [1], [0], [0], [0, 0, 1, 0], [], []>} : vector<48x8xbf16>, vector<48x8xbf16>, vector<48x48xf32> -> vector<48x48xf32>
    %cst_8 = arith.constant 0.353553385 : f32
    %10 = vector.broadcast %cst_8 : f32 to vector<48x48xf32>
    %11 = arith.mulf %9, %10 : vector<48x48xf32>
    %cst_9 = arith.constant dense<0xFF800000> : vector<48xf32>
    %12 = vector.multi_reduction <maximumf>, %11, %cst_9 [1] : vector<48x48xf32> to vector<48xf32>
    %13 = vector.shape_cast %12 : vector<48xf32> to vector<48x1xf32>
    %14 = vector.broadcast %13 : vector<48x1xf32> to vector<48x48xf32>
    %15 = arith.subf %11, %14 : vector<48x48xf32>
    %16 = math.exp %15 : vector<48x48xf32>
    %cst_10 = arith.constant dense<0.000000e+00> : vector<48xf32>
    %17 = vector.multi_reduction <add>, %16, %cst_10 [1] : vector<48x48xf32> to vector<48xf32>
    %18 = vector.shape_cast %17 : vector<48xf32> to vector<48x1xf32>
    %19 = tpu.reciprocal %18 {approx = true} : vector<48x1xf32> -> vector<48x1xf32>
    %20 = vector.broadcast %19 : vector<48x1xf32> to vector<48x48xf32>
    %21 = arith.mulf %16, %20 : vector<48x48xf32>
    %22 = arith.truncf %21 : vector<48x48xf32> to vector<48x48xbf16>
    %cst_11 = arith.constant dense<0.000000e+00> : vector<48x8xf32>
    %23 = tpu.matmul %22, %8, %cst_11 {dimension_numbers = #tpu.dot_dimension_numbers<[1], [0], [0], [1], [0, 0, 1, 1], [], []>} : vector<48x48xbf16>, vector<48x8xbf16>, vector<48x8xf32> -> vector<48x8xf32>
    %24 = arith.truncf %23 : vector<48x8xf32> to vector<48x8xbf16>
    %c0_12 = arith.constant 0 : index
    %c0_13 = arith.constant 0 : index
    %25 = vector.load %arg5[%c0_12, %c0_13] : memref<32x32xbf16, #tpu.memory_space<vmem>>, vector<8x32xbf16>
    %cst_14 = arith.constant dense<0.000000e+00> : vector<48x32xf32>
    %26 = tpu.matmul %24, %25, %cst_14 {dimension_numbers = #tpu.dot_dimension_numbers<[1], [0], [0], [1], [0, 0, 1, 1], [], []>} : vector<48x8xbf16>, vector<8x32xbf16>, vector<48x32xf32> -> vector<48x32xf32>
    %27 = arith.addf %5, %26 : vector<48x32xf32>
    %c0_15 = arith.constant 0 : index
    %c8 = arith.constant 8 : index
    %28 = vector.load %arg10[%c0_15, %c8] : memref<48x96xbf16, #tpu.memory_space<vmem>>, vector<48x8xbf16>
    %c0_16 = arith.constant 0 : index
    %c40 = arith.constant 40 : index
    %29 = vector.load %arg10[%c0_16, %c40] : memref<48x96xbf16, #tpu.memory_space<vmem>>, vector<48x8xbf16>
    %c0_17 = arith.constant 0 : index
    %c72 = arith.constant 72 : index
    %30 = vector.load %arg10[%c0_17, %c72] : memref<48x96xbf16, #tpu.memory_space<vmem>>, vector<48x8xbf16>
    %cst_18 = arith.constant dense<0.000000e+00> : vector<48x48xf32>
    %31 = tpu.matmul %28, %29, %cst_18 {dimension_numbers = #tpu.dot_dimension_numbers<[1], [1], [0], [0], [0, 0, 1, 0], [], []>} : vector<48x8xbf16>, vector<48x8xbf16>, vector<48x48xf32> -> vector<48x48xf32>
    %cst_19 = arith.constant 0.353553385 : f32
    %32 = vector.broadcast %cst_19 : f32 to vector<48x48xf32>
    %33 = arith.mulf %31, %32 : vector<48x48xf32>
    %cst_20 = arith.constant dense<0xFF800000> : vector<48xf32>
    %34 = vector.multi_reduction <maximumf>, %33, %cst_20 [1] : vector<48x48xf32> to vector<48xf32>
    %35 = vector.shape_cast %34 : vector<48xf32> to vector<48x1xf32>
    %36 = vector.broadcast %35 : vector<48x1xf32> to vector<48x48xf32>
    %37 = arith.subf %33, %36 : vector<48x48xf32>
    %38 = math.exp %37 : vector<48x48xf32>
    %cst_21 = arith.constant dense<0.000000e+00> : vector<48xf32>
    %39 = vector.multi_reduction <add>, %38, %cst_21 [1] : vector<48x48xf32> to vector<48xf32>
    %40 = vector.shape_cast %39 : vector<48xf32> to vector<48x1xf32>
    %41 = tpu.reciprocal %40 {approx = true} : vector<48x1xf32> -> vector<48x1xf32>
    %42 = vector.broadcast %41 : vector<48x1xf32> to vector<48x48xf32>
    %43 = arith.mulf %38, %42 : vector<48x48xf32>
    %44 = arith.truncf %43 : vector<48x48xf32> to vector<48x48xbf16>
    %cst_22 = arith.constant dense<0.000000e+00> : vector<48x8xf32>
    %45 = tpu.matmul %44, %30, %cst_22 {dimension_numbers = #tpu.dot_dimension_numbers<[1], [0], [0], [1], [0, 0, 1, 1], [], []>} : vector<48x48xbf16>, vector<48x8xbf16>, vector<48x8xf32> -> vector<48x8xf32>
    %46 = arith.truncf %45 : vector<48x8xf32> to vector<48x8xbf16>
    %c8_23 = arith.constant 8 : index
    %c0_24 = arith.constant 0 : index
    %47 = vector.load %arg5[%c8_23, %c0_24] : memref<32x32xbf16, #tpu.memory_space<vmem>>, vector<8x32xbf16>
    %cst_25 = arith.constant dense<0.000000e+00> : vector<48x32xf32>
    %48 = tpu.matmul %46, %47, %cst_25 {dimension_numbers = #tpu.dot_dimension_numbers<[1], [0], [0], [1], [0, 0, 1, 1], [], []>} : vector<48x8xbf16>, vector<8x32xbf16>, vector<48x32xf32> -> vector<48x32xf32>
    %49 = arith.addf %27, %48 : vector<48x32xf32>
    %c0_26 = arith.constant 0 : index
    %c16 = arith.constant 16 : index
    %50 = vector.load %arg10[%c0_26, %c16] : memref<48x96xbf16, #tpu.memory_space<vmem>>, vector<48x8xbf16>
    %c0_27 = arith.constant 0 : index
    %c48 = arith.constant 48 : index
    %51 = vector.load %arg10[%c0_27, %c48] : memref<48x96xbf16, #tpu.memory_space<vmem>>, vector<48x8xbf16>
    %c0_28 = arith.constant 0 : index
    %c80 = arith.constant 80 : index
    %52 = vector.load %arg10[%c0_28, %c80] : memref<48x96xbf16, #tpu.memory_space<vmem>>, vector<48x8xbf16>
    %cst_29 = arith.constant dense<0.000000e+00> : vector<48x48xf32>
    %53 = tpu.matmul %50, %51, %cst_29 {dimension_numbers = #tpu.dot_dimension_numbers<[1], [1], [0], [0], [0, 0, 1, 0], [], []>} : vector<48x8xbf16>, vector<48x8xbf16>, vector<48x48xf32> -> vector<48x48xf32>
    %cst_30 = arith.constant 0.353553385 : f32
    %54 = vector.broadcast %cst_30 : f32 to vector<48x48xf32>
    %55 = arith.mulf %53, %54 : vector<48x48xf32>
    %cst_31 = arith.constant dense<0xFF800000> : vector<48xf32>
    %56 = vector.multi_reduction <maximumf>, %55, %cst_31 [1] : vector<48x48xf32> to vector<48xf32>
    %57 = vector.shape_cast %56 : vector<48xf32> to vector<48x1xf32>
    %58 = vector.broadcast %57 : vector<48x1xf32> to vector<48x48xf32>
    %59 = arith.subf %55, %58 : vector<48x48xf32>
    %60 = math.exp %59 : vector<48x48xf32>
    %cst_32 = arith.constant dense<0.000000e+00> : vector<48xf32>
    %61 = vector.multi_reduction <add>, %60, %cst_32 [1] : vector<48x48xf32> to vector<48xf32>
    %62 = vector.shape_cast %61 : vector<48xf32> to vector<48x1xf32>
    %63 = tpu.reciprocal %62 {approx = true} : vector<48x1xf32> -> vector<48x1xf32>
    %64 = vector.broadcast %63 : vector<48x1xf32> to vector<48x48xf32>
    %65 = arith.mulf %60, %64 : vector<48x48xf32>
    %66 = arith.truncf %65 : vector<48x48xf32> to vector<48x48xbf16>
    %cst_33 = arith.constant dense<0.000000e+00> : vector<48x8xf32>
    %67 = tpu.matmul %66, %52, %cst_33 {dimension_numbers = #tpu.dot_dimension_numbers<[1], [0], [0], [1], [0, 0, 1, 1], [], []>} : vector<48x48xbf16>, vector<48x8xbf16>, vector<48x8xf32> -> vector<48x8xf32>
    %68 = arith.truncf %67 : vector<48x8xf32> to vector<48x8xbf16>
    %c16_34 = arith.constant 16 : index
    %c0_35 = arith.constant 0 : index
    %69 = vector.load %arg5[%c16_34, %c0_35] : memref<32x32xbf16, #tpu.memory_space<vmem>>, vector<8x32xbf16>
    %cst_36 = arith.constant dense<0.000000e+00> : vector<48x32xf32>
    %70 = tpu.matmul %68, %69, %cst_36 {dimension_numbers = #tpu.dot_dimension_numbers<[1], [0], [0], [1], [0, 0, 1, 1], [], []>} : vector<48x8xbf16>, vector<8x32xbf16>, vector<48x32xf32> -> vector<48x32xf32>
    %71 = arith.addf %49, %70 : vector<48x32xf32>
    %c0_37 = arith.constant 0 : index
    %c24 = arith.constant 24 : index
    %72 = vector.load %arg10[%c0_37, %c24] : memref<48x96xbf16, #tpu.memory_space<vmem>>, vector<48x8xbf16>
    %c0_38 = arith.constant 0 : index
    %c56 = arith.constant 56 : index
    %73 = vector.load %arg10[%c0_38, %c56] : memref<48x96xbf16, #tpu.memory_space<vmem>>, vector<48x8xbf16>
    %c0_39 = arith.constant 0 : index
    %c88 = arith.constant 88 : index
    %74 = vector.load %arg10[%c0_39, %c88] : memref<48x96xbf16, #tpu.memory_space<vmem>>, vector<48x8xbf16>
    %cst_40 = arith.constant dense<0.000000e+00> : vector<48x48xf32>
    %75 = tpu.matmul %72, %73, %cst_40 {dimension_numbers = #tpu.dot_dimension_numbers<[1], [1], [0], [0], [0, 0, 1, 0], [], []>} : vector<48x8xbf16>, vector<48x8xbf16>, vector<48x48xf32> -> vector<48x48xf32>
    %cst_41 = arith.constant 0.353553385 : f32
    %76 = vector.broadcast %cst_41 : f32 to vector<48x48xf32>
    %77 = arith.mulf %75, %76 : vector<48x48xf32>
    %cst_42 = arith.constant dense<0xFF800000> : vector<48xf32>
    %78 = vector.multi_reduction <maximumf>, %77, %cst_42 [1] : vector<48x48xf32> to vector<48xf32>
    %79 = vector.shape_cast %78 : vector<48xf32> to vector<48x1xf32>
    %80 = vector.broadcast %79 : vector<48x1xf32> to vector<48x48xf32>
    %81 = arith.subf %77, %80 : vector<48x48xf32>
    %82 = math.exp %81 : vector<48x48xf32>
    %cst_43 = arith.constant dense<0.000000e+00> : vector<48xf32>
    %83 = vector.multi_reduction <add>, %82, %cst_43 [1] : vector<48x48xf32> to vector<48xf32>
    %84 = vector.shape_cast %83 : vector<48xf32> to vector<48x1xf32>
    %85 = tpu.reciprocal %84 {approx = true} : vector<48x1xf32> -> vector<48x1xf32>
    %86 = vector.broadcast %85 : vector<48x1xf32> to vector<48x48xf32>
    %87 = arith.mulf %82, %86 : vector<48x48xf32>
    %88 = arith.truncf %87 : vector<48x48xf32> to vector<48x48xbf16>
    %cst_44 = arith.constant dense<0.000000e+00> : vector<48x8xf32>
    %89 = tpu.matmul %88, %74, %cst_44 {dimension_numbers = #tpu.dot_dimension_numbers<[1], [0], [0], [1], [0, 0, 1, 1], [], []>} : vector<48x48xbf16>, vector<48x8xbf16>, vector<48x8xf32> -> vector<48x8xf32>
    %90 = arith.truncf %89 : vector<48x8xf32> to vector<48x8xbf16>
    %c24_45 = arith.constant 24 : index
    %c0_46 = arith.constant 0 : index
    %91 = vector.load %arg5[%c24_45, %c0_46] : memref<32x32xbf16, #tpu.memory_space<vmem>>, vector<8x32xbf16>
    %cst_47 = arith.constant dense<0.000000e+00> : vector<48x32xf32>
    %92 = tpu.matmul %90, %91, %cst_47 {dimension_numbers = #tpu.dot_dimension_numbers<[1], [0], [0], [1], [0, 0, 1, 1], [], []>} : vector<48x8xbf16>, vector<8x32xbf16>, vector<48x32xf32> -> vector<48x32xf32>
    %93 = arith.addf %71, %92 : vector<48x32xf32>
    %94 = arith.addf %4, %93 : vector<48x32xf32>
    %c0_48 = arith.constant 0 : index
    %c0_49 = arith.constant 0 : index
    %95 = vector.load %arg6[%c0_48, %c0_49] : memref<1x32xf32, #tpu.memory_space<vmem>>, vector<1x32xf32>
    %96 = vector.broadcast %95 : vector<1x32xf32> to vector<48x32xf32>
    %97 = arith.addf %94, %96 : vector<48x32xf32>
    %cst_50 = arith.constant dense<0.000000e+00> : vector<48xf32>
    %98 = vector.multi_reduction <add>, %97, %cst_50 [1] : vector<48x32xf32> to vector<48xf32>
    %99 = vector.shape_cast %98 : vector<48xf32> to vector<48x1xf32>
    %cst_51 = arith.constant 3.200000e+01 : f32
    %100 = vector.broadcast %cst_51 : f32 to vector<48x1xf32>
    %101 = arith.divf %99, %100 : vector<48x1xf32>
    %102 = vector.broadcast %101 : vector<48x1xf32> to vector<48x32xf32>
    %103 = arith.subf %97, %102 : vector<48x32xf32>
    %104 = arith.mulf %103, %103 : vector<48x32xf32>
    %cst_52 = arith.constant dense<0.000000e+00> : vector<48xf32>
    %105 = vector.multi_reduction <add>, %104, %cst_52 [1] : vector<48x32xf32> to vector<48xf32>
    %106 = vector.shape_cast %105 : vector<48xf32> to vector<48x1xf32>
    %cst_53 = arith.constant 3.200000e+01 : f32
    %107 = vector.broadcast %cst_53 : f32 to vector<48x1xf32>
    %108 = arith.divf %106, %107 : vector<48x1xf32>
    %109 = vector.broadcast %101 : vector<48x1xf32> to vector<48x32xf32>
    %110 = arith.subf %97, %109 : vector<48x32xf32>
    %cst_54 = arith.constant 9.99999974E-6 : f32
    %111 = vector.broadcast %cst_54 : f32 to vector<48x1xf32>
    %112 = arith.addf %108, %111 : vector<48x1xf32>
    %113 = math.rsqrt %112 : vector<48x1xf32>
    %114 = vector.broadcast %113 : vector<48x1xf32> to vector<48x32xf32>
    %115 = arith.mulf %110, %114 : vector<48x32xf32>
    %c0_55 = arith.constant 0 : index
    %c0_56 = arith.constant 0 : index
    %116 = vector.load %arg7[%c0_55, %c0_56] : memref<1x32xf32, #tpu.memory_space<vmem>>, vector<1x32xf32>
    %117 = vector.broadcast %116 : vector<1x32xf32> to vector<48x32xf32>
    %118 = arith.mulf %115, %117 : vector<48x32xf32>
    %c0_57 = arith.constant 0 : index
    %c0_58 = arith.constant 0 : index
    %119 = vector.load %arg8[%c0_57, %c0_58] : memref<1x32xf32, #tpu.memory_space<vmem>>, vector<1x32xf32>
    %120 = vector.broadcast %119 : vector<1x32xf32> to vector<48x32xf32>
    %121 = arith.addf %118, %120 : vector<48x32xf32>
    %c0_59 = arith.constant 0 : index
    %c0_60 = arith.constant 0 : index
    %c0_61 = arith.constant 0 : index
    %122 = vector.load %arg9[%c0_59, %c0_60, %c0_61] : memref<1x48x32xf32, #tpu.memory_space<vmem>>, vector<1x48x32xf32>
    %123 = vector.shape_cast %122 : vector<1x48x32xf32> to vector<48x32xf32>
    %124 = vector.shape_cast %121 : vector<48x32xf32> to vector<1x48x32xf32>
    tpu.vector_store %arg9[%c0_59, %c0_60, %c0_61], %124 {strides = array<i32>} : memref<1x48x32xf32, #tpu.memory_space<vmem>>, vector<1x48x32xf32>,
    return
  }
  func.func @transform_0(%arg0: i32, %arg1: i32) -> (i32, i32, i32) {
    %c0_i32 = arith.constant 0 : i32
    %c0_i32_0 = arith.constant 0 : i32
    %c0_i32_1 = arith.constant 0 : i32
    return %arg0, %c0_i32, %c0_i32_0 : i32, i32, i32
  }
  func.func @transform_1(%arg0: i32, %arg1: i32) -> (i32, i32) {
    %c0_i32 = arith.constant 0 : i32
    %c0_i32_0 = arith.constant 0 : i32
    %c0_i32_1 = arith.constant 0 : i32
    return %c0_i32, %c0_i32_0 : i32, i32
  }
  func.func @transform_2(%arg0: i32, %arg1: i32) -> (i32, i32) {
    %c0_i32 = arith.constant 0 : i32
    %c0_i32_0 = arith.constant 0 : i32
    %c0_i32_1 = arith.constant 0 : i32
    return %c0_i32, %c0_i32_0 : i32, i32
  }
  func.func @transform_3(%arg0: i32, %arg1: i32) -> (i32, i32) {
    %c0_i32 = arith.constant 0 : i32
    %c0_i32_0 = arith.constant 0 : i32
    %c0_i32_1 = arith.constant 0 : i32
    return %c0_i32, %c0_i32_0 : i32, i32
  }
  func.func @transform_4(%arg0: i32, %arg1: i32) -> (i32, i32) {
    %c0_i32 = arith.constant 0 : i32
    %c0_i32_0 = arith.constant 0 : i32
    %c0_i32_1 = arith.constant 0 : i32
    return %c0_i32, %c0_i32_0 : i32, i32
  }
  func.func @transform_5(%arg0: i32, %arg1: i32) -> (i32, i32) {
    %c0_i32 = arith.constant 0 : i32
    %c0_i32_0 = arith.constant 0 : i32
    %c0_i32_1 = arith.constant 0 : i32
    return %c0_i32, %c0_i32_0 : i32, i32
  }
  func.func @transform_6(%arg0: i32, %arg1: i32) -> (i32, i32) {
    %c0_i32 = arith.constant 0 : i32
    %c0_i32_0 = arith.constant 0 : i32
    %c0_i32_1 = arith.constant 0 : i32
    return %c0_i32, %c0_i32_0 : i32, i32
  }
  func.func @transform_7(%arg0: i32, %arg1: i32) -> (i32, i32, i32) {
    %c0_i32 = arith.constant 0 : i32
    %c0_i32_0 = arith.constant 0 : i32
    return %arg0, %arg1, %c0_i32 : i32, i32, i32
  }
}

module attributes {stable_mosaic.version = 11 : i64} {
  func.func @_proj_kernel(%arg0: i32, %arg1: i32, %arg2: memref<1x1x16x4xf32, #tpu.memory_space<vmem>>, %arg3: memref<4x32xbf16, #tpu.memory_space<vmem>>, %arg4: memref<1x16x32xf32, #tpu.memory_space<vmem>>, %arg5: memref<1x1x16x32xf32, #tpu.memory_space<vmem>>) attributes {dimension_semantics = [#tpu.dimension_semantics<parallel>, #tpu.dimension_semantics<parallel>], iteration_bounds = array<i64: 3, 2>, scalar_prefetch = 0 : i64, scratch_operands = 0 : i64, tpu.core_type = #tpu.core_type<tc>, window_params = [{transform_indices = @transform_0, window_bounds = array<i64: 1, 1, 16, 4>}, {pipeline_mode = #tpu.pipeline_mode<synchronous>, transform_indices = @transform_1, window_bounds = array<i64: 4, 32>}, {transform_indices = @transform_2, window_bounds = array<i64: 1, 16, 32>}, {transform_indices = @transform_3, window_bounds = array<i64: 1, 1, 16, 32>}]} {
    %c0 = arith.constant 0 : index
    %c0_0 = arith.constant 0 : index
    %c0_1 = arith.constant 0 : index
    %c0_2 = arith.constant 0 : index
    %0 = vector.load %arg2[%c0, %c0_0, %c0_1, %c0_2] : memref<1x1x16x4xf32, #tpu.memory_space<vmem>>, vector<1x1x16x4xf32>
    %1 = vector.shape_cast %0 : vector<1x1x16x4xf32> to vector<16x4xf32>
    %2 = arith.truncf %1 : vector<16x4xf32> to vector<16x4xbf16>
    %c0_3 = arith.constant 0 : index
    %c0_4 = arith.constant 0 : index
    %3 = vector.load %arg3[%c0_3, %c0_4] : memref<4x32xbf16, #tpu.memory_space<vmem>>, vector<4x32xbf16>
    %cst = arith.constant dense<0.000000e+00> : vector<16x32xf32>
    %4 = tpu.matmul %2, %3, %cst {dimension_numbers = #tpu.dot_dimension_numbers<[1], [0], [0], [1], [0, 0, 1, 1], [], []>} : vector<16x4xbf16>, vector<4x32xbf16>, vector<16x32xf32> -> vector<16x32xf32>
    %c0_5 = arith.constant 0 : index
    %c0_6 = arith.constant 0 : index
    %c0_7 = arith.constant 0 : index
    %5 = vector.load %arg4[%c0_5, %c0_6, %c0_7] : memref<1x16x32xf32, #tpu.memory_space<vmem>>, vector<1x16x32xf32>
    %6 = vector.shape_cast %5 : vector<1x16x32xf32> to vector<16x32xf32>
    %7 = arith.addf %4, %6 : vector<16x32xf32>
    %c0_8 = arith.constant 0 : index
    %c0_9 = arith.constant 0 : index
    %c0_10 = arith.constant 0 : index
    %c0_11 = arith.constant 0 : index
    %8 = vector.load %arg5[%c0_8, %c0_9, %c0_10, %c0_11] : memref<1x1x16x32xf32, #tpu.memory_space<vmem>>, vector<1x1x16x32xf32>
    %9 = vector.shape_cast %8 : vector<1x1x16x32xf32> to vector<16x32xf32>
    %10 = vector.shape_cast %7 : vector<16x32xf32> to vector<1x1x16x32xf32>
    tpu.vector_store %arg5[%c0_8, %c0_9, %c0_10, %c0_11], %10 {strides = array<i32>} : memref<1x1x16x32xf32, #tpu.memory_space<vmem>>, vector<1x1x16x32xf32>,
    return
  }
  func.func @transform_0(%arg0: i32, %arg1: i32) -> (i32, i32, i32, i32) {
    %c0_i32 = arith.constant 0 : i32
    %c0_i32_0 = arith.constant 0 : i32
    %c0_i32_1 = arith.constant 0 : i32
    return %arg0, %arg1, %c0_i32, %c0_i32_0 : i32, i32, i32, i32
  }
  func.func @transform_1(%arg0: i32, %arg1: i32) -> (i32, i32) {
    %c0_i32 = arith.constant 0 : i32
    %c0_i32_0 = arith.constant 0 : i32
    %c0_i32_1 = arith.constant 0 : i32
    return %c0_i32, %c0_i32_0 : i32, i32
  }
  func.func @transform_2(%arg0: i32, %arg1: i32) -> (i32, i32, i32) {
    %c0_i32 = arith.constant 0 : i32
    %c0_i32_0 = arith.constant 0 : i32
    %c0_i32_1 = arith.constant 0 : i32
    return %arg0, %c0_i32, %c0_i32_0 : i32, i32, i32
  }
  func.func @transform_3(%arg0: i32, %arg1: i32) -> (i32, i32, i32, i32) {
    %c0_i32 = arith.constant 0 : i32
    %c0_i32_0 = arith.constant 0 : i32
    %c0_i32_1 = arith.constant 0 : i32
    return %arg1, %arg0, %c0_i32, %c0_i32_0 : i32, i32, i32, i32
  }
}

module attributes {stable_mosaic.version = 11 : i64} {
  func.func @_ffn_ln_kernel(%arg0: i32, %arg1: i32, %arg2: memref<1x48x32xf32, #tpu.memory_space<vmem>>, %arg3: memref<32x64xbf16, #tpu.memory_space<vmem>>, %arg4: memref<1x64xf32, #tpu.memory_space<vmem>>, %arg5: memref<64x32xbf16, #tpu.memory_space<vmem>>, %arg6: memref<1x32xf32, #tpu.memory_space<vmem>>, %arg7: memref<1x32xf32, #tpu.memory_space<vmem>>, %arg8: memref<1x32xf32, #tpu.memory_space<vmem>>, %arg9: memref<1x48x32xf32, #tpu.memory_space<vmem>>) attributes {dimension_semantics = [#tpu.dimension_semantics<parallel>, #tpu.dimension_semantics<parallel>], iteration_bounds = array<i64: 2, 1>, scalar_prefetch = 0 : i64, scratch_operands = 0 : i64, tpu.core_type = #tpu.core_type<tc>, window_params = [{transform_indices = @transform_0, window_bounds = array<i64: 1, 48, 32>}, {pipeline_mode = #tpu.pipeline_mode<synchronous>, transform_indices = @transform_1, window_bounds = array<i64: 32, 64>}, {pipeline_mode = #tpu.pipeline_mode<synchronous>, transform_indices = @transform_2, window_bounds = array<i64: 1, 64>}, {pipeline_mode = #tpu.pipeline_mode<synchronous>, transform_indices = @transform_3, window_bounds = array<i64: 64, 32>}, {pipeline_mode = #tpu.pipeline_mode<synchronous>, transform_indices = @transform_4, window_bounds = array<i64: 1, 32>}, {pipeline_mode = #tpu.pipeline_mode<synchronous>, transform_indices = @transform_5, window_bounds = array<i64: 1, 32>}, {pipeline_mode = #tpu.pipeline_mode<synchronous>, transform_indices = @transform_6, window_bounds = array<i64: 1, 32>}, {transform_indices = @transform_7, window_bounds = array<i64: 1, 48, 32>}]} {
    %c0 = arith.constant 0 : index
    %c0_0 = arith.constant 0 : index
    %c0_1 = arith.constant 0 : index
    %0 = vector.load %arg2[%c0, %c0_0, %c0_1] : memref<1x48x32xf32, #tpu.memory_space<vmem>>, vector<1x48x32xf32>
    %1 = vector.shape_cast %0 : vector<1x48x32xf32> to vector<48x32xf32>
    %2 = arith.truncf %1 : vector<48x32xf32> to vector<48x32xbf16>
    %c0_2 = arith.constant 0 : index
    %c0_3 = arith.constant 0 : index
    %3 = vector.load %arg3[%c0_2, %c0_3] : memref<32x64xbf16, #tpu.memory_space<vmem>>, vector<32x64xbf16>
    %cst = arith.constant dense<0.000000e+00> : vector<48x64xf32>
    %4 = tpu.matmul %2, %3, %cst {dimension_numbers = #tpu.dot_dimension_numbers<[1], [0], [0], [1], [0, 0, 1, 1], [], []>} : vector<48x32xbf16>, vector<32x64xbf16>, vector<48x64xf32> -> vector<48x64xf32>
    %c0_4 = arith.constant 0 : index
    %c0_5 = arith.constant 0 : index
    %5 = vector.load %arg4[%c0_4, %c0_5] : memref<1x64xf32, #tpu.memory_space<vmem>>, vector<1x64xf32>
    %6 = vector.broadcast %5 : vector<1x64xf32> to vector<48x64xf32>
    %7 = arith.addf %4, %6 : vector<48x64xf32>
    %cst_6 = arith.constant 0.000000e+00 : f32
    %8 = vector.broadcast %cst_6 : f32 to vector<48x64xf32>
    %9 = arith.maximumf %7, %8 : vector<48x64xf32>
    %10 = arith.truncf %9 : vector<48x64xf32> to vector<48x64xbf16>
    %c0_7 = arith.constant 0 : index
    %c0_8 = arith.constant 0 : index
    %11 = vector.load %arg5[%c0_7, %c0_8] : memref<64x32xbf16, #tpu.memory_space<vmem>>, vector<64x32xbf16>
    %cst_9 = arith.constant dense<0.000000e+00> : vector<48x32xf32>
    %12 = tpu.matmul %10, %11, %cst_9 {dimension_numbers = #tpu.dot_dimension_numbers<[1], [0], [0], [1], [0, 0, 1, 1], [], []>} : vector<48x64xbf16>, vector<64x32xbf16>, vector<48x32xf32> -> vector<48x32xf32>
    %c0_10 = arith.constant 0 : index
    %c0_11 = arith.constant 0 : index
    %13 = vector.load %arg6[%c0_10, %c0_11] : memref<1x32xf32, #tpu.memory_space<vmem>>, vector<1x32xf32>
    %14 = vector.broadcast %13 : vector<1x32xf32> to vector<48x32xf32>
    %15 = arith.addf %12, %14 : vector<48x32xf32>
    %16 = arith.addf %1, %15 : vector<48x32xf32>
    %cst_12 = arith.constant dense<0.000000e+00> : vector<48xf32>
    %17 = vector.multi_reduction <add>, %16, %cst_12 [1] : vector<48x32xf32> to vector<48xf32>
    %18 = vector.shape_cast %17 : vector<48xf32> to vector<48x1xf32>
    %cst_13 = arith.constant 3.200000e+01 : f32
    %19 = vector.broadcast %cst_13 : f32 to vector<48x1xf32>
    %20 = arith.divf %18, %19 : vector<48x1xf32>
    %21 = vector.broadcast %20 : vector<48x1xf32> to vector<48x32xf32>
    %22 = arith.subf %16, %21 : vector<48x32xf32>
    %23 = arith.mulf %22, %22 : vector<48x32xf32>
    %cst_14 = arith.constant dense<0.000000e+00> : vector<48xf32>
    %24 = vector.multi_reduction <add>, %23, %cst_14 [1] : vector<48x32xf32> to vector<48xf32>
    %25 = vector.shape_cast %24 : vector<48xf32> to vector<48x1xf32>
    %cst_15 = arith.constant 3.200000e+01 : f32
    %26 = vector.broadcast %cst_15 : f32 to vector<48x1xf32>
    %27 = arith.divf %25, %26 : vector<48x1xf32>
    %28 = vector.broadcast %20 : vector<48x1xf32> to vector<48x32xf32>
    %29 = arith.subf %16, %28 : vector<48x32xf32>
    %cst_16 = arith.constant 9.99999974E-6 : f32
    %30 = vector.broadcast %cst_16 : f32 to vector<48x1xf32>
    %31 = arith.addf %27, %30 : vector<48x1xf32>
    %32 = math.rsqrt %31 : vector<48x1xf32>
    %33 = vector.broadcast %32 : vector<48x1xf32> to vector<48x32xf32>
    %34 = arith.mulf %29, %33 : vector<48x32xf32>
    %c0_17 = arith.constant 0 : index
    %c0_18 = arith.constant 0 : index
    %35 = vector.load %arg7[%c0_17, %c0_18] : memref<1x32xf32, #tpu.memory_space<vmem>>, vector<1x32xf32>
    %36 = vector.broadcast %35 : vector<1x32xf32> to vector<48x32xf32>
    %37 = arith.mulf %34, %36 : vector<48x32xf32>
    %c0_19 = arith.constant 0 : index
    %c0_20 = arith.constant 0 : index
    %38 = vector.load %arg8[%c0_19, %c0_20] : memref<1x32xf32, #tpu.memory_space<vmem>>, vector<1x32xf32>
    %39 = vector.broadcast %38 : vector<1x32xf32> to vector<48x32xf32>
    %40 = arith.addf %37, %39 : vector<48x32xf32>
    %c0_21 = arith.constant 0 : index
    %c0_22 = arith.constant 0 : index
    %c0_23 = arith.constant 0 : index
    %41 = vector.load %arg9[%c0_21, %c0_22, %c0_23] : memref<1x48x32xf32, #tpu.memory_space<vmem>>, vector<1x48x32xf32>
    %42 = vector.shape_cast %41 : vector<1x48x32xf32> to vector<48x32xf32>
    %43 = vector.shape_cast %40 : vector<48x32xf32> to vector<1x48x32xf32>
    tpu.vector_store %arg9[%c0_21, %c0_22, %c0_23], %43 {strides = array<i32>} : memref<1x48x32xf32, #tpu.memory_space<vmem>>, vector<1x48x32xf32>,
    return
  }
  func.func @transform_0(%arg0: i32, %arg1: i32) -> (i32, i32, i32) {
    %c0_i32 = arith.constant 0 : i32
    %c0_i32_0 = arith.constant 0 : i32
    return %arg0, %arg1, %c0_i32 : i32, i32, i32
  }
  func.func @transform_1(%arg0: i32, %arg1: i32) -> (i32, i32) {
    %c0_i32 = arith.constant 0 : i32
    %c0_i32_0 = arith.constant 0 : i32
    %c0_i32_1 = arith.constant 0 : i32
    return %c0_i32, %c0_i32_0 : i32, i32
  }
  func.func @transform_2(%arg0: i32, %arg1: i32) -> (i32, i32) {
    %c0_i32 = arith.constant 0 : i32
    %c0_i32_0 = arith.constant 0 : i32
    %c0_i32_1 = arith.constant 0 : i32
    return %c0_i32, %c0_i32_0 : i32, i32
  }
  func.func @transform_3(%arg0: i32, %arg1: i32) -> (i32, i32) {
    %c0_i32 = arith.constant 0 : i32
    %c0_i32_0 = arith.constant 0 : i32
    %c0_i32_1 = arith.constant 0 : i32
    return %c0_i32, %c0_i32_0 : i32, i32
  }
  func.func @transform_4(%arg0: i32, %arg1: i32) -> (i32, i32) {
    %c0_i32 = arith.constant 0 : i32
    %c0_i32_0 = arith.constant 0 : i32
    %c0_i32_1 = arith.constant 0 : i32
    return %c0_i32, %c0_i32_0 : i32, i32
  }
  func.func @transform_5(%arg0: i32, %arg1: i32) -> (i32, i32) {
    %c0_i32 = arith.constant 0 : i32
    %c0_i32_0 = arith.constant 0 : i32
    %c0_i32_1 = arith.constant 0 : i32
    return %c0_i32, %c0_i32_0 : i32, i32
  }
  func.func @transform_6(%arg0: i32, %arg1: i32) -> (i32, i32) {
    %c0_i32 = arith.constant 0 : i32
    %c0_i32_0 = arith.constant 0 : i32
    %c0_i32_1 = arith.constant 0 : i32
    return %c0_i32, %c0_i32_0 : i32, i32
  }
  func.func @transform_7(%arg0: i32, %arg1: i32) -> (i32, i32, i32) {
    %c0_i32 = arith.constant 0 : i32
    %c0_i32_0 = arith.constant 0 : i32
    return %arg0, %arg1, %c0_i32 : i32, i32, i32
  }
}

</mosaic_0001>

<llo_original>
// kernel: mccformers_s.5
$region0: #{mccformers_s.5}
  #allocation0 [shape = 'u32[]', space=smem, size = 0x4, offset = 0x4, fixed_abs, tag = 'smem constant byte address 0x4 - core index']
  #allocation1 [shape = 'u32[144,128]{1,0:T(1,128)}', space=vmem, size = 0x12000, scoped, tag = 'internal scratch']
  %s0 = inlined_call_operand.vmem [shape: f32[3,2,16,4], index: 0, kind: input, shape index: {}]
  %s1 = inlined_call_operand.vmem [shape: bf16[4,32], index: 1, kind: input, shape index: {}]
  %s2 = inlined_call_operand.vmem [shape: f32[3,16,32], index: 2, kind: input, shape index: {}]
  %s3 = inlined_call_operand.vmem [shape: f32[2,3,16,32], index: 3, kind: output, shape index: {}]
  %s4 = sld [smem:[#allocation0]]
  $region45: #{mccformers_s.5} parent=0
    _
  %s6 = ssub.s32 1, %s4
  %s7 = scalar_select 0, %s6, %s4
  loop: start=0, step=1, limit=8
  $region2: #{mccformers_s.5} parent=0 // loop_pre_header
    _
  $region3: #{mccformers_s.5} parent=0 // loop_header
    %s9 = sphi 0, %s13
    %p10 = scmp.ge.s32.totalorder %s9, 8
    %s16 = sphi 0, %s28
    %s17 = sphi 0, %s24
    %s18 = sphi 0, %s16
    %s19 = sphi 0, %s17
    %s20 = sphi 0, %s18
    %s21 = sphi 0, %s19
    %s33 = sphi 0, %s35
    %s36 = sphi 0, %s33
    %s37 = sphi 0, %s36
    %s53 = sphi 0, %s37
    %s57 = sphi 0, %s57
    %s59 = sphi 0, %s57
    %s60 = sphi 0, %s59
    %s74 = sphi 0, %s60
    %s80 = sphi 0, %s82
    %s83 = sphi 0, %s80
    %s84 = sphi 0, %s83
    %s100 = sphi 0, %s84
    %s108 = sphi 0, %s110
    %s111 = sphi 0, %s108
    %s112 = sphi 0, %s111
    %s128 = sphi 0, %s112
  $region4: #{mccformers_s.5} parent=0 // loop_header_branch
    %12 = sbr.rel (%p10) target = $region8
  $region5: #{mccformers_s.5} parent=0 // loop_body
    %s14 = ssub.s32 %s9, 1
    %s15 = ssub.s32 %s9, 2
    %s22 = sadd.s32 1, %s17
    %p23 = scmp.ge.s32.totalorder %s22, 2
    %s24 = scalar_select %p23, 0, %s22
    %s25 = sadd.s32 1, %s16
    %s26 = scalar_select %p23, %s25, %s16
    %p27 = scmp.ge.s32.totalorder %s26, 3
    %s28 = scalar_select %p27, 0, %s26
    %s29 = ssub.s32 %s16, %s28
    %s30 = ssub.s32 %s17, %s24
    %s31 = sor.u32 %s29, %s30
    %p32 = scmp.eq.s32.totalorder %s31, 0
    %s34 = sadd.s32 %s33, 1
    %s35 = scalar_select %p32, %s33, %s34
    %p38 = pneg %p32
    %p39 = scmp.eq.s32.totalorder %s9, 5
    %p40 = por %p38, %p39
    %p41 = scmp.ne.s32.totalorder %s33, %s36
    %p42 = scmp.eq.s32.totalorder %s9, 0
    %p43 = por %p41, %p42
    %p44 = scmp.ne.s32.totalorder %s33, %s36
    %p45 = scmp.eq.s32.totalorder %s14, 5
    %p46 = por %p44, %p45
    %p47 = scmp.ne.s32.totalorder %s36, %s37
    %p48 = scmp.eq.s32.totalorder %s14, 0
    %p49 = por %p47, %p48
    %p50 = scmp.ne.s32.totalorder %s36, %s37
    %p51 = scmp.eq.s32.totalorder %s15, 5
    %p52 = por %p50, %p51
    %p54 = scmp.ne.s32.totalorder %s37, %s53
    %p55 = scmp.eq.s32.totalorder %s15, 0
    %p56 = por %p54, %p55
    %s58 = sadd.s32 %s57, 1
    %p61 = scmp.eq.s32.totalorder %s9, 5
    %p62 = scmp.ne.s32.totalorder %s57, %s59
    %p63 = scmp.eq.s32.totalorder %s9, 0
    %p64 = por %p62, %p63
    %p65 = scmp.ne.s32.totalorder %s57, %s59
    %p66 = scmp.eq.s32.totalorder %s14, 5
    %p67 = por %p65, %p66
    %p68 = scmp.ne.s32.totalorder %s59, %s60
    %p69 = scmp.eq.s32.totalorder %s14, 0
    %p70 = por %p68, %p69
    %p71 = scmp.ne.s32.totalorder %s59, %s60
    %p72 = scmp.eq.s32.totalorder %s15, 5
    %p73 = por %p71, %p72
    %p75 = scmp.ne.s32.totalorder %s60, %s74
    %p76 = scmp.eq.s32.totalorder %s15, 0
    %p77 = por %p75, %p76
    %s78 = ssub.s32 %s16, %s28
    %p79 = scmp.eq.s32.totalorder %s78, 0
    %s81 = sadd.s32 %s80, 1
    %s82 = scalar_select %p79, %s80, %s81
    %p85 = pneg %p79
    %p86 = scmp.eq.s32.totalorder %s9, 5
    %p87 = por %p85, %p86
    %p88 = scmp.ne.s32.totalorder %s80, %s83
    %p89 = scmp.eq.s32.totalorder %s9, 0
    %p90 = por %p88, %p89
    %p91 = scmp.ne.s32.totalorder %s80, %s83
    %p92 = scmp.eq.s32.totalorder %s14, 5
    %p93 = por %p91, %p92
    %p94 = scmp.ne.s32.totalorder %s83, %s84
    %p95 = scmp.eq.s32.totalorder %s14, 0
    %p96 = por %p94, %p95
    %p97 = scmp.ne.s32.totalorder %s83, %s84
    %p98 = scmp.eq.s32.totalorder %s15, 5
    %p99 = por %p97, %p98
    %p101 = scmp.ne.s32.totalorder %s84, %s100
    %p102 = scmp.eq.s32.totalorder %s15, 0
    %p103 = por %p101, %p102
    %s104 = ssub.s32 %s17, %s24
    %s105 = ssub.s32 %s16, %s28
    %s106 = sor.u32 %s104, %s105
    %p107 = scmp.eq.s32.totalorder %s106, 0
    %s109 = sadd.s32 %s108, 1
    %s110 = scalar_select %p107, %s108, %s109
    %p113 = pneg %p107
    %p114 = scmp.eq.s32.totalorder %s9, 5
    %p115 = por %p113, %p114
    %p116 = scmp.ne.s32.totalorder %s108, %s111
    %p117 = scmp.eq.s32.totalorder %s9, 0
    %p118 = por %p116, %p117
    %p119 = scmp.ne.s32.totalorder %s108, %s111
    %p120 = scmp.eq.s32.totalorder %s14, 5
    %p121 = por %p119, %p120
    %p122 = scmp.ne.s32.totalorder %s111, %s112
    %p123 = scmp.eq.s32.totalorder %s14, 0
    %p124 = por %p122, %p123
    %p125 = scmp.ne.s32.totalorder %s111, %s112
    %p126 = scmp.eq.s32.totalorder %s15, 5
    %p127 = por %p125, %p126
    %p129 = scmp.ne.s32.totalorder %s112, %s128
    %p130 = scmp.eq.s32.totalorder %s15, 0
    %p131 = por %p129, %p130
    %p132 = scmp.le.s32.totalorder 1, %s9
    %p133 = scmp.lt.s32.totalorder %s9, 7
    %p134 = pnand %p132, %p133
    %p135 = pneg %p134
    // Predicated region
    $region9: #{mccformers_s.5} parent=5 // pred_check
      _
    $region10: #{mccformers_s.5} parent=5 // pred_check_branch
      %137 = sbr.rel (%p134) target = $region12
    $region11: #{mccformers_s.5} parent=5 // pred_region
      %s138 = ssub.s32 %s9, 1
      // Predicated region
      $region13: #{mccformers_s.5} parent=11 // pred_check
        %p139 = pneg %p70
      $region14: #{mccformers_s.5} parent=11 // pred_check_branch
        %141 = sbr.rel (%p139) target = $region16
      $region15: #{mccformers_s.5} parent=11 // pred_region
        _
      $region16: #{mccformers_s.5} parent=11 // pred_fallthru
        _
    $region12: #{mccformers_s.5} parent=5 // pred_fallthru
      _
    %p142 = scmp.lt.s32.totalorder %s9, 6
    // Predicated region
    $region17: #{mccformers_s.5} parent=5 // pred_check
      %p143 = pneg %p142
    $region18: #{mccformers_s.5} parent=5 // pred_check_branch
      %145 = sbr.rel (%p143) target = $region20
    $region19: #{mccformers_s.5} parent=5 // pred_region
      // Predicated region
      $region21: #{mccformers_s.5} parent=19 // pred_check
        %p146 = pneg %p43
      $region22: #{mccformers_s.5} parent=19 // pred_check_branch
        %148 = sbr.rel (%p146) target = $region24
      $region23: #{mccformers_s.5} parent=19 // pred_region
        %p149 = scmp.lt.s32.totalorder %s16, 2
        %s150 = scalar_select %p149, %s16, 2
        %p151 = scmp.lt.s32.totalorder %s17, 1
        %s152 = scalar_select %p151, %s17, 1
        %s153 = smul.addr %s152, 2
        %s154 = smul.addr %s150, 4
        %s155 = sadd.s32 %s153, %s154
        %s156 = smul.addr %s155, 8
        %s157 = scalar_lea.vmem %s0, %s156
      $region24: #{mccformers_s.5} parent=19 // pred_fallthru
        _
      // Predicated region
      $region25: #{mccformers_s.5} parent=19 // pred_check
        %p158 = pneg %p90
      $region26: #{mccformers_s.5} parent=19 // pred_check_branch
        %160 = sbr.rel (%p158) target = $region28
      $region27: #{mccformers_s.5} parent=19 // pred_region
        %p161 = scmp.lt.s32.totalorder %s16, 2
        %s162 = scalar_select %p161, %s16, 2
        %s163 = smul.addr %s162, 2
        %s164 = smul.addr %s163, 8
        %s165 = scalar_lea.vmem %s2, %s164
      $region28: #{mccformers_s.5} parent=19 // pred_fallthru
        _
    $region20: #{mccformers_s.5} parent=5 // pred_fallthru
      _
    %p166 = scmp.le.s32.totalorder 1, %s9
    %p167 = scmp.lt.s32.totalorder %s9, 7
    %p168 = pnand %p166, %p167
    %p169 = pneg %p168
    // Predicated region
    $region29: #{mccformers_s.5} parent=5 // pred_check
      _
    $region30: #{mccformers_s.5} parent=5 // pred_check_branch
      %171 = sbr.rel (%p168) target = $region32
    $region31: #{mccformers_s.5} parent=5 // pred_region
      %s172 = ssub.s32 %s9, 1
      %p173 = scmp.lt.s32.totalorder %s18, 2
      %s174 = scalar_select %p173, %s18, 2
      %p175 = scmp.lt.s32.totalorder %s19, 1
      %s176 = scalar_select %p175, %s19, 1
      %s177 = smul.addr %s176, 2
      %s178 = smul.addr %s174, 4
      %s179 = sadd.s32 %s177, %s178
      %s180 = smul.addr %s179, 8
      %s181 = scalar_lea.vmem %s0, %s180
      %p182 = pneg %p49
      %p183 = pneg %p46
      %p184 = pneg %p70
      %p185 = pneg %p67
      %p186 = scmp.lt.s32.totalorder %s18, 2
      %s187 = scalar_select %p186, %s18, 2
      %s188 = smul.addr %s187, 2
      %s189 = smul.addr %s188, 8
      %s190 = scalar_lea.vmem %s2, %s189
      %p191 = pneg %p96
      %p192 = pneg %p93
      %p193 = pneg %p124
      %p194 = pneg %p121
      %p195 = scmp.lt.s32.totalorder %s19, 1
      %s196 = scalar_select %p195, %s19, 1
      %p197 = scmp.lt.s32.totalorder %s18, 2
      %s198 = scalar_select %p197, %s18, 2
      %s199 = smul.addr %s198, 2
      %s200 = smul.addr %s196, 6
      %s201 = sadd.s32 %s199, %s200
      %s202 = smul.addr %s201, 8
      %s203 = scalar_lea.vmem %s3, %s202
      %p204 = scmp.lt.s32.totalorder %s18, 2
      %s205 = scalar_select %p204, %s18, 2
      %p206 = scmp.lt.s32.totalorder %s19, 1
      %s207 = scalar_select %p206, %s19, 1
      %s208 = smul.addr %s207, 2
      %s209 = smul.addr %s205, 4
      %s210 = sadd.s32 %s208, %s209
      %s211 = smul.addr %s210, 8
      %s212 = scalar_lea.vmem %s0, %s211
      %p213 = scmp.lt.s32.totalorder %s18, 2
      %s214 = scalar_select %p213, %s18, 2
      %s215 = smul.addr %s214, 2
      %s216 = smul.addr %s215, 8
      %s217 = scalar_lea.vmem %s2, %s216
      %p218 = scmp.lt.s32.totalorder %s19, 1
      %s219 = scalar_select %p218, %s19, 1
      %p220 = scmp.lt.s32.totalorder %s18, 2
      %s221 = scalar_select %p220, %s18, 2
      %s222 = smul.addr %s221, 2
      %s223 = smul.addr %s219, 6
      %s224 = sadd.s32 %s222, %s223
      %s225 = smul.addr %s224, 8
      %s226 = scalar_lea.vmem %s3, %s225
      %v228 = vld [vmem:[%s212] sm:$0xff]
      %v229 = vld [vmem:[%s212 + $0x8] sm:$0xff]
      %v230 = vpack.c.bf16 %v229, %v228
      %v231 = vld [vmem:[%s1] sm:$0x3]
      %v232 = vld [vmem:[%s217] sm:$0xff]
      %v233 = vld [vmem:[%s217 + $0x8] sm:$0xff]
      %vm234 = vcmask 31744
      %v236 = vsel %vm234, %v230, 0
      %vm238 = vcmask 1041408
      %v240 = vsel %vm238, %v231, 0
      %242 = vmatprep.subr.bf16.mxu0 0
      %243 = vmatpush1.bf16.msra.mxu0 %v240
      %244 = vmatprep.subr.bf16.mxu0 0
      %245 = vmatpush1.bf16.msra.mxu0 0
      %246 = vmatprep.subr.bf16.mxu0 0
      %247 = vmatpush1.bf16.msra.mxu0 0
      %248 = vmatprep.subr.bf16.mxu0 0
      %249 = vmatpush1.bf16.msra.mxu0 0
      %250 = vmatprep.subr.bf16.mxu0 0
      %251 = vmatpush1.bf16.msra.mxu0 0
      %252 = vmatprep.subr.bf16.mxu0 0
      %253 = vmatpush1.bf16.msra.mxu0 0
      %254 = vmatprep.subr.bf16.mxu0 0
      %255 = vmatpush1.bf16.msra.mxu0 0
      %256 = vmatprep.subr.bf16.mxu0 0
      %257 = vmatpush1.bf16.msra.mxu0 0
      %258 = vmatprep.subr.bf16.mxu0 0
      %259 = vmatpush1.bf16.msra.mxu0 0
      %260 = vmatprep.subr.bf16.mxu0 0
      %261 = vmatpush1.bf16.msra.mxu0 0
      %262 = vmatprep.subr.bf16.mxu0 0
      %263 = vmatpush1.bf16.msra.mxu0 0
      %264 = vmatprep.subr.bf16.mxu0 0
      %265 = vmatpush1.bf16.msra.mxu0 0
      %266 = vmatprep.subr.bf16.mxu0 0
      %267 = vmatpush1.bf16.msra.mxu0 0
      %268 = vmatprep.subr.bf16.mxu0 0
      %269 = vmatpush1.bf16.msra.mxu0 0
      %270 = vmatprep.subr.bf16.mxu0 0
      %271 = vmatpush1.bf16.msra.mxu0 0
      %272 = vmatprep.subr.bf16.mxu0 0
      %273 = vmatpush1.bf16.msra.mxu0 0
      %274 = vmatprep.mubr.bf16.mxu0 0
      %275 = vmatmul.mubr.bf16.gmra.mrb[0].mxu0 %v236
      %v276 = vpop.f32.mrb[0].mxu0
      %v277 = vadd.f32 %v232, %v276
      %v278 = vpop.f32.mrb[0].mxu0
      %v279 = vpop.f32.mrb[0].mxu0
      %v280 = vadd.f32 %v233, %v279
      %v281 = vpop.f32.mrb[0].mxu0
      %282 = vdwg.mxu0
      %vm283 = vcmask 261120
      %284 = vst.msk [vmem:[%s226] sm:$0xff] %vm283, %v277
      %285 = vst.msk [vmem:[%s226 + $0x8] sm:$0xff] %vm283, %v280
      %p286 = scmp.lt.s32.totalorder %s19, 1
      %s287 = scalar_select %p286, %s19, 1
      %p288 = scmp.lt.s32.totalorder %s18, 2
      %s289 = scalar_select %p288, %s18, 2
      %s290 = smul.addr %s289, 2
      %s291 = smul.addr %s287, 6
      %s292 = sadd.s32 %s290, %s291
      %s293 = smul.addr %s292, 8
      %s294 = scalar_lea.vmem %s3, %s293
      // Predicated region
      $region33: #{mccformers_s.5} parent=31 // pred_check
        %p295 = pneg %p121
      $region34: #{mccformers_s.5} parent=31 // pred_check_branch
        %297 = sbr.rel (%p295) target = $region36
      $region35: #{mccformers_s.5} parent=31 // pred_region
        _
      $region36: #{mccformers_s.5} parent=31 // pred_fallthru
        _
    $region32: #{mccformers_s.5} parent=5 // pred_fallthru
      _
    %p298 = scmp.le.s32.totalorder 2, %s9
    // Predicated region
    $region37: #{mccformers_s.5} parent=5 // pred_check
      %p299 = pneg %p298
    $region38: #{mccformers_s.5} parent=5 // pred_check_branch
      %301 = sbr.rel (%p299) target = $region40
    $region39: #{mccformers_s.5} parent=5 // pred_region
      %s302 = ssub.s32 %s9, 2
      // Predicated region
      $region41: #{mccformers_s.5} parent=39 // pred_check
        %p303 = pneg %p127
      $region42: #{mccformers_s.5} parent=39 // pred_check_branch
        %305 = sbr.rel (%p303) target = $region44
      $region43: #{mccformers_s.5} parent=39 // pred_region
        %p306 = scmp.lt.s32.totalorder %s21, 1
        %s307 = scalar_select %p306, %s21, 1
        %p308 = scmp.lt.s32.totalorder %s20, 2
        %s309 = scalar_select %p308, %s20, 2
        %s310 = smul.addr %s309, 2
        %s311 = smul.addr %s307, 6
        %s312 = sadd.s32 %s310, %s311
        %s313 = smul.addr %s312, 8
        %s314 = scalar_lea.vmem %s3, %s313
      $region44: #{mccformers_s.5} parent=39 // pred_fallthru
        _
    $region40: #{mccformers_s.5} parent=5 // pred_fallthru
      _
  $region6: #{mccformers_s.5} parent=0 // loop_footer
    %s13 = sadd.s32 1, %s9
  $region7: #{mccformers_s.5} parent=0 // loop_footer_branch
    %8 = sbr.rel target = $region3
  $region8: #{mccformers_s.5} parent=0 // loop_exit
    _

// kernel: mccformers_s.7
$region0: #{mccformers_s.7}
  #allocation0 [shape = 'u32[]', space=smem, size = 0x4, offset = 0x4, fixed_abs, tag = 'smem constant byte address 0x4 - core index']
  #allocation1 [shape = 'u32[144,128]{1,0:T(1,128)}', space=vmem, size = 0x12000, scoped, tag = 'internal scratch']
  %s0 = inlined_call_operand.vmem [shape: f32[2,48,32], index: 0, kind: input, shape index: {}]
  %s1 = inlined_call_operand.vmem [shape: bf16[32,64], index: 1, kind: input, shape index: {}]
  %s2 = inlined_call_operand.vmem [shape: f32[1,64], index: 2, kind: input, shape index: {}]
  %s3 = inlined_call_operand.vmem [shape: bf16[64,32], index: 3, kind: input, shape index: {}]
  %s4 = inlined_call_operand.vmem [shape: f32[1,32], index: 4, kind: input, shape index: {}]
  %s5 = inlined_call_operand.vmem [shape: f32[1,32], index: 5, kind: input, shape index: {}]
  %s6 = inlined_call_operand.vmem [shape: f32[1,32], index: 6, kind: input, shape index: {}]
  %s7 = inlined_call_operand.vmem [shape: f32[2,48,32], index: 7, kind: output, shape index: {}]
  %s8 = sld [smem:[#allocation0]]
  $region61: #{mccformers_s.7} parent=0
    _
  %s10 = ssub.s32 1, %s8
  %s11 = scalar_select 0, %s10, %s8
  loop: start=0, step=1, limit=4
  $region2: #{mccformers_s.7} parent=0 // loop_pre_header
    _
  $region3: #{mccformers_s.7} parent=0 // loop_header
    %s13 = sphi 0, %s17
    %p14 = scmp.ge.s32.totalorder %s13, 4
    %s20 = sphi 0, %s32
    %s21 = sphi 0, %s28
    %s22 = sphi 0, %s20
    %s23 = sphi 0, %s21
    %s24 = sphi 0, %s22
    %s25 = sphi 0, %s23
    %s37 = sphi 0, %s39
    %s40 = sphi 0, %s37
    %s41 = sphi 0, %s40
    %s57 = sphi 0, %s41
    %s61 = sphi 0, %s61
    %s63 = sphi 0, %s61
    %s64 = sphi 0, %s63
    %s78 = sphi 0, %s64
    %s82 = sphi 0, %s82
    %s84 = sphi 0, %s82
    %s85 = sphi 0, %s84
    %s99 = sphi 0, %s85
    %s103 = sphi 0, %s103
    %s105 = sphi 0, %s103
    %s106 = sphi 0, %s105
    %s120 = sphi 0, %s106
    %s124 = sphi 0, %s124
    %s126 = sphi 0, %s124
    %s127 = sphi 0, %s126
    %s141 = sphi 0, %s127
    %s145 = sphi 0, %s145
    %s147 = sphi 0, %s145
    %s148 = sphi 0, %s147
    %s162 = sphi 0, %s148
    %s166 = sphi 0, %s166
    %s168 = sphi 0, %s166
    %s169 = sphi 0, %s168
    %s183 = sphi 0, %s169
    %s191 = sphi 0, %s193
    %s194 = sphi 0, %s191
    %s195 = sphi 0, %s194
    %s211 = sphi 0, %s195
  $region4: #{mccformers_s.7} parent=0 // loop_header_branch
    %16 = sbr.rel (%p14) target = $region8
  $region5: #{mccformers_s.7} parent=0 // loop_body
    %s18 = ssub.s32 %s13, 1
    %s19 = ssub.s32 %s13, 2
    %s26 = sadd.s32 1, %s21
    %p27 = scmp.ge.s32.totalorder %s26, 1
    %s28 = scalar_select %p27, 0, %s26
    %s29 = sadd.s32 1, %s20
    %s30 = scalar_select %p27, %s29, %s20
    %p31 = scmp.ge.s32.totalorder %s30, 2
    %s32 = scalar_select %p31, 0, %s30
    %s33 = ssub.s32 %s20, %s32
    %s34 = ssub.s32 %s21, %s28
    %s35 = sor.u32 %s33, %s34
    %p36 = scmp.eq.s32.totalorder %s35, 0
    %s38 = sadd.s32 %s37, 1
    %s39 = scalar_select %p36, %s37, %s38
    %p42 = pneg %p36
    %p43 = scmp.eq.s32.totalorder %s13, 1
    %p44 = por %p42, %p43
    %p45 = scmp.ne.s32.totalorder %s37, %s40
    %p46 = scmp.eq.s32.totalorder %s13, 0
    %p47 = por %p45, %p46
    %p48 = scmp.ne.s32.totalorder %s37, %s40
    %p49 = scmp.eq.s32.totalorder %s18, 1
    %p50 = por %p48, %p49
    %p51 = scmp.ne.s32.totalorder %s40, %s41
    %p52 = scmp.eq.s32.totalorder %s18, 0
    %p53 = por %p51, %p52
    %p54 = scmp.ne.s32.totalorder %s40, %s41
    %p55 = scmp.eq.s32.totalorder %s19, 1
    %p56 = por %p54, %p55
    %p58 = scmp.ne.s32.totalorder %s41, %s57
    %p59 = scmp.eq.s32.totalorder %s19, 0
    %p60 = por %p58, %p59
    %s62 = sadd.s32 %s61, 1
    %p65 = scmp.eq.s32.totalorder %s13, 1
    %p66 = scmp.ne.s32.totalorder %s61, %s63
    %p67 = scmp.eq.s32.totalorder %s13, 0
    %p68 = por %p66, %p67
    %p69 = scmp.ne.s32.totalorder %s61, %s63
    %p70 = scmp.eq.s32.totalorder %s18, 1
    %p71 = por %p69, %p70
    %p72 = scmp.ne.s32.totalorder %s63, %s64
    %p73 = scmp.eq.s32.totalorder %s18, 0
    %p74 = por %p72, %p73
    %p75 = scmp.ne.s32.totalorder %s63, %s64
    %p76 = scmp.eq.s32.totalorder %s19, 1
    %p77 = por %p75, %p76
    %p79 = scmp.ne.s32.totalorder %s64, %s78
    %p80 = scmp.eq.s32.totalorder %s19, 0
    %p81 = por %p79, %p80
    %s83 = sadd.s32 %s82, 1
    %p86 = scmp.eq.s32.totalorder %s13, 1
    %p87 = scmp.ne.s32.totalorder %s82, %s84
    %p88 = scmp.eq.s32.totalorder %s13, 0
    %p89 = por %p87, %p88
    %p90 = scmp.ne.s32.totalorder %s82, %s84
    %p91 = scmp.eq.s32.totalorder %s18, 1
    %p92 = por %p90, %p91
    %p93 = scmp.ne.s32.totalorder %s84, %s85
    %p94 = scmp.eq.s32.totalorder %s18, 0
    %p95 = por %p93, %p94
    %p96 = scmp.ne.s32.totalorder %s84, %s85
    %p97 = scmp.eq.s32.totalorder %s19, 1
    %p98 = por %p96, %p97
    %p100 = scmp.ne.s32.totalorder %s85, %s99
    %p101 = scmp.eq.s32.totalorder %s19, 0
    %p102 = por %p100, %p101
    %s104 = sadd.s32 %s103, 1
    %p107 = scmp.eq.s32.totalorder %s13, 1
    %p108 = scmp.ne.s32.totalorder %s103, %s105
    %p109 = scmp.eq.s32.totalorder %s13, 0
    %p110 = por %p108, %p109
    %p111 = scmp.ne.s32.totalorder %s103, %s105
    %p112 = scmp.eq.s32.totalorder %s18, 1
    %p113 = por %p111, %p112
    %p114 = scmp.ne.s32.totalorder %s105, %s106
    %p115 = scmp.eq.s32.totalorder %s18, 0
    %p116 = por %p114, %p115
    %p117 = scmp.ne.s32.totalorder %s105, %s106
    %p118 = scmp.eq.s32.totalorder %s19, 1
    %p119 = por %p117, %p118
    %p121 = scmp.ne.s32.totalorder %s106, %s120
    %p122 = scmp.eq.s32.totalorder %s19, 0
    %p123 = por %p121, %p122
    %s125 = sadd.s32 %s124, 1
    %p128 = scmp.eq.s32.totalorder %s13, 1
    %p129 = scmp.ne.s32.totalorder %s124, %s126
    %p130 = scmp.eq.s32.totalorder %s13, 0
    %p131 = por %p129, %p130
    %p132 = scmp.ne.s32.totalorder %s124, %s126
    %p133 = scmp.eq.s32.totalorder %s18, 1
    %p134 = por %p132, %p133
    %p135 = scmp.ne.s32.totalorder %s126, %s127
    %p136 = scmp.eq.s32.totalorder %s18, 0
    %p137 = por %p135, %p136
    %p138 = scmp.ne.s32.totalorder %s126, %s127
    %p139 = scmp.eq.s32.totalorder %s19, 1
    %p140 = por %p138, %p139
    %p142 = scmp.ne.s32.totalorder %s127, %s141
    %p143 = scmp.eq.s32.totalorder %s19, 0
    %p144 = por %p142, %p143
    %s146 = sadd.s32 %s145, 1
    %p149 = scmp.eq.s32.totalorder %s13, 1
    %p150 = scmp.ne.s32.totalorder %s145, %s147
    %p151 = scmp.eq.s32.totalorder %s13, 0
    %p152 = por %p150, %p151
    %p153 = scmp.ne.s32.totalorder %s145, %s147
    %p154 = scmp.eq.s32.totalorder %s18, 1
    %p155 = por %p153, %p154
    %p156 = scmp.ne.s32.totalorder %s147, %s148
    %p157 = scmp.eq.s32.totalorder %s18, 0
    %p158 = por %p156, %p157
    %p159 = scmp.ne.s32.totalorder %s147, %s148
    %p160 = scmp.eq.s32.totalorder %s19, 1
    %p161 = por %p159, %p160
    %p163 = scmp.ne.s32.totalorder %s148, %s162
    %p164 = scmp.eq.s32.totalorder %s19, 0
    %p165 = por %p163, %p164
    %s167 = sadd.s32 %s166, 1
    %p170 = scmp.eq.s32.totalorder %s13, 1
    %p171 = scmp.ne.s32.totalorder %s166, %s168
    %p172 = scmp.eq.s32.totalorder %s13, 0
    %p173 = por %p171, %p172
    %p174 = scmp.ne.s32.totalorder %s166, %s168
    %p175 = scmp.eq.s32.totalorder %s18, 1
    %p176 = por %p174, %p175
    %p177 = scmp.ne.s32.totalorder %s168, %s169
    %p178 = scmp.eq.s32.totalorder %s18, 0
    %p179 = por %p177, %p178
    %p180 = scmp.ne.s32.totalorder %s168, %s169
    %p181 = scmp.eq.s32.totalorder %s19, 1
    %p182 = por %p180, %p181
    %p184 = scmp.ne.s32.totalorder %s169, %s183
    %p185 = scmp.eq.s32.totalorder %s19, 0
    %p186 = por %p184, %p185
    %s187 = ssub.s32 %s20, %s32
    %s188 = ssub.s32 %s21, %s28
    %s189 = sor.u32 %s187, %s188
    %p190 = scmp.eq.s32.totalorder %s189, 0
    %s192 = sadd.s32 %s191, 1
    %s193 = scalar_select %p190, %s191, %s192
    %p196 = pneg %p190
    %p197 = scmp.eq.s32.totalorder %s13, 1
    %p198 = por %p196, %p197
    %p199 = scmp.ne.s32.totalorder %s191, %s194
    %p200 = scmp.eq.s32.totalorder %s13, 0
    %p201 = por %p199, %p200
    %p202 = scmp.ne.s32.totalorder %s191, %s194
    %p203 = scmp.eq.s32.totalorder %s18, 1
    %p204 = por %p202, %p203
    %p205 = scmp.ne.s32.totalorder %s194, %s195
    %p206 = scmp.eq.s32.totalorder %s18, 0
    %p207 = por %p205, %p206
    %p208 = scmp.ne.s32.totalorder %s194, %s195
    %p209 = scmp.eq.s32.totalorder %s19, 1
    %p210 = por %p208, %p209
    %p212 = scmp.ne.s32.totalorder %s195, %s211
    %p213 = scmp.eq.s32.totalorder %s19, 0
    %p214 = por %p212, %p213
    %p215 = scmp.le.s32.totalorder 1, %s13
    %p216 = scmp.lt.s32.totalorder %s13, 3
    %p217 = pnand %p215, %p216
    %p218 = pneg %p217
    // Predicated region
    $region9: #{mccformers_s.7} parent=5 // pred_check
      _
    $region10: #{mccformers_s.7} parent=5 // pred_check_branch
      %220 = sbr.rel (%p217) target = $region12
    $region11: #{mccformers_s.7} parent=5 // pred_region
      %s221 = ssub.s32 %s13, 1
      // Predicated region
      $region13: #{mccformers_s.7} parent=11 // pred_check
        %p222 = pneg %p74
      $region14: #{mccformers_s.7} parent=11 // pred_check_branch
        %224 = sbr.rel (%p222) target = $region16
      $region15: #{mccformers_s.7} parent=11 // pred_region
        _
      $region16: #{mccformers_s.7} parent=11 // pred_fallthru
        _
      // Predicated region
      $region17: #{mccformers_s.7} parent=11 // pred_check
        %p225 = pneg %p95
      $region18: #{mccformers_s.7} parent=11 // pred_check_branch
        %227 = sbr.rel (%p225) target = $region20
      $region19: #{mccformers_s.7} parent=11 // pred_region
        _
      $region20: #{mccformers_s.7} parent=11 // pred_fallthru
        _
      // Predicated region
      $region21: #{mccformers_s.7} parent=11 // pred_check
        %p228 = pneg %p116
      $region22: #{mccformers_s.7} parent=11 // pred_check_branch
        %230 = sbr.rel (%p228) target = $region24
      $region23: #{mccformers_s.7} parent=11 // pred_region
        _
      $region24: #{mccformers_s.7} parent=11 // pred_fallthru
        _
      // Predicated region
      $region25: #{mccformers_s.7} parent=11 // pred_check
        %p231 = pneg %p137
      $region26: #{mccformers_s.7} parent=11 // pred_check_branch
        %233 = sbr.rel (%p231) target = $region28
      $region27: #{mccformers_s.7} parent=11 // pred_region
        _
      $region28: #{mccformers_s.7} parent=11 // pred_fallthru
        _
      // Predicated region
      $region29: #{mccformers_s.7} parent=11 // pred_check
        %p234 = pneg %p158
      $region30: #{mccformers_s.7} parent=11 // pred_check_branch
        %236 = sbr.rel (%p234) target = $region32
      $region31: #{mccformers_s.7} parent=11 // pred_region
        _
      $region32: #{mccformers_s.7} parent=11 // pred_fallthru
        _
      // Predicated region
      $region33: #{mccformers_s.7} parent=11 // pred_check
        %p237 = pneg %p179
      $region34: #{mccformers_s.7} parent=11 // pred_check_branch
        %239 = sbr.rel (%p237) target = $region36
      $region35: #{mccformers_s.7} parent=11 // pred_region
        _
      $region36: #{mccformers_s.7} parent=11 // pred_fallthru
        _
    $region12: #{mccformers_s.7} parent=5 // pred_fallthru
      _
    %p240 = scmp.lt.s32.totalorder %s13, 2
    // Predicated region
    $region37: #{mccformers_s.7} parent=5 // pred_check
      %p241 = pneg %p240
    $region38: #{mccformers_s.7} parent=5 // pred_check_branch
      %243 = sbr.rel (%p241) target = $region40
    $region39: #{mccformers_s.7} parent=5 // pred_region
      // Predicated region
      $region41: #{mccformers_s.7} parent=39 // pred_check
        %p244 = pneg %p47
      $region42: #{mccformers_s.7} parent=39 // pred_check_branch
        %246 = sbr.rel (%p244) target = $region44
      $region43: #{mccformers_s.7} parent=39 // pred_region
        %s247 = smul.u32 6, %s21
        %p248 = scmp.lt.s32.totalorder %s20, 1
        %s249 = scalar_select %p248, %s20, 1
        %p250 = scmp.lt.s32.totalorder %s247, 5
        %s251 = scalar_select %p250, %s247, 5
        %s252 = smul.addr %s249, 6
        %s253 = sadd.s32 %s251, %s252
        %s254 = smul.addr %s253, 8
        %s255 = scalar_lea.vmem %s0, %s254
        %s256 = smul.u32 6, %s21
      $region44: #{mccformers_s.7} parent=39 // pred_fallthru
        _
    $region40: #{mccformers_s.7} parent=5 // pred_fallthru
      _
    %p257 = scmp.le.s32.totalorder 1, %s13
    %p258 = scmp.lt.s32.totalorder %s13, 3
    %p259 = pnand %p257, %p258
    %p260 = pneg %p259
    // Predicated region
    $region45: #{mccformers_s.7} parent=5 // pred_check
      _
    $region46: #{mccformers_s.7} parent=5 // pred_check_branch
      %262 = sbr.rel (%p259) target = $region48
    $region47: #{mccformers_s.7} parent=5 // pred_region
      %s263 = ssub.s32 %s13, 1
      %s264 = smul.u32 6, %s23
      %p265 = scmp.lt.s32.totalorder %s22, 1
      %s266 = scalar_select %p265, %s22, 1
      %p267 = scmp.lt.s32.totalorder %s264, 5
      %s268 = scalar_select %p267, %s264, 5
      %s269 = smul.addr %s266, 6
      %s270 = sadd.s32 %s268, %s269
      %s271 = smul.addr %s270, 8
      %s272 = scalar_lea.vmem %s0, %s271
      %p273 = pneg %p53
      %p274 = pneg %p50
      %p275 = pneg %p74
      %p276 = pneg %p71
      %p277 = pneg %p95
      %p278 = pneg %p92
      %p279 = pneg %p116
      %p280 = pneg %p113
      %p281 = pneg %p137
      %p282 = pneg %p134
      %p283 = pneg %p158
      %p284 = pneg %p155
      %p285 = pneg %p179
      %p286 = pneg %p176
      %p287 = pneg %p207
      %p288 = pneg %p204
      %s289 = smul.u32 6, %s23
      %p290 = scmp.lt.s32.totalorder %s22, 1
      %s291 = scalar_select %p290, %s22, 1
      %p292 = scmp.lt.s32.totalorder %s289, 5
      %s293 = scalar_select %p292, %s289, 5
      %s294 = smul.addr %s291, 6
      %s295 = sadd.s32 %s293, %s294
      %s296 = smul.addr %s295, 8
      %s297 = scalar_lea.vmem %s7, %s296
      %s298 = smul.u32 6, %s23
      %p299 = scmp.lt.s32.totalorder %s22, 1
      %s300 = scalar_select %p299, %s22, 1
      %p301 = scmp.lt.s32.totalorder %s298, 5
      %s302 = scalar_select %p301, %s298, 5
      %s303 = smul.addr %s300, 6
      %s304 = sadd.s32 %s302, %s303
      %s305 = smul.addr %s304, 8
      %s306 = scalar_lea.vmem %s0, %s305
      %s307 = smul.u32 6, %s23
      %s308 = smul.u32 6, %s23
      %p309 = scmp.lt.s32.totalorder %s22, 1
      %s310 = scalar_select %p309, %s22, 1
      %p311 = scmp.lt.s32.totalorder %s308, 5
      %s312 = scalar_select %p311, %s308, 5
      %s313 = smul.addr %s310, 6
      %s314 = sadd.s32 %s312, %s313
      %s315 = smul.addr %s314, 8
      %s316 = scalar_lea.vmem %s7, %s315
      %s317 = smul.u32 6, %s23
      %v319 = vld [vmem:[%s306] sm:$0xff]
      %v320 = vld [vmem:[%s306 + $0x8] sm:$0xff]
      %v321 = vld [vmem:[%s306 + $0x10] sm:$0xff]
      %v322 = vld [vmem:[%s306 + $0x18] sm:$0xff]
      %v323 = vld [vmem:[%s306 + $0x20] sm:$0xff]
      %v324 = vld [vmem:[%s306 + $0x28] sm:$0xff]
      %v325 = vpack.c.bf16 %v320, %v319
      %v326 = vpack.c.bf16 %v322, %v321
      %v327 = vpack.c.bf16 %v324, %v323
      %v328 = vld [vmem:[%s1] sm:$0xf]
      %v329 = vld [vmem:[%s1 + $0x4] sm:$0xf]
      %v330 = vld [vmem:[%s1 + $0x8] sm:$0xf]
      %v331 = vld [vmem:[%s1 + $0xc] sm:$0xf]
      %v332 = vld [vmem:[%s2] sm:$0x1]
      %v334 = vlaneseq
      %v335 = vshrl.u32 %v334, 7
      %v336 = vsub.s32 0, %v335
      %v337 = vrot.slane %v332, %v336
      %v343 = vunpack.c.l.b16 %v328
      %v344 = vunpack.c.l.b16 %v329
      %v345 = vunpack.c.l.b16 %v330
      %v346 = vunpack.c.l.b16 %v331
      %v347 = vpack.c.b16 %v344, %v343
      %v348 = vpack.c.b16 %v346, %v345
      %vm351 = vcmask 261120
      %v353 = vsel %vm351, %v325, 0
      %v356 = vsel %vm351, %v326, 0
      %v359 = vsel %vm351, %v327, 0
      %361 = vmatprep.subr.bf16.mxu0 0
      %362 = vmatpush1.bf16.msra.mxu0 %v347
      %363 = vmatprep.subr.bf16.mxu0 0
      %364 = vmatpush1.bf16.msra.mxu0 %v348
      %365 = vmatprep.subr.bf16.mxu0 0
      %366 = vmatpush1.bf16.msra.mxu0 0
      %367 = vmatprep.subr.bf16.mxu0 0
      %368 = vmatpush1.bf16.msra.mxu0 0
      %369 = vmatprep.subr.bf16.mxu0 0
      %370 = vmatpush1.bf16.msra.mxu0 0
      %371 = vmatprep.subr.bf16.mxu0 0
      %372 = vmatpush1.bf16.msra.mxu0 0
      %373 = vmatprep.subr.bf16.mxu0 0
      %374 = vmatpush1.bf16.msra.mxu0 0
      %375 = vmatprep.subr.bf16.mxu0 0
      %376 = vmatpush1.bf16.msra.mxu0 0
      %377 = vmatprep.subr.bf16.mxu0 0
      %378 = vmatpush1.bf16.msra.mxu0 0
      %379 = vmatprep.subr.bf16.mxu0 0
      %380 = vmatpush1.bf16.msra.mxu0 0
      %381 = vmatprep.subr.bf16.mxu0 0
      %382 = vmatpush1.bf16.msra.mxu0 0
      %383 = vmatprep.subr.bf16.mxu0 0
      %384 = vmatpush1.bf16.msra.mxu0 0
      %385 = vmatprep.subr.bf16.mxu0 0
      %386 = vmatpush1.bf16.msra.mxu0 0
      %387 = vmatprep.subr.bf16.mxu0 0
      %388 = vmatpush1.bf16.msra.mxu0 0
      %389 = vmatprep.subr.bf16.mxu0 0
      %390 = vmatpush1.bf16.msra.mxu0 0
      %391 = vmatprep.subr.bf16.mxu0 0
      %392 = vmatpush1.bf16.msra.mxu0 0
      %393 = vmatprep.mubr.bf16.mxu0 0
      %394 = vmatmul.mubr.bf16.gmra.mrb[0].mxu0 %v353
      %v395 = vpop.f32.mrb[0].mxu0
      %v396 = vadd.f32 %v337, %v395
      %v397 = vpop.f32.mrb[0].mxu0
      %v398 = vpop.f32.mrb[0].mxu0
      %v399 = vadd.f32 %v337, %v398
      %v400 = vpop.f32.mrb[0].mxu0
      %401 = vmatprep.mubr.bf16.mxu0 0
      %402 = vmatmul.mubr.bf16.gmra.mrb[0].mxu0 %v356
      %v403 = vpop.f32.mrb[0].mxu0
      %v404 = vadd.f32 %v337, %v403
      %v405 = vpop.f32.mrb[0].mxu0
      %v406 = vpop.f32.mrb[0].mxu0
      %v407 = vadd.f32 %v337, %v406
      %v408 = vpop.f32.mrb[0].mxu0
      %409 = vmatprep.mubr.bf16.mxu0 0
      %410 = vmatmul.mubr.bf16.gmra.mrb[0].mxu0 %v359
      %v411 = vpop.f32.mrb[0].mxu0
      %v412 = vadd.f32 %v337, %v411
      %v413 = vpop.f32.mrb[0].mxu0
      %v414 = vpop.f32.mrb[0].mxu0
      %v415 = vadd.f32 %v337, %v414
      %v416 = vpop.f32.mrb[0].mxu0
      %417 = vdwg.mxu0
      %v418 = vmax.f32 %v396, 0.0
      %v419 = vmax.f32 %v399, 0.0
      %v420 = vmax.f32 %v404, 0.0
      %v421 = vmax.f32 %v407, 0.0
      %v422 = vmax.f32 %v412, 0.0
      %v423 = vmax.f32 %v415, 0.0
      %v424 = vpack.c.bf16 %v419, %v418
      %v425 = vpack.c.bf16 %v421, %v420
      %v426 = vpack.c.bf16 %v423, %v422
      %v427 = vld [vmem:[%s3] sm:$0xf]
      %v428 = vld [vmem:[%s3 + $0x4] sm:$0xf]
      %v429 = vld [vmem:[%s3 + $0x8] sm:$0xf]
      %v430 = vld [vmem:[%s3 + $0xc] sm:$0xf]
      %v431 = vld [vmem:[%s3 + $0x10] sm:$0xf]
      %v432 = vld [vmem:[%s3 + $0x14] sm:$0xf]
      %v433 = vld [vmem:[%s3 + $0x18] sm:$0xf]
      %v434 = vld [vmem:[%s3 + $0x1c] sm:$0xf]
      %v435 = vld [vmem:[%s4] sm:$0x1]
      %v437 = vlaneseq
      %v438 = vshrl.u32 %v437, 7
      %v439 = vsub.s32 0, %v438
      %v440 = vrot.slane %v435, %v439
      %v450 = vunpack.c.l.b16 %v427
      %v451 = vunpack.c.l.b16 %v428
      %v452 = vunpack.c.l.b16 %v429
      %v453 = vunpack.c.l.b16 %v430
      %v454 = vunpack.c.l.b16 %v431
      %v455 = vunpack.c.l.b16 %v432
      %v456 = vunpack.c.l.b16 %v433
      %v457 = vunpack.c.l.b16 %v434
      %v458 = vpack.c.b16 %v451, %v450
      %v459 = vpack.c.b16 %v453, %v452
      %v460 = vpack.c.b16 %v455, %v454
      %v461 = vpack.c.b16 %v457, %v456
      %vm466 = vcmask 523264
      %v468 = vsel %vm466, %v424, 0
      %v471 = vsel %vm466, %v425, 0
      %v474 = vsel %vm466, %v426, 0
      %476 = vmatprep.subr.bf16.mxu0 0
      %477 = vmatpush1.bf16.msra.mxu0 %v458
      %478 = vmatprep.subr.bf16.mxu0 0
      %479 = vmatpush1.bf16.msra.mxu0 %v459
      %480 = vmatprep.subr.bf16.mxu0 0
      %481 = vmatpush1.bf16.msra.mxu0 %v460
      %482 = vmatprep.subr.bf16.mxu0 0
      %483 = vmatpush1.bf16.msra.mxu0 %v461
      %484 = vmatprep.subr.bf16.mxu0 0
      %485 = vmatpush1.bf16.msra.mxu0 0
      %486 = vmatprep.subr.bf16.mxu0 0
      %487 = vmatpush1.bf16.msra.mxu0 0
      %488 = vmatprep.subr.bf16.mxu0 0
      %489 = vmatpush1.bf16.msra.mxu0 0
      %490 = vmatprep.subr.bf16.mxu0 0
      %491 = vmatpush1.bf16.msra.mxu0 0
      %492 = vmatprep.subr.bf16.mxu0 0
      %493 = vmatpush1.bf16.msra.mxu0 0
      %494 = vmatprep.subr.bf16.mxu0 0
      %495 = vmatpush1.bf16.msra.mxu0 0
      %496 = vmatprep.subr.bf16.mxu0 0
      %497 = vmatpush1.bf16.msra.mxu0 0
      %498 = vmatprep.subr.bf16.mxu0 0
      %499 = vmatpush1.bf16.msra.mxu0 0
      %500 = vmatprep.subr.bf16.mxu0 0
      %501 = vmatpush1.bf16.msra.mxu0 0
      %502 = vmatprep.subr.bf16.mxu0 0
      %503 = vmatpush1.bf16.msra.mxu0 0
      %504 = vmatprep.subr.bf16.mxu0 0
      %505 = vmatpush1.bf16.msra.mxu0 0
      %506 = vmatprep.subr.bf16.mxu0 0
      %507 = vmatpush1.bf16.msra.mxu0 0
      %508 = vmatprep.mubr.bf16.mxu0 0
      %509 = vmatmul.mubr.bf16.gmra.mrb[0].mxu0 %v468
      %v510 = vpop.f32.mrb[0].mxu0
      %v511 = vadd.f32 %v440, %v510
      %v512 = vpop.f32.mrb[0].mxu0
      %v513 = vpop.f32.mrb[0].mxu0
      %v514 = vadd.f32 %v440, %v513
      %v515 = vpop.f32.mrb[0].mxu0
      %516 = vmatprep.mubr.bf16.mxu0 0
      %517 = vmatmul.mubr.bf16.gmra.mrb[0].mxu0 %v471
      %v518 = vpop.f32.mrb[0].mxu0
      %v519 = vadd.f32 %v440, %v518
      %v520 = vpop.f32.mrb[0].mxu0
      %v521 = vpop.f32.mrb[0].mxu0
      %v522 = vadd.f32 %v440, %v521
      %v523 = vpop.f32.mrb[0].mxu0
      %524 = vmatprep.mubr.bf16.mxu0 0
      %525 = vmatmul.mubr.bf16.gmra.mrb[0].mxu0 %v474
      %v526 = vpop.f32.mrb[0].mxu0
      %v527 = vadd.f32 %v440, %v526
      %v528 = vpop.f32.mrb[0].mxu0
      %v529 = vpop.f32.mrb[0].mxu0
      %v530 = vadd.f32 %v440, %v529
      %v531 = vpop.f32.mrb[0].mxu0
      %532 = vdwg.mxu0
      %v533 = vadd.f32 %v319, %v511
      %v534 = vadd.f32 %v320, %v514
      %v535 = vadd.f32 %v321, %v519
      %v536 = vadd.f32 %v322, %v522
      %v537 = vadd.f32 %v323, %v527
      %v538 = vadd.f32 %v324, %v530
      %v539 = vsel %vm351, %v533, 0.0
      %540 = vadd.xlane.f32.xlu0 %v539
      %v541 = vpop.xlane.xlu0 %540
      %v542 = vsel %vm351, %v534, 0.0
      %543 = vadd.xlane.f32.xlu0 %v542
      %v544 = vpop.xlane.xlu0 %543
      %v545 = vsel %vm351, %v535, 0.0
      %546 = vadd.xlane.f32.xlu0 %v545
      %v547 = vpop.xlane.xlu0 %546
      %v548 = vsel %vm351, %v536, 0.0
      %549 = vadd.xlane.f32.xlu0 %v548
      %v550 = vpop.xlane.xlu0 %549
      %v551 = vsel %vm351, %v537, 0.0
      %552 = vadd.xlane.f32.xlu0 %v551
      %v553 = vpop.xlane.xlu0 %552
      %v554 = vsel %vm351, %v538, 0.0
      %555 = vadd.xlane.f32.xlu0 %v554
      %v556 = vpop.xlane.xlu0 %555
      %v557 = vrcp.pop 32.0
      %v558 = vmul.f32 %v541, %v557
      %v559 = vmul.f32 %v544, %v557
      %v560 = vmul.f32 %v547, %v557
      %v561 = vmul.f32 %v550, %v557
      %v562 = vmul.f32 %v553, %v557
      %v563 = vmul.f32 %v556, %v557
      %v564 = vsub.f32 %v533, %v558
      %v565 = vsub.f32 %v534, %v559
      %v566 = vsub.f32 %v535, %v560
      %v567 = vsub.f32 %v536, %v561
      %v568 = vsub.f32 %v537, %v562
      %v569 = vsub.f32 %v538, %v563
      %v570 = vmul.f32 %v564, %v564
      %v571 = vmul.f32 %v565, %v565
      %v572 = vmul.f32 %v566, %v566
      %v573 = vmul.f32 %v567, %v567
      %v574 = vmul.f32 %v568, %v568
      %v575 = vmul.f32 %v569, %v569
      %v576 = vsel %vm351, %v570, 0.0
      %577 = vadd.xlane.f32.xlu0 %v576
      %v578 = vpop.xlane.xlu0 %577
      %v579 = vsel %vm351, %v571, 0.0
      %580 = vadd.xlane.f32.xlu0 %v579
      %v581 = vpop.xlane.xlu0 %580
      %v582 = vsel %vm351, %v572, 0.0
      %583 = vadd.xlane.f32.xlu0 %v582
      %v584 = vpop.xlane.xlu0 %583
      %v585 = vsel %vm351, %v573, 0.0
      %586 = vadd.xlane.f32.xlu0 %v585
      %v587 = vpop.xlane.xlu0 %586
      %v588 = vsel %vm351, %v574, 0.0
      %589 = vadd.xlane.f32.xlu0 %v588
      %v590 = vpop.xlane.xlu0 %589
      %v591 = vsel %vm351, %v575, 0.0
      %592 = vadd.xlane.f32.xlu0 %v591
      %v593 = vpop.xlane.xlu0 %592
      %v594 = vmul.f32 %v578, %v557
      %v595 = vmul.f32 %v581, %v557
      %v596 = vmul.f32 %v584, %v557
      %v597 = vmul.f32 %v587, %v557
      %v598 = vmul.f32 %v590, %v557
      %v599 = vmul.f32 %v593, %v557
      %v600 = vadd.f32 %v594, 1e-05
      %v601 = vadd.f32 %v595, 1e-05
      %v602 = vadd.f32 %v596, 1e-05
      %v603 = vadd.f32 %v597, 1e-05
      %v604 = vadd.f32 %v598, 1e-05
      %v605 = vadd.f32 %v599, 1e-05
      %v606 = vrsqrt.pop %v600
      %v607 = vrsqrt.pop %v601
      %v608 = vrsqrt.pop %v602
      %v609 = vrsqrt.pop %v603
      %v610 = vrsqrt.pop %v604
      %v611 = vrsqrt.pop %v605
      %v612 = vmul.f32 %v564, %v606
      %v613 = vmul.f32 %v565, %v607
      %v614 = vmul.f32 %v566, %v608
      %v615 = vmul.f32 %v567, %v609
      %v616 = vmul.f32 %v568, %v610
      %v617 = vmul.f32 %v569, %v611
      %v618 = vld [vmem:[%s5] sm:$0x1]
      %v620 = vlaneseq
      %v621 = vshrl.u32 %v620, 7
      %v622 = vsub.s32 0, %v621
      %v623 = vrot.slane %v618, %v622
      %v625 = vmul.f32 %v612, %v623
      %v626 = vmul.f32 %v613, %v623
      %v627 = vmul.f32 %v614, %v623
      %v628 = vmul.f32 %v615, %v623
      %v629 = vmul.f32 %v616, %v623
      %v630 = vmul.f32 %v617, %v623
      %v631 = vld [vmem:[%s6] sm:$0x1]
      %v633 = vlaneseq
      %v634 = vshrl.u32 %v633, 7
      %v635 = vsub.s32 0, %v634
      %v636 = vrot.slane %v631, %v635
      %v638 = vadd.f32 %v625, %v636
      %v639 = vadd.f32 %v626, %v636
      %v640 = vadd.f32 %v627, %v636
      %v641 = vadd.f32 %v628, %v636
      %v642 = vadd.f32 %v629, %v636
      %v643 = vadd.f32 %v630, %v636
      %644 = vst.msk [vmem:[%s316] sm:$0xff] %vm351, %v638
      %645 = vst.msk [vmem:[%s316 + $0x8] sm:$0xff] %vm351, %v639
      %646 = vst.msk [vmem:[%s316 + $0x10] sm:$0xff] %vm351, %v640
      %647 = vst.msk [vmem:[%s316 + $0x18] sm:$0xff] %vm351, %v641
      %648 = vst.msk [vmem:[%s316 + $0x20] sm:$0xff] %vm351, %v642
      %649 = vst.msk [vmem:[%s316 + $0x28] sm:$0xff] %vm351, %v643
      %s650 = smul.u32 6, %s23
      %p651 = scmp.lt.s32.totalorder %s22, 1
      %s652 = scalar_select %p651, %s22, 1
      %p653 = scmp.lt.s32.totalorder %s650, 5
      %s654 = scalar_select %p653, %s650, 5
      %s655 = smul.addr %s652, 6
      %s656 = sadd.s32 %s654, %s655
      %s657 = smul.addr %s656, 8
      %s658 = scalar_lea.vmem %s7, %s657
      // Predicated region
      $region49: #{mccformers_s.7} parent=47 // pred_check
        %p659 = pneg %p204
      $region50: #{mccformers_s.7} parent=47 // pred_check_branch
        %661 = sbr.rel (%p659) target = $region52
      $region51: #{mccformers_s.7} parent=47 // pred_region
        %s662 = smul.u32 6, %s23
      $region52: #{mccformers_s.7} parent=47 // pred_fallthru
        _
    $region48: #{mccformers_s.7} parent=5 // pred_fallthru
      _
    %p663 = scmp.le.s32.totalorder 2, %s13
    // Predicated region
    $region53: #{mccformers_s.7} parent=5 // pred_check
      %p664 = pneg %p663
    $region54: #{mccformers_s.7} parent=5 // pred_check_branch
      %666 = sbr.rel (%p664) target = $region56
    $region55: #{mccformers_s.7} parent=5 // pred_region
      %s667 = ssub.s32 %s13, 2
      // Predicated region
      $region57: #{mccformers_s.7} parent=55 // pred_check
        %p668 = pneg %p210
      $region58: #{mccformers_s.7} parent=55 // pred_check_branch
        %670 = sbr.rel (%p668) target = $region60
      $region59: #{mccformers_s.7} parent=55 // pred_region
        %s671 = smul.u32 6, %s25
        %p672 = scmp.lt.s32.totalorder %s24, 1
        %s673 = scalar_select %p672, %s24, 1
        %p674 = scmp.lt.s32.totalorder %s671, 5
        %s675 = scalar_select %p674, %s671, 5
        %s676 = smul.addr %s673, 6
        %s677 = sadd.s32 %s675, %s676
        %s678 = smul.addr %s677, 8
        %s679 = scalar_lea.vmem %s7, %s678
      $region60: #{mccformers_s.7} parent=55 // pred_fallthru
        _
    $region56: #{mccformers_s.7} parent=5 // pred_fallthru
      _
  $region6: #{mccformers_s.7} parent=0 // loop_footer
    %s17 = sadd.s32 1, %s13
  $region7: #{mccformers_s.7} parent=0 // loop_footer_branch
    %12 = sbr.rel target = $region3
  $region8: #{mccformers_s.7} parent=0 // loop_exit
    _

// kernel: mccformers_s.6
$region0: #{mccformers_s.6}
  #allocation0 [shape = 'u32[]', space=smem, size = 0x4, offset = 0x4, fixed_abs, tag = 'smem constant byte address 0x4 - core index']
  #allocation1 [shape = 'u32[144,128]{1,0:T(1,128)}', space=vmem, size = 0x12000, scoped, tag = 'internal scratch']
  #allocation2 [shape = 'bf16[48,96]{1,0:T(16,128)(2,1)}', space=vmem, size = 0x3000, scoped, tag = 'scratch operand']
  %s0 = inlined_call_operand.vmem [shape: f32[2,48,32], index: 0, kind: input, shape index: {}]
  %s1 = inlined_call_operand.vmem [shape: bf16[32,96], index: 1, kind: input, shape index: {}]
  %s2 = inlined_call_operand.vmem [shape: f32[1,96], index: 2, kind: input, shape index: {}]
  %s3 = inlined_call_operand.vmem [shape: bf16[32,32], index: 3, kind: input, shape index: {}]
  %s4 = inlined_call_operand.vmem [shape: f32[1,32], index: 4, kind: input, shape index: {}]
  %s5 = inlined_call_operand.vmem [shape: f32[1,32], index: 5, kind: input, shape index: {}]
  %s6 = inlined_call_operand.vmem [shape: f32[1,32], index: 6, kind: input, shape index: {}]
  %s7 = inlined_call_operand.vmem [shape: f32[2,48,32], index: 7, kind: output, shape index: {}]
  %s8 = sld [smem:[#allocation0]]
  $region65: #{mccformers_s.6} parent=0
    _
  %s10 = ssub.s32 1, %s8
  %s11 = scalar_select 0, %s10, %s8
  loop: start=0, step=1, limit=4
  $region2: #{mccformers_s.6} parent=0 // loop_pre_header
    _
  $region3: #{mccformers_s.6} parent=0 // loop_header
    %s13 = sphi 0, %s17
    %p14 = scmp.ge.s32.totalorder %s13, 4
    %s20 = sphi 0, %s32
    %s21 = sphi 0, %s28
    %s22 = sphi 0, %s20
    %s23 = sphi 0, %s21
    %s24 = sphi 0, %s22
    %s25 = sphi 0, %s23
    %s35 = sphi 0, %s37
    %s38 = sphi 0, %s35
    %s39 = sphi 0, %s38
    %s55 = sphi 0, %s39
    %s59 = sphi 0, %s59
    %s61 = sphi 0, %s59
    %s62 = sphi 0, %s61
    %s76 = sphi 0, %s62
    %s80 = sphi 0, %s80
    %s82 = sphi 0, %s80
    %s83 = sphi 0, %s82
    %s97 = sphi 0, %s83
    %s101 = sphi 0, %s101
    %s103 = sphi 0, %s101
    %s104 = sphi 0, %s103
    %s118 = sphi 0, %s104
    %s122 = sphi 0, %s122
    %s124 = sphi 0, %s122
    %s125 = sphi 0, %s124
    %s139 = sphi 0, %s125
    %s143 = sphi 0, %s143
    %s145 = sphi 0, %s143
    %s146 = sphi 0, %s145
    %s160 = sphi 0, %s146
    %s164 = sphi 0, %s164
    %s166 = sphi 0, %s164
    %s167 = sphi 0, %s166
    %s181 = sphi 0, %s167
    %s189 = sphi 0, %s191
    %s192 = sphi 0, %s189
    %s193 = sphi 0, %s192
    %s209 = sphi 0, %s193
  $region4: #{mccformers_s.6} parent=0 // loop_header_branch
    %16 = sbr.rel (%p14) target = $region8
  $region5: #{mccformers_s.6} parent=0 // loop_body
    %s18 = ssub.s32 %s13, 1
    %s19 = ssub.s32 %s13, 2
    %s26 = sadd.s32 1, %s21
    %p27 = scmp.ge.s32.totalorder %s26, 1
    %s28 = scalar_select %p27, 0, %s26
    %s29 = sadd.s32 1, %s20
    %s30 = scalar_select %p27, %s29, %s20
    %p31 = scmp.ge.s32.totalorder %s30, 2
    %s32 = scalar_select %p31, 0, %s30
    %s33 = ssub.s32 %s20, %s32
    %p34 = scmp.eq.s32.totalorder %s33, 0
    %s36 = sadd.s32 %s35, 1
    %s37 = scalar_select %p34, %s35, %s36
    %p40 = pneg %p34
    %p41 = scmp.eq.s32.totalorder %s13, 1
    %p42 = por %p40, %p41
    %p43 = scmp.ne.s32.totalorder %s35, %s38
    %p44 = scmp.eq.s32.totalorder %s13, 0
    %p45 = por %p43, %p44
    %p46 = scmp.ne.s32.totalorder %s35, %s38
    %p47 = scmp.eq.s32.totalorder %s18, 1
    %p48 = por %p46, %p47
    %p49 = scmp.ne.s32.totalorder %s38, %s39
    %p50 = scmp.eq.s32.totalorder %s18, 0
    %p51 = por %p49, %p50
    %p52 = scmp.ne.s32.totalorder %s38, %s39
    %p53 = scmp.eq.s32.totalorder %s19, 1
    %p54 = por %p52, %p53
    %p56 = scmp.ne.s32.totalorder %s39, %s55
    %p57 = scmp.eq.s32.totalorder %s19, 0
    %p58 = por %p56, %p57
    %s60 = sadd.s32 %s59, 1
    %p63 = scmp.eq.s32.totalorder %s13, 1
    %p64 = scmp.ne.s32.totalorder %s59, %s61
    %p65 = scmp.eq.s32.totalorder %s13, 0
    %p66 = por %p64, %p65
    %p67 = scmp.ne.s32.totalorder %s59, %s61
    %p68 = scmp.eq.s32.totalorder %s18, 1
    %p69 = por %p67, %p68
    %p70 = scmp.ne.s32.totalorder %s61, %s62
    %p71 = scmp.eq.s32.totalorder %s18, 0
    %p72 = por %p70, %p71
    %p73 = scmp.ne.s32.totalorder %s61, %s62
    %p74 = scmp.eq.s32.totalorder %s19, 1
    %p75 = por %p73, %p74
    %p77 = scmp.ne.s32.totalorder %s62, %s76
    %p78 = scmp.eq.s32.totalorder %s19, 0
    %p79 = por %p77, %p78
    %s81 = sadd.s32 %s80, 1
    %p84 = scmp.eq.s32.totalorder %s13, 1
    %p85 = scmp.ne.s32.totalorder %s80, %s82
    %p86 = scmp.eq.s32.totalorder %s13, 0
    %p87 = por %p85, %p86
    %p88 = scmp.ne.s32.totalorder %s80, %s82
    %p89 = scmp.eq.s32.totalorder %s18, 1
    %p90 = por %p88, %p89
    %p91 = scmp.ne.s32.totalorder %s82, %s83
    %p92 = scmp.eq.s32.totalorder %s18, 0
    %p93 = por %p91, %p92
    %p94 = scmp.ne.s32.totalorder %s82, %s83
    %p95 = scmp.eq.s32.totalorder %s19, 1
    %p96 = por %p94, %p95
    %p98 = scmp.ne.s32.totalorder %s83, %s97
    %p99 = scmp.eq.s32.totalorder %s19, 0
    %p100 = por %p98, %p99
    %s102 = sadd.s32 %s101, 1
    %p105 = scmp.eq.s32.totalorder %s13, 1
    %p106 = scmp.ne.s32.totalorder %s101, %s103
    %p107 = scmp.eq.s32.totalorder %s13, 0
    %p108 = por %p106, %p107
    %p109 = scmp.ne.s32.totalorder %s101, %s103
    %p110 = scmp.eq.s32.totalorder %s18, 1
    %p111 = por %p109, %p110
    %p112 = scmp.ne.s32.totalorder %s103, %s104
    %p113 = scmp.eq.s32.totalorder %s18, 0
    %p114 = por %p112, %p113
    %p115 = scmp.ne.s32.totalorder %s103, %s104
    %p116 = scmp.eq.s32.totalorder %s19, 1
    %p117 = por %p115, %p116
    %p119 = scmp.ne.s32.totalorder %s104, %s118
    %p120 = scmp.eq.s32.totalorder %s19, 0
    %p121 = por %p119, %p120
    %s123 = sadd.s32 %s122, 1
    %p126 = scmp.eq.s32.totalorder %s13, 1
    %p127 = scmp.ne.s32.totalorder %s122, %s124
    %p128 = scmp.eq.s32.totalorder %s13, 0
    %p129 = por %p127, %p128
    %p130 = scmp.ne.s32.totalorder %s122, %s124
    %p131 = scmp.eq.s32.totalorder %s18, 1
    %p132 = por %p130, %p131
    %p133 = scmp.ne.s32.totalorder %s124, %s125
    %p134 = scmp.eq.s32.totalorder %s18, 0
    %p135 = por %p133, %p134
    %p136 = scmp.ne.s32.totalorder %s124, %s125
    %p137 = scmp.eq.s32.totalorder %s19, 1
    %p138 = por %p136, %p137
    %p140 = scmp.ne.s32.totalorder %s125, %s139
    %p141 = scmp.eq.s32.totalorder %s19, 0
    %p142 = por %p140, %p141
    %s144 = sadd.s32 %s143, 1
    %p147 = scmp.eq.s32.totalorder %s13, 1
    %p148 = scmp.ne.s32.totalorder %s143, %s145
    %p149 = scmp.eq.s32.totalorder %s13, 0
    %p150 = por %p148, %p149
    %p151 = scmp.ne.s32.totalorder %s143, %s145
    %p152 = scmp.eq.s32.totalorder %s18, 1
    %p153 = por %p151, %p152
    %p154 = scmp.ne.s32.totalorder %s145, %s146
    %p155 = scmp.eq.s32.totalorder %s18, 0
    %p156 = por %p154, %p155
    %p157 = scmp.ne.s32.totalorder %s145, %s146
    %p158 = scmp.eq.s32.totalorder %s19, 1
    %p159 = por %p157, %p158
    %p161 = scmp.ne.s32.totalorder %s146, %s160
    %p162 = scmp.eq.s32.totalorder %s19, 0
    %p163 = por %p161, %p162
    %s165 = sadd.s32 %s164, 1
    %p168 = scmp.eq.s32.totalorder %s13, 1
    %p169 = scmp.ne.s32.totalorder %s164, %s166
    %p170 = scmp.eq.s32.totalorder %s13, 0
    %p171 = por %p169, %p170
    %p172 = scmp.ne.s32.totalorder %s164, %s166
    %p173 = scmp.eq.s32.totalorder %s18, 1
    %p174 = por %p172, %p173
    %p175 = scmp.ne.s32.totalorder %s166, %s167
    %p176 = scmp.eq.s32.totalorder %s18, 0
    %p177 = por %p175, %p176
    %p178 = scmp.ne.s32.totalorder %s166, %s167
    %p179 = scmp.eq.s32.totalorder %s19, 1
    %p180 = por %p178, %p179
    %p182 = scmp.ne.s32.totalorder %s167, %s181
    %p183 = scmp.eq.s32.totalorder %s19, 0
    %p184 = por %p182, %p183
    %s185 = ssub.s32 %s20, %s32
    %s186 = ssub.s32 %s21, %s28
    %s187 = sor.u32 %s185, %s186
    %p188 = scmp.eq.s32.totalorder %s187, 0
    %s190 = sadd.s32 %s189, 1
    %s191 = scalar_select %p188, %s189, %s190
    %p194 = pneg %p188
    %p195 = scmp.eq.s32.totalorder %s13, 1
    %p196 = por %p194, %p195
    %p197 = scmp.ne.s32.totalorder %s189, %s192
    %p198 = scmp.eq.s32.totalorder %s13, 0
    %p199 = por %p197, %p198
    %p200 = scmp.ne.s32.totalorder %s189, %s192
    %p201 = scmp.eq.s32.totalorder %s18, 1
    %p202 = por %p200, %p201
    %p203 = scmp.ne.s32.totalorder %s192, %s193
    %p204 = scmp.eq.s32.totalorder %s18, 0
    %p205 = por %p203, %p204
    %p206 = scmp.ne.s32.totalorder %s192, %s193
    %p207 = scmp.eq.s32.totalorder %s19, 1
    %p208 = por %p206, %p207
    %p210 = scmp.ne.s32.totalorder %s193, %s209
    %p211 = scmp.eq.s32.totalorder %s19, 0
    %p212 = por %p210, %p211
    %p213 = scmp.le.s32.totalorder 1, %s13
    %p214 = scmp.lt.s32.totalorder %s13, 3
    %p215 = pnand %p213, %p214
    %p216 = pneg %p215
    // Predicated region
    $region9: #{mccformers_s.6} parent=5 // pred_check
      _
    $region10: #{mccformers_s.6} parent=5 // pred_check_branch
      %218 = sbr.rel (%p215) target = $region12
    $region11: #{mccformers_s.6} parent=5 // pred_region
      %s219 = ssub.s32 %s13, 1
      // Predicated region
      $region13: #{mccformers_s.6} parent=11 // pred_check
        %p220 = pneg %p72
      $region14: #{mccformers_s.6} parent=11 // pred_check_branch
        %222 = sbr.rel (%p220) target = $region16
      $region15: #{mccformers_s.6} parent=11 // pred_region
        _
      $region16: #{mccformers_s.6} parent=11 // pred_fallthru
        _
      // Predicated region
      $region17: #{mccformers_s.6} parent=11 // pred_check
        %p223 = pneg %p93
      $region18: #{mccformers_s.6} parent=11 // pred_check_branch
        %225 = sbr.rel (%p223) target = $region20
      $region19: #{mccformers_s.6} parent=11 // pred_region
        _
      $region20: #{mccformers_s.6} parent=11 // pred_fallthru
        _
      // Predicated region
      $region21: #{mccformers_s.6} parent=11 // pred_check
        %p226 = pneg %p114
      $region22: #{mccformers_s.6} parent=11 // pred_check_branch
        %228 = sbr.rel (%p226) target = $region24
      $region23: #{mccformers_s.6} parent=11 // pred_region
        _
      $region24: #{mccformers_s.6} parent=11 // pred_fallthru
        _
      // Predicated region
      $region25: #{mccformers_s.6} parent=11 // pred_check
        %p229 = pneg %p135
      $region26: #{mccformers_s.6} parent=11 // pred_check_branch
        %231 = sbr.rel (%p229) target = $region28
      $region27: #{mccformers_s.6} parent=11 // pred_region
        _
      $region28: #{mccformers_s.6} parent=11 // pred_fallthru
        _
      // Predicated region
      $region29: #{mccformers_s.6} parent=11 // pred_check
        %p232 = pneg %p156
      $region30: #{mccformers_s.6} parent=11 // pred_check_branch
        %234 = sbr.rel (%p232) target = $region32
      $region31: #{mccformers_s.6} parent=11 // pred_region
        _
      $region32: #{mccformers_s.6} parent=11 // pred_fallthru
        _
      // Predicated region
      $region33: #{mccformers_s.6} parent=11 // pred_check
        %p235 = pneg %p177
      $region34: #{mccformers_s.6} parent=11 // pred_check_branch
        %237 = sbr.rel (%p235) target = $region36
      $region35: #{mccformers_s.6} parent=11 // pred_region
        _
      $region36: #{mccformers_s.6} parent=11 // pred_fallthru
        _
    $region12: #{mccformers_s.6} parent=5 // pred_fallthru
      _
    %p238 = scmp.lt.s32.totalorder %s13, 2
    // Predicated region
    $region37: #{mccformers_s.6} parent=5 // pred_check
      %p239 = pneg %p238
    $region38: #{mccformers_s.6} parent=5 // pred_check_branch
      %241 = sbr.rel (%p239) target = $region40
    $region39: #{mccformers_s.6} parent=5 // pred_region
      // Predicated region
      $region41: #{mccformers_s.6} parent=39 // pred_check
        %p242 = pneg %p45
      $region42: #{mccformers_s.6} parent=39 // pred_check_branch
        %244 = sbr.rel (%p242) target = $region44
      $region43: #{mccformers_s.6} parent=39 // pred_region
        %p245 = scmp.lt.s32.totalorder %s20, 1
        %s246 = scalar_select %p245, %s20, 1
        %s247 = smul.addr %s246, 6
        %s248 = smul.addr %s247, 8
        %s249 = scalar_lea.vmem %s0, %s248
      $region44: #{mccformers_s.6} parent=39 // pred_fallthru
        _
    $region40: #{mccformers_s.6} parent=5 // pred_fallthru
      _
    %p250 = scmp.le.s32.totalorder 1, %s13
    %p251 = scmp.lt.s32.totalorder %s13, 3
    %p252 = pnand %p250, %p251
    %p253 = pneg %p252
    // Predicated region
    $region45: #{mccformers_s.6} parent=5 // pred_check
      _
    $region46: #{mccformers_s.6} parent=5 // pred_check_branch
      %255 = sbr.rel (%p252) target = $region48
    $region47: #{mccformers_s.6} parent=5 // pred_region
      %s256 = ssub.s32 %s13, 1
      %p257 = scmp.lt.s32.totalorder %s22, 1
      %s258 = scalar_select %p257, %s22, 1
      %s259 = smul.addr %s258, 6
      %s260 = smul.addr %s259, 8
      %s261 = scalar_lea.vmem %s0, %s260
      %p262 = pneg %p51
      %p263 = pneg %p48
      %p264 = pneg %p72
      %p265 = pneg %p69
      %p266 = pneg %p93
      %p267 = pneg %p90
      %p268 = pneg %p114
      %p269 = pneg %p111
      %p270 = pneg %p135
      %p271 = pneg %p132
      %p272 = pneg %p156
      %p273 = pneg %p153
      %p274 = pneg %p177
      %p275 = pneg %p174
      %p276 = pneg %p205
      %p277 = pneg %p202
      %s278 = smul.u32 6, %s23
      %p279 = scmp.lt.s32.totalorder %s22, 1
      %s280 = scalar_select %p279, %s22, 1
      %p281 = scmp.lt.s32.totalorder %s278, 5
      %s282 = scalar_select %p281, %s278, 5
      %s283 = smul.addr %s280, 6
      %s284 = sadd.s32 %s282, %s283
      %s285 = smul.addr %s284, 8
      %s286 = scalar_lea.vmem %s7, %s285
      %p287 = scmp.lt.s32.totalorder %s22, 1
      %s288 = scalar_select %p287, %s22, 1
      %s289 = smul.addr %s288, 6
      %s290 = smul.addr %s289, 8
      %s291 = scalar_lea.vmem %s0, %s290
      %s292 = smul.u32 6, %s23
      %p293 = scmp.lt.s32.totalorder %s22, 1
      %s294 = scalar_select %p293, %s22, 1
      %p295 = scmp.lt.s32.totalorder %s292, 5
      %s296 = scalar_select %p295, %s292, 5
      %s297 = smul.addr %s294, 6
      %s298 = sadd.s32 %s296, %s297
      %s299 = smul.addr %s298, 8
      %s300 = scalar_lea.vmem %s7, %s299
      %s301 = smul.u32 6, %s23
      %p303 = scmp.eq.s32.totalorder %s23, 0
      // Predicated region
      $region49: #{mccformers_s.6} parent=47 // pred_check
        %p304 = pneg %p303
      $region50: #{mccformers_s.6} parent=47 // pred_check_branch
        %306 = sbr.rel (%p304) target = $region52
      $region51: #{mccformers_s.6} parent=47 // pred_region
        %v307 = vld [vmem:[%s291] sm:$0xff]
        %v308 = vld [vmem:[%s291 + $0x8] sm:$0xff]
        %v309 = vld [vmem:[%s291 + $0x10] sm:$0xff]
        %v310 = vld [vmem:[%s291 + $0x18] sm:$0xff]
        %v311 = vld [vmem:[%s291 + $0x20] sm:$0xff]
        %v312 = vld [vmem:[%s291 + $0x28] sm:$0xff]
        %v313 = vpack.c.bf16 %v308, %v307
        %v314 = vpack.c.bf16 %v310, %v309
        %v315 = vpack.c.bf16 %v312, %v311
        %v316 = vld [vmem:[%s1] sm:$0xf]
        %v317 = vld [vmem:[%s1 + $0x4] sm:$0xf]
        %v318 = vld [vmem:[%s1 + $0x8] sm:$0xf]
        %v319 = vld [vmem:[%s1 + $0xc] sm:$0xf]
        %v320 = vld [vmem:[%s2] sm:$0x1]
        %v322 = vlaneseq
        %v323 = vshrl.u32 %v322, 7
        %v324 = vsub.s32 0, %v323
        %v325 = vrot.slane %v320, %v324
        %v331 = vunpack.c.l.b16 %v316
        %v332 = vunpack.c.l.b16 %v317
        %v333 = vunpack.c.l.b16 %v318
        %v334 = vunpack.c.l.b16 %v319
        %v335 = vpack.c.b16 %v332, %v331
        %v336 = vpack.c.b16 %v334, %v333
        %vm339 = vcmask 261120
        %v341 = vsel %vm339, %v313, 0
        %v344 = vsel %vm339, %v314, 0
        %v347 = vsel %vm339, %v315, 0
        %349 = vmatprep.subr.bf16.mxu0 0
        %350 = vmatpush1.bf16.msra.mxu0 %v335
        %351 = vmatprep.subr.bf16.mxu0 0
        %352 = vmatpush1.bf16.msra.mxu0 %v336
        %353 = vmatprep.subr.bf16.mxu0 0
        %354 = vmatpush1.bf16.msra.mxu0 0
        %355 = vmatprep.subr.bf16.mxu0 0
        %356 = vmatpush1.bf16.msra.mxu0 0
        %357 = vmatprep.subr.bf16.mxu0 0
        %358 = vmatpush1.bf16.msra.mxu0 0
        %359 = vmatprep.subr.bf16.mxu0 0
        %360 = vmatpush1.bf16.msra.mxu0 0
        %361 = vmatprep.subr.bf16.mxu0 0
        %362 = vmatpush1.bf16.msra.mxu0 0
        %363 = vmatprep.subr.bf16.mxu0 0
        %364 = vmatpush1.bf16.msra.mxu0 0
        %365 = vmatprep.subr.bf16.mxu0 0
        %366 = vmatpush1.bf16.msra.mxu0 0
        %367 = vmatprep.subr.bf16.mxu0 0
        %368 = vmatpush1.bf16.msra.mxu0 0
        %369 = vmatprep.subr.bf16.mxu0 0
        %370 = vmatpush1.bf16.msra.mxu0 0
        %371 = vmatprep.subr.bf16.mxu0 0
        %372 = vmatpush1.bf16.msra.mxu0 0
        %373 = vmatprep.subr.bf16.mxu0 0
        %374 = vmatpush1.bf16.msra.mxu0 0
        %375 = vmatprep.subr.bf16.mxu0 0
        %376 = vmatpush1.bf16.msra.mxu0 0
        %377 = vmatprep.subr.bf16.mxu0 0
        %378 = vmatpush1.bf16.msra.mxu0 0
        %379 = vmatprep.subr.bf16.mxu0 0
        %380 = vmatpush1.bf16.msra.mxu0 0
        %381 = vmatprep.mubr.bf16.mxu0 0
        %382 = vmatmul.mubr.bf16.gmra.mrb[0].mxu0 %v341
        %v383 = vpop.f32.mrb[0].mxu0
        %v384 = vadd.f32 %v325, %v383
        %v385 = vpop.f32.mrb[0].mxu0
        %v386 = vpop.f32.mrb[0].mxu0
        %v387 = vadd.f32 %v325, %v386
        %v388 = vpop.f32.mrb[0].mxu0
        %389 = vmatprep.mubr.bf16.mxu0 0
        %390 = vmatmul.mubr.bf16.gmra.mrb[0].mxu0 %v344
        %v391 = vpop.f32.mrb[0].mxu0
        %v392 = vadd.f32 %v325, %v391
        %v393 = vpop.f32.mrb[0].mxu0
        %v394 = vpop.f32.mrb[0].mxu0
        %v395 = vadd.f32 %v325, %v394
        %v396 = vpop.f32.mrb[0].mxu0
        %397 = vmatprep.mubr.bf16.mxu0 0
        %398 = vmatmul.mubr.bf16.gmra.mrb[0].mxu0 %v347
        %v399 = vpop.f32.mrb[0].mxu0
        %v400 = vadd.f32 %v325, %v399
        %v401 = vpop.f32.mrb[0].mxu0
        %v402 = vpop.f32.mrb[0].mxu0
        %v403 = vadd.f32 %v325, %v402
        %v404 = vpop.f32.mrb[0].mxu0
        %405 = vdwg.mxu0
        %v406 = vpack.c.bf16 %v387, %v384
        %v407 = vpack.c.bf16 %v395, %v392
        %v408 = vpack.c.bf16 %v403, %v400
        %vm409 = vcmask 785408
        %410 = vst.msk [vmem:[#allocation2] sm:$0xff] %vm409, %v406
        %411 = vst.msk [vmem:[#allocation2 + $0x8] sm:$0xff] %vm409, %v407
        %412 = vst.msk [vmem:[#allocation2 + $0x10] sm:$0xff] %vm409, %v408
      $region52: #{mccformers_s.6} parent=47 // pred_fallthru
        _
      %v413 = vld [vmem:[%s291] sm:$0xff]
      %v414 = vld [vmem:[%s291 + $0x8] sm:$0xff]
      %v415 = vld [vmem:[%s291 + $0x10] sm:$0xff]
      %v416 = vld [vmem:[%s291 + $0x18] sm:$0xff]
      %v417 = vld [vmem:[%s291 + $0x20] sm:$0xff]
      %v418 = vld [vmem:[%s291 + $0x28] sm:$0xff]
      %v419 = vld [vmem:[#allocation2] sm:$0xff]
      %v420 = vld [vmem:[#allocation2 + $0x8] sm:$0xff]
      %v421 = vld [vmem:[#allocation2 + $0x10] sm:$0xff]
      %425 = vrot.lane.b32.xlu0 %v419, 96
      %v426 = vpop.permute.xlu0 %425
      %427 = vrot.lane.b32.xlu0 %v420, 96
      %v428 = vpop.permute.xlu0 %427
      %429 = vrot.lane.b32.xlu0 %v421, 96
      %v430 = vpop.permute.xlu0 %429
      %vm431 = vcmask 64512
      %v433 = vsel %vm431, %v419, 0
      %v436 = vsel %vm431, %v420, 0
      %v439 = vsel %vm431, %v421, 0
      %v442 = vsel %vm431, %v426, 0
      %v445 = vsel %vm431, %v428, 0
      %v448 = vsel %vm431, %v430, 0
      %450 = vmatprep.subr.bf16.mxu0 0
      %451 = vmatpush1.bf16.xpose.msra.mxu0 %v442
      %452 = vmatprep.subr.bf16.mxu0 0
      %453 = vmatpush1.bf16.xpose.msra.mxu0 %v445
      %454 = vmatprep.subr.bf16.mxu0 0
      %455 = vmatpush1.bf16.xpose.msra.mxu0 %v448
      %456 = vmatprep.subr.bf16.mxu0 0
      %457 = vmatpush1.bf16.xpose.msra.mxu0 0
      %458 = vmatprep.subr.bf16.mxu0 0
      %459 = vmatpush1.bf16.xpose.msra.mxu0 0
      %460 = vmatprep.subr.bf16.mxu0 0
      %461 = vmatpush1.bf16.xpose.msra.mxu0 0
      %462 = vmatprep.subr.bf16.mxu0 0
      %463 = vmatpush1.bf16.xpose.msra.mxu0 0
      %464 = vmatprep.subr.bf16.mxu0 0
      %465 = vmatpush1.bf16.xpose.msra.mxu0 0
      %466 = vmatprep.subr.bf16.mxu0 0
      %467 = vmatpush1.bf16.xpose.msra.mxu0 0
      %468 = vmatprep.subr.bf16.mxu0 0
      %469 = vmatpush1.bf16.xpose.msra.mxu0 0
      %470 = vmatprep.subr.bf16.mxu0 0
      %471 = vmatpush1.bf16.xpose.msra.mxu0 0
      %472 = vmatprep.subr.bf16.mxu0 0
      %473 = vmatpush1.bf16.xpose.msra.mxu0 0
      %474 = vmatprep.subr.bf16.mxu0 0
      %475 = vmatpush1.bf16.xpose.msra.mxu0 0
      %476 = vmatprep.subr.bf16.mxu0 0
      %477 = vmatpush1.bf16.xpose.msra.mxu0 0
      %478 = vmatprep.subr.bf16.mxu0 0
      %479 = vmatpush1.bf16.xpose.msra.mxu0 0
      %480 = vmatprep.subr.bf16.mxu0 0
      %481 = vmatpush1.bf16.xpose.msra.mxu0 0
      %482 = vmatprep.mubr.bf16.mxu0 0
      %483 = vmatmul.mubr.bf16.gmra.mrb[0].mxu0 %v433
      %v484 = vpop.f32.mrb[0].mxu0
      %v485 = vadd.f32 0.0, %v484
      %v486 = vpop.f32.mrb[0].mxu0
      %v487 = vpop.f32.mrb[0].mxu0
      %v488 = vadd.f32 0.0, %v487
      %v489 = vpop.f32.mrb[0].mxu0
      %490 = vmatprep.mubr.bf16.mxu0 0
      %491 = vmatmul.mubr.bf16.gmra.mrb[0].mxu0 %v436
      %v492 = vpop.f32.mrb[0].mxu0
      %v493 = vadd.f32 0.0, %v492
      %v494 = vpop.f32.mrb[0].mxu0
      %v495 = vpop.f32.mrb[0].mxu0
      %v496 = vadd.f32 0.0, %v495
      %v497 = vpop.f32.mrb[0].mxu0
      %498 = vmatprep.mubr.bf16.mxu0 0
      %499 = vmatmul.mubr.bf16.gmra.mrb[0].mxu0 %v439
      %v500 = vpop.f32.mrb[0].mxu0
      %v501 = vadd.f32 0.0, %v500
      %v502 = vpop.f32.mrb[0].mxu0
      %v503 = vpop.f32.mrb[0].mxu0
      %v504 = vadd.f32 0.0, %v503
      %v505 = vpop.f32.mrb[0].mxu0
      %506 = vdwg.mxu0
      %v507 = vmul.f32 %v485, 0.35355338
      %v508 = vmul.f32 %v488, 0.35355338
      %v509 = vmul.f32 %v493, 0.35355338
      %v510 = vmul.f32 %v496, 0.35355338
      %v511 = vmul.f32 %v501, 0.35355338
      %v512 = vmul.f32 %v504, 0.35355338
      %vm513 = vcmask 392192
      %v514 = vsel %vm513, %v507, -inf
      %515 = vmax.xlane.f32.xlu0 %v514
      %v516 = vpop.xlane.xlu0 %515
      %v517 = vsel %vm513, %v508, -inf
      %518 = vmax.xlane.f32.xlu0 %v517
      %v519 = vpop.xlane.xlu0 %518
      %v520 = vsel %vm513, %v509, -inf
      %521 = vmax.xlane.f32.xlu0 %v520
      %v522 = vpop.xlane.xlu0 %521
      %v523 = vsel %vm513, %v510, -inf
      %524 = vmax.xlane.f32.xlu0 %v523
      %v525 = vpop.xlane.xlu0 %524
      %v526 = vsel %vm513, %v511, -inf
      %527 = vmax.xlane.f32.xlu0 %v526
      %v528 = vpop.xlane.xlu0 %527
      %v529 = vsel %vm513, %v512, -inf
      %530 = vmax.xlane.f32.xlu0 %v529
      %v531 = vpop.xlane.xlu0 %530
      %v532 = vsub.f32 %v507, %v516
      %v533 = vsub.f32 %v508, %v519
      %v534 = vsub.f32 %v509, %v522
      %v535 = vsub.f32 %v510, %v525
      %v536 = vsub.f32 %v511, %v528
      %v537 = vsub.f32 %v512, %v531
      %v538 = vmul.f32 %v532, 1.442695
      %v539 = vpow.pop %v538
      %v540 = vmul.f32 %v533, 1.442695
      %v541 = vpow.pop %v540
      %v542 = vmul.f32 %v534, 1.442695
      %v543 = vpow.pop %v542
      %v544 = vmul.f32 %v535, 1.442695
      %v545 = vpow.pop %v544
      %v546 = vmul.f32 %v536, 1.442695
      %v547 = vpow.pop %v546
      %v548 = vmul.f32 %v537, 1.442695
      %v549 = vpow.pop %v548
      %v550 = vsel %vm513, %v539, 0.0
      %551 = vadd.xlane.f32.xlu0 %v550
      %v552 = vpop.xlane.xlu0 %551
      %v553 = vsel %vm513, %v541, 0.0
      %554 = vadd.xlane.f32.xlu0 %v553
      %v555 = vpop.xlane.xlu0 %554
      %v556 = vsel %vm513, %v543, 0.0
      %557 = vadd.xlane.f32.xlu0 %v556
      %v558 = vpop.xlane.xlu0 %557
      %v559 = vsel %vm513, %v545, 0.0
      %560 = vadd.xlane.f32.xlu0 %v559
      %v561 = vpop.xlane.xlu0 %560
      %v562 = vsel %vm513, %v547, 0.0
      %563 = vadd.xlane.f32.xlu0 %v562
      %v564 = vpop.xlane.xlu0 %563
      %v565 = vsel %vm513, %v549, 0.0
      %566 = vadd.xlane.f32.xlu0 %v565
      %v567 = vpop.xlane.xlu0 %566
      %v568 = vrcp.pop %v552
      %v569 = vrcp.pop %v555
      %v570 = vrcp.pop %v558
      %v571 = vrcp.pop %v561
      %v572 = vrcp.pop %v564
      %v573 = vrcp.pop %v567
      %v574 = vmul.f32 %v539, %v568
      %v575 = vmul.f32 %v541, %v569
      %v576 = vmul.f32 %v543, %v570
      %v577 = vmul.f32 %v545, %v571
      %v578 = vmul.f32 %v547, %v572
      %v579 = vmul.f32 %v549, %v573
      %v580 = vpack.c.bf16 %v575, %v574
      %v581 = vpack.c.bf16 %v577, %v576
      %v582 = vpack.c.bf16 %v579, %v578
      %583 = vrot.lane.b32.xlu0 %v419, 64
      %v584 = vpop.permute.xlu0 %583
      %585 = vrot.lane.b32.xlu0 %v420, 64
      %v586 = vpop.permute.xlu0 %585
      %587 = vrot.lane.b32.xlu0 %v421, 64
      %v588 = vpop.permute.xlu0 %587
      %v593 = vsel %vm513, %v580, 0
      %v596 = vsel %vm513, %v581, 0
      %v599 = vsel %vm513, %v582, 0
      %601 = vmatprep.subr.bf16.mxu0 0
      %602 = vmatpush1.bf16.msra.mxu0 %v584
      %603 = vmatprep.subr.bf16.mxu0 0
      %604 = vmatpush1.bf16.msra.mxu0 %v586
      %605 = vmatprep.subr.bf16.mxu0 0
      %606 = vmatpush1.bf16.msra.mxu0 %v588
      %607 = vmatprep.subr.bf16.mxu0 0
      %608 = vmatpush1.bf16.msra.mxu0 0
      %609 = vmatprep.subr.bf16.mxu0 0
      %610 = vmatpush1.bf16.msra.mxu0 0
      %611 = vmatprep.subr.bf16.mxu0 0
      %612 = vmatpush1.bf16.msra.mxu0 0
      %613 = vmatprep.subr.bf16.mxu0 0
      %614 = vmatpush1.bf16.msra.mxu0 0
      %615 = vmatprep.subr.bf16.mxu0 0
      %616 = vmatpush1.bf16.msra.mxu0 0
      %617 = vmatprep.subr.bf16.mxu0 0
      %618 = vmatpush1.bf16.msra.mxu0 0
      %619 = vmatprep.subr.bf16.mxu0 0
      %620 = vmatpush1.bf16.msra.mxu0 0
      %621 = vmatprep.subr.bf16.mxu0 0
      %622 = vmatpush1.bf16.msra.mxu0 0
      %623 = vmatprep.subr.bf16.mxu0 0
      %624 = vmatpush1.bf16.msra.mxu0 0
      %625 = vmatprep.subr.bf16.mxu0 0
      %626 = vmatpush1.bf16.msra.mxu0 0
      %627 = vmatprep.subr.bf16.mxu0 0
      %628 = vmatpush1.bf16.msra.mxu0 0
      %629 = vmatprep.subr.bf16.mxu0 0
      %630 = vmatpush1.bf16.msra.mxu0 0
      %631 = vmatprep.subr.bf16.mxu0 0
      %632 = vmatpush1.bf16.msra.mxu0 0
      %633 = vmatprep.mubr.bf16.mxu0 0
      %634 = vmatmul.mubr.bf16.gmra.mrb[0].mxu0 %v593
      %v635 = vpop.f32.mrb[0].mxu0
      %v636 = vadd.f32 0.0, %v635
      %v637 = vpop.f32.mrb[0].mxu0
      %v638 = vpop.f32.mrb[0].mxu0
      %v639 = vadd.f32 0.0, %v638
      %v640 = vpop.f32.mrb[0].mxu0
      %641 = vmatprep.mubr.bf16.mxu0 0
      %642 = vmatmul.mubr.bf16.gmra.mrb[0].mxu0 %v596
      %v643 = vpop.f32.mrb[0].mxu0
      %v644 = vadd.f32 0.0, %v643
      %v645 = vpop.f32.mrb[0].mxu0
      %v646 = vpop.f32.mrb[0].mxu0
      %v647 = vadd.f32 0.0, %v646
      %v648 = vpop.f32.mrb[0].mxu0
      %649 = vmatprep.mubr.bf16.mxu0 0
      %650 = vmatmul.mubr.bf16.gmra.mrb[0].mxu0 %v599
      %v651 = vpop.f32.mrb[0].mxu0
      %v652 = vadd.f32 0.0, %v651
      %v653 = vpop.f32.mrb[0].mxu0
      %v654 = vpop.f32.mrb[0].mxu0
      %v655 = vadd.f32 0.0, %v654
      %v656 = vpop.f32.mrb[0].mxu0
      %657 = vdwg.mxu0
      %v658 = vpack.c.bf16 %v639, %v636
      %v659 = vpack.c.bf16 %v647, %v644
      %v660 = vpack.c.bf16 %v655, %v652
      %v661 = vld [vmem:[%s3] sm:$0xf]
      %662 = vrot.lane.b32.xlu0 %v419, 120
      %v663 = vpop.permute.xlu0 %662
      %664 = vrot.lane.b32.xlu0 %v420, 120
      %v665 = vpop.permute.xlu0 %664
      %666 = vrot.lane.b32.xlu0 %v421, 120
      %v667 = vpop.permute.xlu0 %666
      %668 = vrot.lane.b32.xlu0 %v419, 88
      %v669 = vpop.permute.xlu0 %668
      %670 = vrot.lane.b32.xlu0 %v420, 88
      %v671 = vpop.permute.xlu0 %670
      %672 = vrot.lane.b32.xlu0 %v421, 88
      %v673 = vpop.permute.xlu0 %672
      %v675 = vsel %vm431, %v663, 0
      %v678 = vsel %vm431, %v665, 0
      %v681 = vsel %vm431, %v667, 0
      %v684 = vsel %vm431, %v669, 0
      %v687 = vsel %vm431, %v671, 0
      %v690 = vsel %vm431, %v673, 0
      %692 = vmatprep.subr.bf16.mxu0 0
      %693 = vmatpush1.bf16.xpose.msra.mxu0 %v684
      %694 = vmatprep.subr.bf16.mxu0 0
      %695 = vmatpush1.bf16.xpose.msra.mxu0 %v687
      %696 = vmatprep.subr.bf16.mxu0 0
      %697 = vmatpush1.bf16.xpose.msra.mxu0 %v690
      %698 = vmatprep.subr.bf16.mxu0 0
      %699 = vmatpush1.bf16.xpose.msra.mxu0 0
      %700 = vmatprep.subr.bf16.mxu0 0
      %701 = vmatpush1.bf16.xpose.msra.mxu0 0
      %702 = vmatprep.subr.bf16.mxu0 0
      %703 = vmatpush1.bf16.xpose.msra.mxu0 0
      %704 = vmatprep.subr.bf16.mxu0 0
      %705 = vmatpush1.bf16.xpose.msra.mxu0 0
      %706 = vmatprep.subr.bf16.mxu0 0
      %707 = vmatpush1.bf16.xpose.msra.mxu0 0
      %708 = vmatprep.subr.bf16.mxu0 0
      %709 = vmatpush1.bf16.xpose.msra.mxu0 0
      %710 = vmatprep.subr.bf16.mxu0 0
      %711 = vmatpush1.bf16.xpose.msra.mxu0 0
      %712 = vmatprep.subr.bf16.mxu0 0
      %713 = vmatpush1.bf16.xpose.msra.mxu0 0
      %714 = vmatprep.subr.bf16.mxu0 0
      %715 = vmatpush1.bf16.xpose.msra.mxu0 0
      %716 = vmatprep.subr.bf16.mxu0 0
      %717 = vmatpush1.bf16.xpose.msra.mxu0 0
      %718 = vmatprep.subr.bf16.mxu0 0
      %719 = vmatpush1.bf16.xpose.msra.mxu0 0
      %720 = vmatprep.subr.bf16.mxu0 0
      %721 = vmatpush1.bf16.xpose.msra.mxu0 0
      %722 = vmatprep.subr.bf16.mxu0 0
      %723 = vmatpush1.bf16.xpose.msra.mxu0 0
      %724 = vmatprep.mubr.bf16.mxu0 0
      %725 = vmatmul.mubr.bf16.gmra.mrb[0].mxu0 %v675
      %v726 = vpop.f32.mrb[0].mxu0
      %v727 = vadd.f32 0.0, %v726
      %v728 = vpop.f32.mrb[0].mxu0
      %v729 = vpop.f32.mrb[0].mxu0
      %v730 = vadd.f32 0.0, %v729
      %v731 = vpop.f32.mrb[0].mxu0
      %732 = vmatprep.mubr.bf16.mxu0 0
      %733 = vmatmul.mubr.bf16.gmra.mrb[0].mxu0 %v678
      %v734 = vpop.f32.mrb[0].mxu0
      %v735 = vadd.f32 0.0, %v734
      %v736 = vpop.f32.mrb[0].mxu0
      %v737 = vpop.f32.mrb[0].mxu0
      %v738 = vadd.f32 0.0, %v737
      %v739 = vpop.f32.mrb[0].mxu0
      %740 = vmatprep.mubr.bf16.mxu0 0
      %741 = vmatmul.mubr.bf16.gmra.mrb[0].mxu0 %v681
      %v742 = vpop.f32.mrb[0].mxu0
      %v743 = vadd.f32 0.0, %v742
      %v744 = vpop.f32.mrb[0].mxu0
      %v745 = vpop.f32.mrb[0].mxu0
      %v746 = vadd.f32 0.0, %v745
      %v747 = vpop.f32.mrb[0].mxu0
      %748 = vdwg.mxu0
      %v749 = vmul.f32 %v727, 0.35355338
      %v750 = vmul.f32 %v730, 0.35355338
      %v751 = vmul.f32 %v735, 0.35355338
      %v752 = vmul.f32 %v738, 0.35355338
      %v753 = vmul.f32 %v743, 0.35355338
      %v754 = vmul.f32 %v746, 0.35355338
      %v755 = vsel %vm513, %v749, -inf
      %756 = vmax.xlane.f32.xlu0 %v755
      %v757 = vpop.xlane.xlu0 %756
      %v758 = vsel %vm513, %v750, -inf
      %759 = vmax.xlane.f32.xlu0 %v758
      %v760 = vpop.xlane.xlu0 %759
      %v761 = vsel %vm513, %v751, -inf
      %762 = vmax.xlane.f32.xlu0 %v761
      %v763 = vpop.xlane.xlu0 %762
      %v764 = vsel %vm513, %v752, -inf
      %765 = vmax.xlane.f32.xlu0 %v764
      %v766 = vpop.xlane.xlu0 %765
      %v767 = vsel %vm513, %v753, -inf
      %768 = vmax.xlane.f32.xlu0 %v767
      %v769 = vpop.xlane.xlu0 %768
      %v770 = vsel %vm513, %v754, -inf
      %771 = vmax.xlane.f32.xlu0 %v770
      %v772 = vpop.xlane.xlu0 %771
      %v773 = vsub.f32 %v749, %v757
      %v774 = vsub.f32 %v750, %v760
      %v775 = vsub.f32 %v751, %v763
      %v776 = vsub.f32 %v752, %v766
      %v777 = vsub.f32 %v753, %v769
      %v778 = vsub.f32 %v754, %v772
      %v779 = vmul.f32 %v773, 1.442695
      %v780 = vpow.pop %v779
      %v781 = vmul.f32 %v774, 1.442695
      %v782 = vpow.pop %v781
      %v783 = vmul.f32 %v775, 1.442695
      %v784 = vpow.pop %v783
      %v785 = vmul.f32 %v776, 1.442695
      %v786 = vpow.pop %v785
      %v787 = vmul.f32 %v777, 1.442695
      %v788 = vpow.pop %v787
      %v789 = vmul.f32 %v778, 1.442695
      %v790 = vpow.pop %v789
      %v791 = vsel %vm513, %v780, 0.0
      %792 = vadd.xlane.f32.xlu0 %v791
      %v793 = vpop.xlane.xlu0 %792
      %v794 = vsel %vm513, %v782, 0.0
      %795 = vadd.xlane.f32.xlu0 %v794
      %v796 = vpop.xlane.xlu0 %795
      %v797 = vsel %vm513, %v784, 0.0
      %798 = vadd.xlane.f32.xlu0 %v797
      %v799 = vpop.xlane.xlu0 %798
      %v800 = vsel %vm513, %v786, 0.0
      %801 = vadd.xlane.f32.xlu0 %v800
      %v802 = vpop.xlane.xlu0 %801
      %v803 = vsel %vm513, %v788, 0.0
      %804 = vadd.xlane.f32.xlu0 %v803
      %v805 = vpop.xlane.xlu0 %804
      %v806 = vsel %vm513, %v790, 0.0
      %807 = vadd.xlane.f32.xlu0 %v806
      %v808 = vpop.xlane.xlu0 %807
      %v809 = vrcp.pop %v793
      %v810 = vrcp.pop %v796
      %v811 = vrcp.pop %v799
      %v812 = vrcp.pop %v802
      %v813 = vrcp.pop %v805
      %v814 = vrcp.pop %v808
      %v815 = vmul.f32 %v780, %v809
      %v816 = vmul.f32 %v782, %v810
      %v817 = vmul.f32 %v784, %v811
      %v818 = vmul.f32 %v786, %v812
      %v819 = vmul.f32 %v788, %v813
      %v820 = vmul.f32 %v790, %v814
      %v821 = vpack.c.bf16 %v816, %v815
      %v822 = vpack.c.bf16 %v818, %v817
      %v823 = vpack.c.bf16 %v820, %v819
      %824 = vrot.lane.b32.xlu0 %v419, 56
      %v825 = vpop.permute.xlu0 %824
      %826 = vrot.lane.b32.xlu0 %v420, 56
      %v827 = vpop.permute.xlu0 %826
      %828 = vrot.lane.b32.xlu0 %v421, 56
      %v829 = vpop.permute.xlu0 %828
      %v834 = vsel %vm513, %v821, 0
      %v837 = vsel %vm513, %v822, 0
      %v840 = vsel %vm513, %v823, 0
      %842 = vmatprep.subr.bf16.mxu0 0
      %843 = vmatpush1.bf16.msra.mxu0 %v825
      %844 = vmatprep.subr.bf16.mxu0 0
      %845 = vmatpush1.bf16.msra.mxu0 %v827
      %846 = vmatprep.subr.bf16.mxu0 0
      %847 = vmatpush1.bf16.msra.mxu0 %v829
      %848 = vmatprep.subr.bf16.mxu0 0
      %849 = vmatpush1.bf16.msra.mxu0 0
      %850 = vmatprep.subr.bf16.mxu0 0
      %851 = vmatpush1.bf16.msra.mxu0 0
      %852 = vmatprep.subr.bf16.mxu0 0
      %853 = vmatpush1.bf16.msra.mxu0 0
      %854 = vmatprep.subr.bf16.mxu0 0
      %855 = vmatpush1.bf16.msra.mxu0 0
      %856 = vmatprep.subr.bf16.mxu0 0
      %857 = vmatpush1.bf16.msra.mxu0 0
      %858 = vmatprep.subr.bf16.mxu0 0
      %859 = vmatpush1.bf16.msra.mxu0 0
      %860 = vmatprep.subr.bf16.mxu0 0
      %861 = vmatpush1.bf16.msra.mxu0 0
      %862 = vmatprep.subr.bf16.mxu0 0
      %863 = vmatpush1.bf16.msra.mxu0 0
      %864 = vmatprep.subr.bf16.mxu0 0
      %865 = vmatpush1.bf16.msra.mxu0 0
      %866 = vmatprep.subr.bf16.mxu0 0
      %867 = vmatpush1.bf16.msra.mxu0 0
      %868 = vmatprep.subr.bf16.mxu0 0
      %869 = vmatpush1.bf16.msra.mxu0 0
      %870 = vmatprep.subr.bf16.mxu0 0
      %871 = vmatpush1.bf16.msra.mxu0 0
      %872 = vmatprep.subr.bf16.mxu0 0
      %873 = vmatpush1.bf16.msra.mxu0 0
      %874 = vmatprep.mubr.bf16.mxu0 0
      %875 = vmatmul.mubr.bf16.gmra.mrb[0].mxu0 %v834
      %v876 = vpop.f32.mrb[0].mxu0
      %v877 = vadd.f32 0.0, %v876
      %v878 = vpop.f32.mrb[0].mxu0
      %v879 = vpop.f32.mrb[0].mxu0
      %v880 = vadd.f32 0.0, %v879
      %v881 = vpop.f32.mrb[0].mxu0
      %882 = vmatprep.mubr.bf16.mxu0 0
      %883 = vmatmul.mubr.bf16.gmra.mrb[0].mxu0 %v837
      %v884 = vpop.f32.mrb[0].mxu0
      %v885 = vadd.f32 0.0, %v884
      %v886 = vpop.f32.mrb[0].mxu0
      %v887 = vpop.f32.mrb[0].mxu0
      %v888 = vadd.f32 0.0, %v887
      %v889 = vpop.f32.mrb[0].mxu0
      %890 = vmatprep.mubr.bf16.mxu0 0
      %891 = vmatmul.mubr.bf16.gmra.mrb[0].mxu0 %v840
      %v892 = vpop.f32.mrb[0].mxu0
      %v893 = vadd.f32 0.0, %v892
      %v894 = vpop.f32.mrb[0].mxu0
      %v895 = vpop.f32.mrb[0].mxu0
      %v896 = vadd.f32 0.0, %v895
      %v897 = vpop.f32.mrb[0].mxu0
      %898 = vdwg.mxu0
      %v899 = vpack.c.bf16 %v880, %v877
      %v900 = vpack.c.bf16 %v888, %v885
      %v901 = vpack.c.bf16 %v896, %v893
      %v902 = vld [vmem:[%s3 + $0x4] sm:$0xf]
      %v904 = vsel %vm431, %v899, 0
      %v907 = vsel %vm431, %v900, 0
      %v910 = vsel %vm431, %v901, 0
      %vm912 = vcmask 1043456
      %v914 = vsel %vm912, %v902, 0
      %916 = vmatprep.subr.bf16.mxu0 0
      %917 = vmatpush1.bf16.msra.mxu0 %v914
      %918 = vmatprep.subr.bf16.mxu0 0
      %919 = vmatpush1.bf16.msra.mxu0 0
      %920 = vmatprep.subr.bf16.mxu0 0
      %921 = vmatpush1.bf16.msra.mxu0 0
      %922 = vmatprep.subr.bf16.mxu0 0
      %923 = vmatpush1.bf16.msra.mxu0 0
      %924 = vmatprep.subr.bf16.mxu0 0
      %925 = vmatpush1.bf16.msra.mxu0 0
      %926 = vmatprep.subr.bf16.mxu0 0
      %927 = vmatpush1.bf16.msra.mxu0 0
      %928 = vmatprep.subr.bf16.mxu0 0
      %929 = vmatpush1.bf16.msra.mxu0 0
      %930 = vmatprep.subr.bf16.mxu0 0
      %931 = vmatpush1.bf16.msra.mxu0 0
      %932 = vmatprep.subr.bf16.mxu0 0
      %933 = vmatpush1.bf16.msra.mxu0 0
      %934 = vmatprep.subr.bf16.mxu0 0
      %935 = vmatpush1.bf16.msra.mxu0 0
      %936 = vmatprep.subr.bf16.mxu0 0
      %937 = vmatpush1.bf16.msra.mxu0 0
      %938 = vmatprep.subr.bf16.mxu0 0
      %939 = vmatpush1.bf16.msra.mxu0 0
      %940 = vmatprep.subr.bf16.mxu0 0
      %941 = vmatpush1.bf16.msra.mxu0 0
      %942 = vmatprep.subr.bf16.mxu0 0
      %943 = vmatpush1.bf16.msra.mxu0 0
      %944 = vmatprep.subr.bf16.mxu0 0
      %945 = vmatpush1.bf16.msra.mxu0 0
      %946 = vmatprep.subr.bf16.mxu0 0
      %947 = vmatpush1.bf16.msra.mxu0 0
      %948 = vmatprep.mubr.bf16.mxu0 0
      %949 = vmatmul.mubr.bf16.gmra.mrb[0].mxu0 %v904
      %v950 = vpop.f32.mrb[0].mxu0
      %v951 = vadd.f32 0.0, %v950
      %v952 = vpop.f32.mrb[0].mxu0
      %v953 = vpop.f32.mrb[0].mxu0
      %v954 = vadd.f32 0.0, %v953
      %v955 = vpop.f32.mrb[0].mxu0
      %956 = vmatprep.mubr.bf16.mxu0 0
      %957 = vmatmul.mubr.bf16.gmra.mrb[0].mxu0 %v907
      %v958 = vpop.f32.mrb[0].mxu0
      %v959 = vadd.f32 0.0, %v958
      %v960 = vpop.f32.mrb[0].mxu0
      %v961 = vpop.f32.mrb[0].mxu0
      %v962 = vadd.f32 0.0, %v961
      %v963 = vpop.f32.mrb[0].mxu0
      %964 = vmatprep.mubr.bf16.mxu0 0
      %965 = vmatmul.mubr.bf16.gmra.mrb[0].mxu0 %v910
      %v966 = vpop.f32.mrb[0].mxu0
      %v967 = vadd.f32 0.0, %v966
      %v968 = vpop.f32.mrb[0].mxu0
      %v969 = vpop.f32.mrb[0].mxu0
      %v970 = vadd.f32 0.0, %v969
      %v971 = vpop.f32.mrb[0].mxu0
      %972 = vdwg.mxu0
      %v974 = vsel %vm431, %v658, 0
      %v977 = vsel %vm431, %v659, 0
      %v980 = vsel %vm431, %v660, 0
      %v983 = vsel %vm912, %v661, 0
      %985 = vmatprep.subr.bf16.mxu0 0
      %986 = vmatpush1.bf16.msra.mxu0 %v983
      %987 = vmatprep.subr.bf16.mxu0 0
      %988 = vmatpush1.bf16.msra.mxu0 0
      %989 = vmatprep.subr.bf16.mxu0 0
      %990 = vmatpush1.bf16.msra.mxu0 0
      %991 = vmatprep.subr.bf16.mxu0 0
      %992 = vmatpush1.bf16.msra.mxu0 0
      %993 = vmatprep.subr.bf16.mxu0 0
      %994 = vmatpush1.bf16.msra.mxu0 0
      %995 = vmatprep.subr.bf16.mxu0 0
      %996 = vmatpush1.bf16.msra.mxu0 0
      %997 = vmatprep.subr.bf16.mxu0 0
      %998 = vmatpush1.bf16.msra.mxu0 0
      %999 = vmatprep.subr.bf16.mxu0 0
      %1000 = vmatpush1.bf16.msra.mxu0 0
      %1001 = vmatprep.subr.bf16.mxu0 0
      %1002 = vmatpush1.bf16.msra.mxu0 0
      %1003 = vmatprep.subr.bf16.mxu0 0
      %1004 = vmatpush1.bf16.msra.mxu0 0
      %1005 = vmatprep.subr.bf16.mxu0 0
      %1006 = vmatpush1.bf16.msra.mxu0 0
      %1007 = vmatprep.subr.bf16.mxu0 0
      %1008 = vmatpush1.bf16.msra.mxu0 0
      %1009 = vmatprep.subr.bf16.mxu0 0
      %1010 = vmatpush1.bf16.msra.mxu0 0
      %1011 = vmatprep.subr.bf16.mxu0 0
      %1012 = vmatpush1.bf16.msra.mxu0 0
      %1013 = vmatprep.subr.bf16.mxu0 0
      %1014 = vmatpush1.bf16.msra.mxu0 0
      %1015 = vmatprep.subr.bf16.mxu0 0
      %1016 = vmatpush1.bf16.msra.mxu0 0
      %1017 = vmatprep.mubr.bf16.mxu0 0
      %1018 = vmatmul.mubr.bf16.gmra.mrb[0].mxu0 %v974
      %v1019 = vpop.f32.mrb[0].mxu0
      %v1020 = vadd.f32 %v951, %v1019
      %v1021 = vpop.f32.mrb[0].mxu0
      %v1022 = vpop.f32.mrb[0].mxu0
      %v1023 = vadd.f32 %v954, %v1022
      %v1024 = vpop.f32.mrb[0].mxu0
      %1025 = vmatprep.mubr.bf16.mxu0 0
      %1026 = vmatmul.mubr.bf16.gmra.mrb[0].mxu0 %v977
      %v1027 = vpop.f32.mrb[0].mxu0
      %v1028 = vadd.f32 %v959, %v1027
      %v1029 = vpop.f32.mrb[0].mxu0
      %v1030 = vpop.f32.mrb[0].mxu0
      %v1031 = vadd.f32 %v962, %v1030
      %v1032 = vpop.f32.mrb[0].mxu0
      %1033 = vmatprep.mubr.bf16.mxu0 0
      %1034 = vmatmul.mubr.bf16.gmra.mrb[0].mxu0 %v980
      %v1035 = vpop.f32.mrb[0].mxu0
      %v1036 = vadd.f32 %v967, %v1035
      %v1037 = vpop.f32.mrb[0].mxu0
      %v1038 = vpop.f32.mrb[0].mxu0
      %v1039 = vadd.f32 %v970, %v1038
      %v1040 = vpop.f32.mrb[0].mxu0
      %1041 = vdwg.mxu0
      %1042 = vrot.lane.b32.xlu0 %v419, 112
      %v1043 = vpop.permute.xlu0 %1042
      %1044 = vrot.lane.b32.xlu0 %v420, 112
      %v1045 = vpop.permute.xlu0 %1044
      %1046 = vrot.lane.b32.xlu0 %v421, 112
      %v1047 = vpop.permute.xlu0 %1046
      %1048 = vrot.lane.b32.xlu0 %v419, 80
      %v1049 = vpop.permute.xlu0 %1048
      %1050 = vrot.lane.b32.xlu0 %v420, 80
      %v1051 = vpop.permute.xlu0 %1050
      %1052 = vrot.lane.b32.xlu0 %v421, 80
      %v1053 = vpop.permute.xlu0 %1052
      %v1055 = vsel %vm431, %v1043, 0
      %v1058 = vsel %vm431, %v1045, 0
      %v1061 = vsel %vm431, %v1047, 0
      %v1064 = vsel %vm431, %v1049, 0
      %v1067 = vsel %vm431, %v1051, 0
      %v1070 = vsel %vm431, %v1053, 0
      %1072 = vmatprep.subr.bf16.mxu0 0
      %1073 = vmatpush1.bf16.xpose.msra.mxu0 %v1064
      %1074 = vmatprep.subr.bf16.mxu0 0
      %1075 = vmatpush1.bf16.xpose.msra.mxu0 %v1067
      %1076 = vmatprep.subr.bf16.mxu0 0
      %1077 = vmatpush1.bf16.xpose.msra.mxu0 %v1070
      %1078 = vmatprep.subr.bf16.mxu0 0
      %1079 = vmatpush1.bf16.xpose.msra.mxu0 0
      %1080 = vmatprep.subr.bf16.mxu0 0
      %1081 = vmatpush1.bf16.xpose.msra.mxu0 0
      %1082 = vmatprep.subr.bf16.mxu0 0
      %1083 = vmatpush1.bf16.xpose.msra.mxu0 0
      %1084 = vmatprep.subr.bf16.mxu0 0
      %1085 = vmatpush1.bf16.xpose.msra.mxu0 0
      %1086 = vmatprep.subr.bf16.mxu0 0
      %1087 = vmatpush1.bf16.xpose.msra.mxu0 0
      %1088 = vmatprep.subr.bf16.mxu0 0
      %1089 = vmatpush1.bf16.xpose.msra.mxu0 0
      %1090 = vmatprep.subr.bf16.mxu0 0
      %1091 = vmatpush1.bf16.xpose.msra.mxu0 0
      %1092 = vmatprep.subr.bf16.mxu0 0
      %1093 = vmatpush1.bf16.xpose.msra.mxu0 0
      %1094 = vmatprep.subr.bf16.mxu0 0
      %1095 = vmatpush1.bf16.xpose.msra.mxu0 0
      %1096 = vmatprep.subr.bf16.mxu0 0
      %1097 = vmatpush1.bf16.xpose.msra.mxu0 0
      %1098 = vmatprep.subr.bf16.mxu0 0
      %1099 = vmatpush1.bf16.xpose.msra.mxu0 0
      %1100 = vmatprep.subr.bf16.mxu0 0
      %1101 = vmatpush1.bf16.xpose.msra.mxu0 0
      %1102 = vmatprep.subr.bf16.mxu0 0
      %1103 = vmatpush1.bf16.xpose.msra.mxu0 0
      %1104 = vmatprep.mubr.bf16.mxu0 0
      %1105 = vmatmul.mubr.bf16.gmra.mrb[0].mxu0 %v1055
      %v1106 = vpop.f32.mrb[0].mxu0
      %v1107 = vadd.f32 0.0, %v1106
      %v1108 = vpop.f32.mrb[0].mxu0
      %v1109 = vpop.f32.mrb[0].mxu0
      %v1110 = vadd.f32 0.0, %v1109
      %v1111 = vpop.f32.mrb[0].mxu0
      %1112 = vmatprep.mubr.bf16.mxu0 0
      %1113 = vmatmul.mubr.bf16.gmra.mrb[0].mxu0 %v1058
      %v1114 = vpop.f32.mrb[0].mxu0
      %v1115 = vadd.f32 0.0, %v1114
      %v1116 = vpop.f32.mrb[0].mxu0
      %v1117 = vpop.f32.mrb[0].mxu0
      %v1118 = vadd.f32 0.0, %v1117
      %v1119 = vpop.f32.mrb[0].mxu0
      %1120 = vmatprep.mubr.bf16.mxu0 0
      %1121 = vmatmul.mubr.bf16.gmra.mrb[0].mxu0 %v1061
      %v1122 = vpop.f32.mrb[0].mxu0
      %v1123 = vadd.f32 0.0, %v1122
      %v1124 = vpop.f32.mrb[0].mxu0
      %v1125 = vpop.f32.mrb[0].mxu0
      %v1126 = vadd.f32 0.0, %v1125
      %v1127 = vpop.f32.mrb[0].mxu0
      %1128 = vdwg.mxu0
      %v1129 = vmul.f32 %v1107, 0.35355338
      %v1130 = vmul.f32 %v1110, 0.35355338
      %v1131 = vmul.f32 %v1115, 0.35355338
      %v1132 = vmul.f32 %v1118, 0.35355338
      %v1133 = vmul.f32 %v1123, 0.35355338
      %v1134 = vmul.f32 %v1126, 0.35355338
      %v1135 = vsel %vm513, %v1129, -inf
      %1136 = vmax.xlane.f32.xlu0 %v1135
      %v1137 = vpop.xlane.xlu0 %1136
      %v1138 = vsel %vm513, %v1130, -inf
      %1139 = vmax.xlane.f32.xlu0 %v1138
      %v1140 = vpop.xlane.xlu0 %1139
      %v1141 = vsel %vm513, %v1131, -inf
      %1142 = vmax.xlane.f32.xlu0 %v1141
      %v1143 = vpop.xlane.xlu0 %1142
      %v1144 = vsel %vm513, %v1132, -inf
      %1145 = vmax.xlane.f32.xlu0 %v1144
      %v1146 = vpop.xlane.xlu0 %1145
      %v1147 = vsel %vm513, %v1133, -inf
      %1148 = vmax.xlane.f32.xlu0 %v1147
      %v1149 = vpop.xlane.xlu0 %1148
      %v1150 = vsel %vm513, %v1134, -inf
      %1151 = vmax.xlane.f32.xlu0 %v1150
      %v1152 = vpop.xlane.xlu0 %1151
      %v1153 = vsub.f32 %v1129, %v1137
      %v1154 = vsub.f32 %v1130, %v1140
      %v1155 = vsub.f32 %v1131, %v1143
      %v1156 = vsub.f32 %v1132, %v1146
      %v1157 = vsub.f32 %v1133, %v1149
      %v1158 = vsub.f32 %v1134, %v1152
      %v1159 = vmul.f32 %v1153, 1.442695
      %v1160 = vpow.pop %v1159
      %v1161 = vmul.f32 %v1154, 1.442695
      %v1162 = vpow.pop %v1161
      %v1163 = vmul.f32 %v1155, 1.442695
      %v1164 = vpow.pop %v1163
      %v1165 = vmul.f32 %v1156, 1.442695
      %v1166 = vpow.pop %v1165
      %v1167 = vmul.f32 %v1157, 1.442695
      %v1168 = vpow.pop %v1167
      %v1169 = vmul.f32 %v1158, 1.442695
      %v1170 = vpow.pop %v1169
      %v1171 = vsel %vm513, %v1160, 0.0
      %1172 = vadd.xlane.f32.xlu0 %v1171
      %v1173 = vpop.xlane.xlu0 %1172
      %v1174 = vsel %vm513, %v1162, 0.0
      %1175 = vadd.xlane.f32.xlu0 %v1174
      %v1176 = vpop.xlane.xlu0 %1175
      %v1177 = vsel %vm513, %v1164, 0.0
      %1178 = vadd.xlane.f32.xlu0 %v1177
      %v1179 = vpop.xlane.xlu0 %1178
      %v1180 = vsel %vm513, %v1166, 0.0
      %1181 = vadd.xlane.f32.xlu0 %v1180
      %v1182 = vpop.xlane.xlu0 %1181
      %v1183 = vsel %vm513, %v1168, 0.0
      %1184 = vadd.xlane.f32.xlu0 %v1183
      %v1185 = vpop.xlane.xlu0 %1184
      %v1186 = vsel %vm513, %v1170, 0.0
      %1187 = vadd.xlane.f32.xlu0 %v1186
      %v1188 = vpop.xlane.xlu0 %1187
      %v1189 = vrcp.pop %v1173
      %v1190 = vrcp.pop %v1176
      %v1191 = vrcp.pop %v1179
      %v1192 = vrcp.pop %v1182
      %v1193 = vrcp.pop %v1185
      %v1194 = vrcp.pop %v1188
      %v1195 = vmul.f32 %v1160, %v1189
      %v1196 = vmul.f32 %v1162, %v1190
      %v1197 = vmul.f32 %v1164, %v1191
      %v1198 = vmul.f32 %v1166, %v1192
      %v1199 = vmul.f32 %v1168, %v1193
      %v1200 = vmul.f32 %v1170, %v1194
      %v1201 = vpack.c.bf16 %v1196, %v1195
      %v1202 = vpack.c.bf16 %v1198, %v1197
      %v1203 = vpack.c.bf16 %v1200, %v1199
      %1204 = vrot.lane.b32.xlu0 %v419, 48
      %v1205 = vpop.permute.xlu0 %1204
      %1206 = vrot.lane.b32.xlu0 %v420, 48
      %v1207 = vpop.permute.xlu0 %1206
      %1208 = vrot.lane.b32.xlu0 %v421, 48
      %v1209 = vpop.permute.xlu0 %1208
      %v1214 = vsel %vm513, %v1201, 0
      %v1217 = vsel %vm513, %v1202, 0
      %v1220 = vsel %vm513, %v1203, 0
      %1222 = vmatprep.subr.bf16.mxu0 0
      %1223 = vmatpush1.bf16.msra.mxu0 %v1205
      %1224 = vmatprep.subr.bf16.mxu0 0
      %1225 = vmatpush1.bf16.msra.mxu0 %v1207
      %1226 = vmatprep.subr.bf16.mxu0 0
      %1227 = vmatpush1.bf16.msra.mxu0 %v1209
      %1228 = vmatprep.subr.bf16.mxu0 0
      %1229 = vmatpush1.bf16.msra.mxu0 0
      %1230 = vmatprep.subr.bf16.mxu0 0
      %1231 = vmatpush1.bf16.msra.mxu0 0
      %1232 = vmatprep.subr.bf16.mxu0 0
      %1233 = vmatpush1.bf16.msra.mxu0 0
      %1234 = vmatprep.subr.bf16.mxu0 0
      %1235 = vmatpush1.bf16.msra.mxu0 0
      %1236 = vmatprep.subr.bf16.mxu0 0
      %1237 = vmatpush1.bf16.msra.mxu0 0
      %1238 = vmatprep.subr.bf16.mxu0 0
      %1239 = vmatpush1.bf16.msra.mxu0 0
      %1240 = vmatprep.subr.bf16.mxu0 0
      %1241 = vmatpush1.bf16.msra.mxu0 0
      %1242 = vmatprep.subr.bf16.mxu0 0
      %1243 = vmatpush1.bf16.msra.mxu0 0
      %1244 = vmatprep.subr.bf16.mxu0 0
      %1245 = vmatpush1.bf16.msra.mxu0 0
      %1246 = vmatprep.subr.bf16.mxu0 0
      %1247 = vmatpush1.bf16.msra.mxu0 0
      %1248 = vmatprep.subr.bf16.mxu0 0
      %1249 = vmatpush1.bf16.msra.mxu0 0
      %1250 = vmatprep.subr.bf16.mxu0 0
      %1251 = vmatpush1.bf16.msra.mxu0 0
      %1252 = vmatprep.subr.bf16.mxu0 0
      %1253 = vmatpush1.bf16.msra.mxu0 0
      %1254 = vmatprep.mubr.bf16.mxu0 0
      %1255 = vmatmul.mubr.bf16.gmra.mrb[0].mxu0 %v1214
      %v1256 = vpop.f32.mrb[0].mxu0
      %v1257 = vadd.f32 0.0, %v1256
      %v1258 = vpop.f32.mrb[0].mxu0
      %v1259 = vpop.f32.mrb[0].mxu0
      %v1260 = vadd.f32 0.0, %v1259
      %v1261 = vpop.f32.mrb[0].mxu0
      %1262 = vmatprep.mubr.bf16.mxu0 0
      %1263 = vmatmul.mubr.bf16.gmra.mrb[0].mxu0 %v1217
      %v1264 = vpop.f32.mrb[0].mxu0
      %v1265 = vadd.f32 0.0, %v1264
      %v1266 = vpop.f32.mrb[0].mxu0
      %v1267 = vpop.f32.mrb[0].mxu0
      %v1268 = vadd.f32 0.0, %v1267
      %v1269 = vpop.f32.mrb[0].mxu0
      %1270 = vmatprep.mubr.bf16.mxu0 0
      %1271 = vmatmul.mubr.bf16.gmra.mrb[0].mxu0 %v1220
      %v1272 = vpop.f32.mrb[0].mxu0
      %v1273 = vadd.f32 0.0, %v1272
      %v1274 = vpop.f32.mrb[0].mxu0
      %v1275 = vpop.f32.mrb[0].mxu0
      %v1276 = vadd.f32 0.0, %v1275
      %v1277 = vpop.f32.mrb[0].mxu0
      %1278 = vdwg.mxu0
      %v1279 = vpack.c.bf16 %v1260, %v1257
      %v1280 = vpack.c.bf16 %v1268, %v1265
      %v1281 = vpack.c.bf16 %v1276, %v1273
      %v1282 = vld [vmem:[%s3 + $0x8] sm:$0xf]
      %v1284 = vsel %vm431, %v1279, 0
      %v1287 = vsel %vm431, %v1280, 0
      %v1290 = vsel %vm431, %v1281, 0
      %v1293 = vsel %vm912, %v1282, 0
      %1295 = vmatprep.subr.bf16.mxu0 0
      %1296 = vmatpush1.bf16.msra.mxu0 %v1293
      %1297 = vmatprep.subr.bf16.mxu0 0
      %1298 = vmatpush1.bf16.msra.mxu0 0
      %1299 = vmatprep.subr.bf16.mxu0 0
      %1300 = vmatpush1.bf16.msra.mxu0 0
      %1301 = vmatprep.subr.bf16.mxu0 0
      %1302 = vmatpush1.bf16.msra.mxu0 0
      %1303 = vmatprep.subr.bf16.mxu0 0
      %1304 = vmatpush1.bf16.msra.mxu0 0
      %1305 = vmatprep.subr.bf16.mxu0 0
      %1306 = vmatpush1.bf16.msra.mxu0 0
      %1307 = vmatprep.subr.bf16.mxu0 0
      %1308 = vmatpush1.bf16.msra.mxu0 0
      %1309 = vmatprep.subr.bf16.mxu0 0
      %1310 = vmatpush1.bf16.msra.mxu0 0
      %1311 = vmatprep.subr.bf16.mxu0 0
      %1312 = vmatpush1.bf16.msra.mxu0 0
      %1313 = vmatprep.subr.bf16.mxu0 0
      %1314 = vmatpush1.bf16.msra.mxu0 0
      %1315 = vmatprep.subr.bf16.mxu0 0
      %1316 = vmatpush1.bf16.msra.mxu0 0
      %1317 = vmatprep.subr.bf16.mxu0 0
      %1318 = vmatpush1.bf16.msra.mxu0 0
      %1319 = vmatprep.subr.bf16.mxu0 0
      %1320 = vmatpush1.bf16.msra.mxu0 0
      %1321 = vmatprep.subr.bf16.mxu0 0
      %1322 = vmatpush1.bf16.msra.mxu0 0
      %1323 = vmatprep.subr.bf16.mxu0 0
      %1324 = vmatpush1.bf16.msra.mxu0 0
      %1325 = vmatprep.subr.bf16.mxu0 0
      %1326 = vmatpush1.bf16.msra.mxu0 0
      %1327 = vmatprep.mubr.bf16.mxu0 0
      %1328 = vmatmul.mubr.bf16.gmra.mrb[0].mxu0 %v1284
      %v1329 = vpop.f32.mrb[0].mxu0
      %v1330 = vadd.f32 0.0, %v1329
      %v1331 = vpop.f32.mrb[0].mxu0
      %v1332 = vpop.f32.mrb[0].mxu0
      %v1333 = vadd.f32 0.0, %v1332
      %v1334 = vpop.f32.mrb[0].mxu0
      %1335 = vmatprep.mubr.bf16.mxu0 0
      %1336 = vmatmul.mubr.bf16.gmra.mrb[0].mxu0 %v1287
      %v1337 = vpop.f32.mrb[0].mxu0
      %v1338 = vadd.f32 0.0, %v1337
      %v1339 = vpop.f32.mrb[0].mxu0
      %v1340 = vpop.f32.mrb[0].mxu0
      %v1341 = vadd.f32 0.0, %v1340
      %v1342 = vpop.f32.mrb[0].mxu0
      %1343 = vmatprep.mubr.bf16.mxu0 0
      %1344 = vmatmul.mubr.bf16.gmra.mrb[0].mxu0 %v1290
      %v1345 = vpop.f32.mrb[0].mxu0
      %v1346 = vadd.f32 0.0, %v1345
      %v1347 = vpop.f32.mrb[0].mxu0
      %v1348 = vpop.f32.mrb[0].mxu0
      %v1349 = vadd.f32 0.0, %v1348
      %v1350 = vpop.f32.mrb[0].mxu0
      %1351 = vdwg.mxu0
      %v1352 = vadd.f32 %v1020, %v1330
      %v1353 = vadd.f32 %v1023, %v1333
      %v1354 = vadd.f32 %v1028, %v1338
      %v1355 = vadd.f32 %v1031, %v1341
      %v1356 = vadd.f32 %v1036, %v1346
      %v1357 = vadd.f32 %v1039, %v1349
      %1358 = vrot.lane.b32.xlu0 %v419, 104
      %v1359 = vpop.permute.xlu0 %1358
      %1360 = vrot.lane.b32.xlu0 %v420, 104
      %v1361 = vpop.permute.xlu0 %1360
      %1362 = vrot.lane.b32.xlu0 %v421, 104
      %v1363 = vpop.permute.xlu0 %1362
      %1364 = vrot.lane.b32.xlu0 %v419, 72
      %v1365 = vpop.permute.xlu0 %1364
      %1366 = vrot.lane.b32.xlu0 %v420, 72
      %v1367 = vpop.permute.xlu0 %1366
      %1368 = vrot.lane.b32.xlu0 %v421, 72
      %v1369 = vpop.permute.xlu0 %1368
      %v1371 = vsel %vm431, %v1359, 0
      %v1374 = vsel %vm431, %v1361, 0
      %v1377 = vsel %vm431, %v1363, 0
      %v1380 = vsel %vm431, %v1365, 0
      %v1383 = vsel %vm431, %v1367, 0
      %v1386 = vsel %vm431, %v1369, 0
      %1388 = vmatprep.subr.bf16.mxu0 0
      %1389 = vmatpush1.bf16.xpose.msra.mxu0 %v1380
      %1390 = vmatprep.subr.bf16.mxu0 0
      %1391 = vmatpush1.bf16.xpose.msra.mxu0 %v1383
      %1392 = vmatprep.subr.bf16.mxu0 0
      %1393 = vmatpush1.bf16.xpose.msra.mxu0 %v1386
      %1394 = vmatprep.subr.bf16.mxu0 0
      %1395 = vmatpush1.bf16.xpose.msra.mxu0 0
      %1396 = vmatprep.subr.bf16.mxu0 0
      %1397 = vmatpush1.bf16.xpose.msra.mxu0 0
      %1398 = vmatprep.subr.bf16.mxu0 0
      %1399 = vmatpush1.bf16.xpose.msra.mxu0 0
      %1400 = vmatprep.subr.bf16.mxu0 0
      %1401 = vmatpush1.bf16.xpose.msra.mxu0 0
      %1402 = vmatprep.subr.bf16.mxu0 0
      %1403 = vmatpush1.bf16.xpose.msra.mxu0 0
      %1404 = vmatprep.subr.bf16.mxu0 0
      %1405 = vmatpush1.bf16.xpose.msra.mxu0 0
      %1406 = vmatprep.subr.bf16.mxu0 0
      %1407 = vmatpush1.bf16.xpose.msra.mxu0 0
      %1408 = vmatprep.subr.bf16.mxu0 0
      %1409 = vmatpush1.bf16.xpose.msra.mxu0 0
      %1410 = vmatprep.subr.bf16.mxu0 0
      %1411 = vmatpush1.bf16.xpose.msra.mxu0 0
      %1412 = vmatprep.subr.bf16.mxu0 0
      %1413 = vmatpush1.bf16.xpose.msra.mxu0 0
      %1414 = vmatprep.subr.bf16.mxu0 0
      %1415 = vmatpush1.bf16.xpose.msra.mxu0 0
      %1416 = vmatprep.subr.bf16.mxu0 0
      %1417 = vmatpush1.bf16.xpose.msra.mxu0 0
      %1418 = vmatprep.subr.bf16.mxu0 0
      %1419 = vmatpush1.bf16.xpose.msra.mxu0 0
      %1420 = vmatprep.mubr.bf16.mxu0 0
      %1421 = vmatmul.mubr.bf16.gmra.mrb[0].mxu0 %v1371
      %v1422 = vpop.f32.mrb[0].mxu0
      %v1423 = vadd.f32 0.0, %v1422
      %v1424 = vpop.f32.mrb[0].mxu0
      %v1425 = vpop.f32.mrb[0].mxu0
      %v1426 = vadd.f32 0.0, %v1425
      %v1427 = vpop.f32.mrb[0].mxu0
      %1428 = vmatprep.mubr.bf16.mxu0 0
      %1429 = vmatmul.mubr.bf16.gmra.mrb[0].mxu0 %v1374
      %v1430 = vpop.f32.mrb[0].mxu0
      %v1431 = vadd.f32 0.0, %v1430
      %v1432 = vpop.f32.mrb[0].mxu0
      %v1433 = vpop.f32.mrb[0].mxu0
      %v1434 = vadd.f32 0.0, %v1433
      %v1435 = vpop.f32.mrb[0].mxu0
      %1436 = vmatprep.mubr.bf16.mxu0 0
      %1437 = vmatmul.mubr.bf16.gmra.mrb[0].mxu0 %v1377
      %v1438 = vpop.f32.mrb[0].mxu0
      %v1439 = vadd.f32 0.0, %v1438
      %v1440 = vpop.f32.mrb[0].mxu0
      %v1441 = vpop.f32.mrb[0].mxu0
      %v1442 = vadd.f32 0.0, %v1441
      %v1443 = vpop.f32.mrb[0].mxu0
      %1444 = vdwg.mxu0
      %v1445 = vmul.f32 %v1423, 0.35355338
      %v1446 = vmul.f32 %v1426, 0.35355338
      %v1447 = vmul.f32 %v1431, 0.35355338
      %v1448 = vmul.f32 %v1434, 0.35355338
      %v1449 = vmul.f32 %v1439, 0.35355338
      %v1450 = vmul.f32 %v1442, 0.35355338
      %v1451 = vsel %vm513, %v1445, -inf
      %1452 = vmax.xlane.f32.xlu0 %v1451
      %v1453 = vpop.xlane.xlu0 %1452
      %v1454 = vsel %vm513, %v1446, -inf
      %1455 = vmax.xlane.f32.xlu0 %v1454
      %v1456 = vpop.xlane.xlu0 %1455
      %v1457 = vsel %vm513, %v1447, -inf
      %1458 = vmax.xlane.f32.xlu0 %v1457
      %v1459 = vpop.xlane.xlu0 %1458
      %v1460 = vsel %vm513, %v1448, -inf
      %1461 = vmax.xlane.f32.xlu0 %v1460
      %v1462 = vpop.xlane.xlu0 %1461
      %v1463 = vsel %vm513, %v1449, -inf
      %1464 = vmax.xlane.f32.xlu0 %v1463
      %v1465 = vpop.xlane.xlu0 %1464
      %v1466 = vsel %vm513, %v1450, -inf
      %1467 = vmax.xlane.f32.xlu0 %v1466
      %v1468 = vpop.xlane.xlu0 %1467
      %v1469 = vsub.f32 %v1445, %v1453
      %v1470 = vsub.f32 %v1446, %v1456
      %v1471 = vsub.f32 %v1447, %v1459
      %v1472 = vsub.f32 %v1448, %v1462
      %v1473 = vsub.f32 %v1449, %v1465
      %v1474 = vsub.f32 %v1450, %v1468
      %v1475 = vmul.f32 %v1469, 1.442695
      %v1476 = vpow.pop %v1475
      %v1477 = vmul.f32 %v1470, 1.442695
      %v1478 = vpow.pop %v1477
      %v1479 = vmul.f32 %v1471, 1.442695
      %v1480 = vpow.pop %v1479
      %v1481 = vmul.f32 %v1472, 1.442695
      %v1482 = vpow.pop %v1481
      %v1483 = vmul.f32 %v1473, 1.442695
      %v1484 = vpow.pop %v1483
      %v1485 = vmul.f32 %v1474, 1.442695
      %v1486 = vpow.pop %v1485
      %v1487 = vsel %vm513, %v1476, 0.0
      %1488 = vadd.xlane.f32.xlu0 %v1487
      %v1489 = vpop.xlane.xlu0 %1488
      %v1490 = vsel %vm513, %v1478, 0.0
      %1491 = vadd.xlane.f32.xlu0 %v1490
      %v1492 = vpop.xlane.xlu0 %1491
      %v1493 = vsel %vm513, %v1480, 0.0
      %1494 = vadd.xlane.f32.xlu0 %v1493
      %v1495 = vpop.xlane.xlu0 %1494
      %v1496 = vsel %vm513, %v1482, 0.0
      %1497 = vadd.xlane.f32.xlu0 %v1496
      %v1498 = vpop.xlane.xlu0 %1497
      %v1499 = vsel %vm513, %v1484, 0.0
      %1500 = vadd.xlane.f32.xlu0 %v1499
      %v1501 = vpop.xlane.xlu0 %1500
      %v1502 = vsel %vm513, %v1486, 0.0
      %1503 = vadd.xlane.f32.xlu0 %v1502
      %v1504 = vpop.xlane.xlu0 %1503
      %v1505 = vrcp.pop %v1489
      %v1506 = vrcp.pop %v1492
      %v1507 = vrcp.pop %v1495
      %v1508 = vrcp.pop %v1498
      %v1509 = vrcp.pop %v1501
      %v1510 = vrcp.pop %v1504
      %v1511 = vmul.f32 %v1476, %v1505
      %v1512 = vmul.f32 %v1478, %v1506
      %v1513 = vmul.f32 %v1480, %v1507
      %v1514 = vmul.f32 %v1482, %v1508
      %v1515 = vmul.f32 %v1484, %v1509
      %v1516 = vmul.f32 %v1486, %v1510
      %v1517 = vpack.c.bf16 %v1512, %v1511
      %v1518 = vpack.c.bf16 %v1514, %v1513
      %v1519 = vpack.c.bf16 %v1516, %v1515
      %1520 = vrot.lane.b32.xlu0 %v419, 40
      %v1521 = vpop.permute.xlu0 %1520
      %1522 = vrot.lane.b32.xlu0 %v420, 40
      %v1523 = vpop.permute.xlu0 %1522
      %1524 = vrot.lane.b32.xlu0 %v421, 40
      %v1525 = vpop.permute.xlu0 %1524
      %v1530 = vsel %vm513, %v1517, 0
      %v1533 = vsel %vm513, %v1518, 0
      %v1536 = vsel %vm513, %v1519, 0
      %1538 = vmatprep.subr.bf16.mxu0 0
      %1539 = vmatpush1.bf16.msra.mxu0 %v1521
      %1540 = vmatprep.subr.bf16.mxu0 0
      %1541 = vmatpush1.bf16.msra.mxu0 %v1523
      %1542 = vmatprep.subr.bf16.mxu0 0
      %1543 = vmatpush1.bf16.msra.mxu0 %v1525
      %1544 = vmatprep.subr.bf16.mxu0 0
      %1545 = vmatpush1.bf16.msra.mxu0 0
      %1546 = vmatprep.subr.bf16.mxu0 0
      %1547 = vmatpush1.bf16.msra.mxu0 0
      %1548 = vmatprep.subr.bf16.mxu0 0
      %1549 = vmatpush1.bf16.msra.mxu0 0
      %1550 = vmatprep.subr.bf16.mxu0 0
      %1551 = vmatpush1.bf16.msra.mxu0 0
      %1552 = vmatprep.subr.bf16.mxu0 0
      %1553 = vmatpush1.bf16.msra.mxu0 0
      %1554 = vmatprep.subr.bf16.mxu0 0
      %1555 = vmatpush1.bf16.msra.mxu0 0
      %1556 = vmatprep.subr.bf16.mxu0 0
      %1557 = vmatpush1.bf16.msra.mxu0 0
      %1558 = vmatprep.subr.bf16.mxu0 0
      %1559 = vmatpush1.bf16.msra.mxu0 0
      %1560 = vmatprep.subr.bf16.mxu0 0
      %1561 = vmatpush1.bf16.msra.mxu0 0
      %1562 = vmatprep.subr.bf16.mxu0 0
      %1563 = vmatpush1.bf16.msra.mxu0 0
      %1564 = vmatprep.subr.bf16.mxu0 0
      %1565 = vmatpush1.bf16.msra.mxu0 0
      %1566 = vmatprep.subr.bf16.mxu0 0
      %1567 = vmatpush1.bf16.msra.mxu0 0
      %1568 = vmatprep.subr.bf16.mxu0 0
      %1569 = vmatpush1.bf16.msra.mxu0 0
      %1570 = vmatprep.mubr.bf16.mxu0 0
      %1571 = vmatmul.mubr.bf16.gmra.mrb[0].mxu0 %v1530
      %v1572 = vpop.f32.mrb[0].mxu0
      %v1573 = vadd.f32 0.0, %v1572
      %v1574 = vpop.f32.mrb[0].mxu0
      %v1575 = vpop.f32.mrb[0].mxu0
      %v1576 = vadd.f32 0.0, %v1575
      %v1577 = vpop.f32.mrb[0].mxu0
      %1578 = vmatprep.mubr.bf16.mxu0 0
      %1579 = vmatmul.mubr.bf16.gmra.mrb[0].mxu0 %v1533
      %v1580 = vpop.f32.mrb[0].mxu0
      %v1581 = vadd.f32 0.0, %v1580
      %v1582 = vpop.f32.mrb[0].mxu0
      %v1583 = vpop.f32.mrb[0].mxu0
      %v1584 = vadd.f32 0.0, %v1583
      %v1585 = vpop.f32.mrb[0].mxu0
      %1586 = vmatprep.mubr.bf16.mxu0 0
      %1587 = vmatmul.mubr.bf16.gmra.mrb[0].mxu0 %v1536
      %v1588 = vpop.f32.mrb[0].mxu0
      %v1589 = vadd.f32 0.0, %v1588
      %v1590 = vpop.f32.mrb[0].mxu0
      %v1591 = vpop.f32.mrb[0].mxu0
      %v1592 = vadd.f32 0.0, %v1591
      %v1593 = vpop.f32.mrb[0].mxu0
      %1594 = vdwg.mxu0
      %v1595 = vpack.c.bf16 %v1576, %v1573
      %v1596 = vpack.c.bf16 %v1584, %v1581
      %v1597 = vpack.c.bf16 %v1592, %v1589
      %v1598 = vld [vmem:[%s3 + $0xc] sm:$0xf]
      %v1600 = vsel %vm431, %v1595, 0
      %v1603 = vsel %vm431, %v1596, 0
      %v1606 = vsel %vm431, %v1597, 0
      %v1609 = vsel %vm912, %v1598, 0
      %1611 = vmatprep.subr.bf16.mxu0 0
      %1612 = vmatpush1.bf16.msra.mxu0 %v1609
      %1613 = vmatprep.subr.bf16.mxu0 0
      %1614 = vmatpush1.bf16.msra.mxu0 0
      %1615 = vmatprep.subr.bf16.mxu0 0
      %1616 = vmatpush1.bf16.msra.mxu0 0
      %1617 = vmatprep.subr.bf16.mxu0 0
      %1618 = vmatpush1.bf16.msra.mxu0 0
      %1619 = vmatprep.subr.bf16.mxu0 0
      %1620 = vmatpush1.bf16.msra.mxu0 0
      %1621 = vmatprep.subr.bf16.mxu0 0
      %1622 = vmatpush1.bf16.msra.mxu0 0
      %1623 = vmatprep.subr.bf16.mxu0 0
      %1624 = vmatpush1.bf16.msra.mxu0 0
      %1625 = vmatprep.subr.bf16.mxu0 0
      %1626 = vmatpush1.bf16.msra.mxu0 0
      %1627 = vmatprep.subr.bf16.mxu0 0
      %1628 = vmatpush1.bf16.msra.mxu0 0
      %1629 = vmatprep.subr.bf16.mxu0 0
      %1630 = vmatpush1.bf16.msra.mxu0 0
      %1631 = vmatprep.subr.bf16.mxu0 0
      %1632 = vmatpush1.bf16.msra.mxu0 0
      %1633 = vmatprep.subr.bf16.mxu0 0
      %1634 = vmatpush1.bf16.msra.mxu0 0
      %1635 = vmatprep.subr.bf16.mxu0 0
      %1636 = vmatpush1.bf16.msra.mxu0 0
      %1637 = vmatprep.subr.bf16.mxu0 0
      %1638 = vmatpush1.bf16.msra.mxu0 0
      %1639 = vmatprep.subr.bf16.mxu0 0
      %1640 = vmatpush1.bf16.msra.mxu0 0
      %1641 = vmatprep.subr.bf16.mxu0 0
      %1642 = vmatpush1.bf16.msra.mxu0 0
      %1643 = vmatprep.mubr.bf16.mxu0 0
      %1644 = vmatmul.mubr.bf16.gmra.mrb[0].mxu0 %v1600
      %v1645 = vpop.f32.mrb[0].mxu0
      %v1646 = vadd.f32 0.0, %v1645
      %v1647 = vpop.f32.mrb[0].mxu0
      %v1648 = vpop.f32.mrb[0].mxu0
      %v1649 = vadd.f32 0.0, %v1648
      %v1650 = vpop.f32.mrb[0].mxu0
      %1651 = vmatprep.mubr.bf16.mxu0 0
      %1652 = vmatmul.mubr.bf16.gmra.mrb[0].mxu0 %v1603
      %v1653 = vpop.f32.mrb[0].mxu0
      %v1654 = vadd.f32 0.0, %v1653
      %v1655 = vpop.f32.mrb[0].mxu0
      %v1656 = vpop.f32.mrb[0].mxu0
      %v1657 = vadd.f32 0.0, %v1656
      %v1658 = vpop.f32.mrb[0].mxu0
      %1659 = vmatprep.mubr.bf16.mxu0 0
      %1660 = vmatmul.mubr.bf16.gmra.mrb[0].mxu0 %v1606
      %v1661 = vpop.f32.mrb[0].mxu0
      %v1662 = vadd.f32 0.0, %v1661
      %v1663 = vpop.f32.mrb[0].mxu0
      %v1664 = vpop.f32.mrb[0].mxu0
      %v1665 = vadd.f32 0.0, %v1664
      %v1666 = vpop.f32.mrb[0].mxu0
      %1667 = vdwg.mxu0
      %v1668 = vadd.f32 %v1352, %v1646
      %v1669 = vadd.f32 %v1353, %v1649
      %v1670 = vadd.f32 %v1354, %v1654
      %v1671 = vadd.f32 %v1355, %v1657
      %v1672 = vadd.f32 %v1356, %v1662
      %v1673 = vadd.f32 %v1357, %v1665
      %v1674 = vadd.f32 %v413, %v1668
      %v1675 = vadd.f32 %v414, %v1669
      %v1676 = vadd.f32 %v415, %v1670
      %v1677 = vadd.f32 %v416, %v1671
      %v1678 = vadd.f32 %v417, %v1672
      %v1679 = vadd.f32 %v418, %v1673
      %v1680 = vld [vmem:[%s4] sm:$0x1]
      %v1682 = vlaneseq
      %v1683 = vshrl.u32 %v1682, 7
      %v1684 = vsub.s32 0, %v1683
      %v1685 = vrot.slane %v1680, %v1684
      %v1687 = vadd.f32 %v1674, %v1685
      %v1688 = vadd.f32 %v1675, %v1685
      %v1689 = vadd.f32 %v1676, %v1685
      %v1690 = vadd.f32 %v1677, %v1685
      %v1691 = vadd.f32 %v1678, %v1685
      %v1692 = vadd.f32 %v1679, %v1685
      %vm1693 = vcmask 261120
      %v1694 = vsel %vm1693, %v1687, 0.0
      %1695 = vadd.xlane.f32.xlu0 %v1694
      %v1696 = vpop.xlane.xlu0 %1695
      %v1697 = vsel %vm1693, %v1688, 0.0
      %1698 = vadd.xlane.f32.xlu0 %v1697
      %v1699 = vpop.xlane.xlu0 %1698
      %v1700 = vsel %vm1693, %v1689, 0.0
      %1701 = vadd.xlane.f32.xlu0 %v1700
      %v1702 = vpop.xlane.xlu0 %1701
      %v1703 = vsel %vm1693, %v1690, 0.0
      %1704 = vadd.xlane.f32.xlu0 %v1703
      %v1705 = vpop.xlane.xlu0 %1704
      %v1706 = vsel %vm1693, %v1691, 0.0
      %1707 = vadd.xlane.f32.xlu0 %v1706
      %v1708 = vpop.xlane.xlu0 %1707
      %v1709 = vsel %vm1693, %v1692, 0.0
      %1710 = vadd.xlane.f32.xlu0 %v1709
      %v1711 = vpop.xlane.xlu0 %1710
      %v1712 = vrcp.pop 32.0
      %v1713 = vmul.f32 %v1696, %v1712
      %v1714 = vmul.f32 %v1699, %v1712
      %v1715 = vmul.f32 %v1702, %v1712
      %v1716 = vmul.f32 %v1705, %v1712
      %v1717 = vmul.f32 %v1708, %v1712
      %v1718 = vmul.f32 %v1711, %v1712
      %v1719 = vsub.f32 %v1687, %v1713
      %v1720 = vsub.f32 %v1688, %v1714
      %v1721 = vsub.f32 %v1689, %v1715
      %v1722 = vsub.f32 %v1690, %v1716
      %v1723 = vsub.f32 %v1691, %v1717
      %v1724 = vsub.f32 %v1692, %v1718
      %v1725 = vmul.f32 %v1719, %v1719
      %v1726 = vmul.f32 %v1720, %v1720
      %v1727 = vmul.f32 %v1721, %v1721
      %v1728 = vmul.f32 %v1722, %v1722
      %v1729 = vmul.f32 %v1723, %v1723
      %v1730 = vmul.f32 %v1724, %v1724
      %v1731 = vsel %vm1693, %v1725, 0.0
      %1732 = vadd.xlane.f32.xlu0 %v1731
      %v1733 = vpop.xlane.xlu0 %1732
      %v1734 = vsel %vm1693, %v1726, 0.0
      %1735 = vadd.xlane.f32.xlu0 %v1734
      %v1736 = vpop.xlane.xlu0 %1735
      %v1737 = vsel %vm1693, %v1727, 0.0
      %1738 = vadd.xlane.f32.xlu0 %v1737
      %v1739 = vpop.xlane.xlu0 %1738
      %v1740 = vsel %vm1693, %v1728, 0.0
      %1741 = vadd.xlane.f32.xlu0 %v1740
      %v1742 = vpop.xlane.xlu0 %1741
      %v1743 = vsel %vm1693, %v1729, 0.0
      %1744 = vadd.xlane.f32.xlu0 %v1743
      %v1745 = vpop.xlane.xlu0 %1744
      %v1746 = vsel %vm1693, %v1730, 0.0
      %1747 = vadd.xlane.f32.xlu0 %v1746
      %v1748 = vpop.xlane.xlu0 %1747
      %v1749 = vmul.f32 %v1733, %v1712
      %v1750 = vmul.f32 %v1736, %v1712
      %v1751 = vmul.f32 %v1739, %v1712
      %v1752 = vmul.f32 %v1742, %v1712
      %v1753 = vmul.f32 %v1745, %v1712
      %v1754 = vmul.f32 %v1748, %v1712
      %v1755 = vadd.f32 %v1749, 1e-05
      %v1756 = vadd.f32 %v1750, 1e-05
      %v1757 = vadd.f32 %v1751, 1e-05
      %v1758 = vadd.f32 %v1752, 1e-05
      %v1759 = vadd.f32 %v1753, 1e-05
      %v1760 = vadd.f32 %v1754, 1e-05
      %v1761 = vrsqrt.pop %v1755
      %v1762 = vrsqrt.pop %v1756
      %v1763 = vrsqrt.pop %v1757
      %v1764 = vrsqrt.pop %v1758
      %v1765 = vrsqrt.pop %v1759
      %v1766 = vrsqrt.pop %v1760
      %v1767 = vmul.f32 %v1719, %v1761
      %v1768 = vmul.f32 %v1720, %v1762
      %v1769 = vmul.f32 %v1721, %v1763
      %v1770 = vmul.f32 %v1722, %v1764
      %v1771 = vmul.f32 %v1723, %v1765
      %v1772 = vmul.f32 %v1724, %v1766
      %v1773 = vld [vmem:[%s5] sm:$0x1]
      %v1775 = vlaneseq
      %v1776 = vshrl.u32 %v1775, 7
      %v1777 = vsub.s32 0, %v1776
      %v1778 = vrot.slane %v1773, %v1777
      %v1780 = vmul.f32 %v1767, %v1778
      %v1781 = vmul.f32 %v1768, %v1778
      %v1782 = vmul.f32 %v1769, %v1778
      %v1783 = vmul.f32 %v1770, %v1778
      %v1784 = vmul.f32 %v1771, %v1778
      %v1785 = vmul.f32 %v1772, %v1778
      %v1786 = vld [vmem:[%s6] sm:$0x1]
      %v1788 = vlaneseq
      %v1789 = vshrl.u32 %v1788, 7
      %v1790 = vsub.s32 0, %v1789
      %v1791 = vrot.slane %v1786, %v1790
      %v1793 = vadd.f32 %v1780, %v1791
      %v1794 = vadd.f32 %v1781, %v1791
      %v1795 = vadd.f32 %v1782, %v1791
      %v1796 = vadd.f32 %v1783, %v1791
      %v1797 = vadd.f32 %v1784, %v1791
      %v1798 = vadd.f32 %v1785, %v1791
      %1799 = vst.msk [vmem:[%s300] sm:$0xff] %vm1693, %v1793
      %1800 = vst.msk [vmem:[%s300 + $0x8] sm:$0xff] %vm1693, %v1794
      %1801 = vst.msk [vmem:[%s300 + $0x10] sm:$0xff] %vm1693, %v1795
      %1802 = vst.msk [vmem:[%s300 + $0x18] sm:$0xff] %vm1693, %v1796
      %1803 = vst.msk [vmem:[%s300 + $0x20] sm:$0xff] %vm1693, %v1797
      %1804 = vst.msk [vmem:[%s300 + $0x28] sm:$0xff] %vm1693, %v1798
      %s1805 = smul.u32 6, %s23
      %p1806 = scmp.lt.s32.totalorder %s22, 1
      %s1807 = scalar_select %p1806, %s22, 1
      %p1808 = scmp.lt.s32.totalorder %s1805, 5
      %s1809 = scalar_select %p1808, %s1805, 5
      %s1810 = smul.addr %s1807, 6
      %s1811 = sadd.s32 %s1809, %s1810
      %s1812 = smul.addr %s1811, 8
      %s1813 = scalar_lea.vmem %s7, %s1812
      // Predicated region
      $region53: #{mccformers_s.6} parent=47 // pred_check
        %p1814 = pneg %p202
      $region54: #{mccformers_s.6} parent=47 // pred_check_branch
        %1816 = sbr.rel (%p1814) target = $region56
      $region55: #{mccformers_s.6} parent=47 // pred_region
        %s1817 = smul.u32 6, %s23
      $region56: #{mccformers_s.6} parent=47 // pred_fallthru
        _
    $region48: #{mccformers_s.6} parent=5 // pred_fallthru
      _
    %p1818 = scmp.le.s32.totalorder 2, %s13
    // Predicated region
    $region57: #{mccformers_s.6} parent=5 // pred_check
      %p1819 = pneg %p1818
    $region58: #{mccformers_s.6} parent=5 // pred_check_branch
      %1821 = sbr.rel (%p1819) target = $region60
    $region59: #{mccformers_s.6} parent=5 // pred_region
      %s1822 = ssub.s32 %s13, 2
      // Predicated region
      $region61: #{mccformers_s.6} parent=59 // pred_check
        %p1823 = pneg %p208
      $region62: #{mccformers_s.6} parent=59 // pred_check_branch
        %1825 = sbr.rel (%p1823) target = $region64
      $region63: #{mccformers_s.6} parent=59 // pred_region
        %s1826 = smul.u32 6, %s25
        %p1827 = scmp.lt.s32.totalorder %s24, 1
        %s1828 = scalar_select %p1827, %s24, 1
        %p1829 = scmp.lt.s32.totalorder %s1826, 5
        %s1830 = scalar_select %p1829, %s1826, 5
        %s1831 = smul.addr %s1828, 6
        %s1832 = sadd.s32 %s1830, %s1831
        %s1833 = smul.addr %s1832, 8
        %s1834 = scalar_lea.vmem %s7, %s1833
      $region64: #{mccformers_s.6} parent=59 // pred_fallthru
        _
    $region60: #{mccformers_s.6} parent=5 // pred_fallthru
      _
  $region6: #{mccformers_s.6} parent=0 // loop_footer
    %s17 = sadd.s32 1, %s13
  $region7: #{mccformers_s.6} parent=0 // loop_footer_branch
    %12 = sbr.rel target = $region3
  $region8: #{mccformers_s.6} parent=0 // loop_exit
    _

</llo_original>
